<compile_context>
chip_gen: v7x
topology: tpu7x:2x2x1
jax: 0.10.0
libtpu: 0.0.40
codegen_flags: <defaults>
</compile_context>

<pallas_src>
import jax
import jax.numpy as jnp
from jax.experimental import pallas as pl
from jax.experimental.pallas import tpu as pltpu

NEG_SLOPE = 0.2
BN_EPS = 0.8


def _lrelu(x):
    return jnp.where(x > 0, x, NEG_SLOPE * x)


# ------------------------------ fused kernel ------------------------------- #

def disc_fused_kernel(p1_ref, w1m_ref, b1_ref,
                      w2m_ref, s2_ref, t2_ref, pad2_ref,
                      w3m_ref, s3_ref, t3_ref,
                      wfm_ref, bf_ref,
                      o_ref,
                      a1p_ref, a2p_ref):
    # ---- Block 1: Conv(1->64, k3, s2, p1) + bias + LeakyReLU --------------
    # p1_ref block: (1, 140, 9) im2col patches for this image.
    z1 = jnp.dot(p1_ref[0], w1m_ref[...], preferred_element_type=jnp.float32)
    a1 = _lrelu(z1 + b1_ref[...])                      # (140, 64), row = oh*10+ow

    # Zero-padded (padding=1) activation map for conv2, kept in VMEM scratch.
    a1p_ref[...] = jnp.zeros_like(a1p_ref)             # (16, 12, 64)
    for oh in range(14):
        a1p_ref[1 + oh, 1:11, :] = a1[10 * oh:10 * oh + 10, :]

    # ---- Block 2: Conv(64->128, k3, s2, p1) -> ZeroPad2d -> BN -> LReLU ---
    a1p = a1p_ref[...]                                 # (16, 12, 64)
    # cols2[j][r, k, :] = a1p[r, j + 2k, :]   (stride-2 column gather per tap j)
    cols2 = [jnp.concatenate(
                 [a1p[:, j + 2 * k:j + 2 * k + 1, :] for k in range(5)], axis=1)
             for j in range(3)]                        # 3 x (16, 5, 64)
    rows2 = []
    for oh in range(7):
        taps = [cols2[j][2 * oh + i] for i in range(3) for j in range(3)]
        rows2.append(jnp.concatenate(taps, axis=-1))   # (5, 576), lane = 64*(3i+j)+ci
    patches2 = jnp.concatenate(rows2, axis=0)          # (35, 576)
    z2 = jnp.dot(patches2, w2m_ref[...], preferred_element_type=jnp.float32)
    a2 = _lrelu(z2 * s2_ref[...] + t2_ref[...])        # (35, 128), row = 5*oh+ow

    # ZeroPad2d((0,1,0,1)) precedes BN+LReLU -> border pixels = LeakyReLU(beta2).
    a2p_ref[...] = jnp.broadcast_to(pad2_ref[...].reshape(1, 1, 128), (8, 6, 128))
    for oh in range(7):
        a2p_ref[oh, 0:5, :] = a2[5 * oh:5 * oh + 5, :]

    # ---- Block 3: Conv(128->256, k3, s2, p0) -> BN -> LReLU ---------------
    a2p = a2p_ref[...]                                 # (8, 6, 128)
    cols3 = [jnp.concatenate([a2p[:, j:j + 1, :], a2p[:, j + 2:j + 3, :]], axis=1)
             for j in range(3)]                        # 3 x (8, 2, 128)
    rows3 = []
    for oh in range(3):
        taps = [cols3[j][2 * oh + i] for i in range(3) for j in range(3)]
        rows3.append(jnp.concatenate(taps, axis=-1))   # (2, 1152)
    patches3 = jnp.concatenate(rows3, axis=0)          # (6, 1152)
    z3 = jnp.dot(patches3, w3m_ref[...], preferred_element_type=jnp.float32)
    a3 = _lrelu(z3 * s3_ref[...] + t3_ref[...])        # (6, 256), row = 2*oh+ow

    # ---- Flatten (via pre-permuted weight) + Linear(1536->1) + Sigmoid ----
    z = jnp.sum(a3 * wfm_ref[...], axis=1, keepdims=True)     # (6, 1)
    z = jnp.sum(z, axis=0, keepdims=True) + bf_ref[...]       # (1, 1)
    sig = pl.reciprocal(1.0 + jnp.exp(-z), approx=True)
    o_ref[0] = sig


# ---------------------------- one-time param prep --------------------------- #

def prepare_params(params):
    """Fold BN into per-channel affine, transpose conv weights to im2col order,
    and pre-permute the linear weight into the kernel's NHWC row order."""
    inv_std = 1.0 / jnp.sqrt(1.0 + BN_EPS)      # BN running stats mean=0, var=1
    scale2 = params["g2"] * inv_std
    shift2 = scale2 * params["b2"] + params["be2"]
    scale3 = params["g3"] * inv_std
    shift3 = scale3 * params["b3"] + params["be3"]
    pad2 = _lrelu(params["be2"])                # ZeroPad2d pixel -> BN -> LReLU

    def conv_w_to_mat(w):   # (Cout, Cin, KH, KW) -> (KH*KW*Cin, Cout)
        cout, cin, kh, kw = w.shape
        return jnp.transpose(w, (2, 3, 1, 0)).reshape(kh * kw * cin, cout)

    return {
        "w1m": conv_w_to_mat(params["w1"]),           # (9, 64)
        "b1": params["b1"].reshape(1, 64),
        "w2m": conv_w_to_mat(params["w2"]),           # (576, 128)
        "scale2": scale2.reshape(1, 128),
        "shift2": shift2.reshape(1, 128),
        "pad2": pad2.reshape(1, 128),
        "w3m": conv_w_to_mat(params["w3"]),           # (1152, 256)
        "scale3": scale3.reshape(1, 256),
        "shift3": shift3.reshape(1, 256),
        # torch Flatten is NCHW order: flat[c*6 + (h*2+w)] ; our a3 is (h*2+w, c)
        "wfm": params["wf"].reshape(256, 6).T,        # (6, 256)
        "bf": params["bf"].reshape(1, 1),
    }


# --------------------------------- forward --------------------------------- #

def discriminator_forward(prepared, img_nchw):
    n = img_nchw.shape[0]
    x = img_nchw.reshape(n, 28, 20).astype(jnp.float32)
    xp = jnp.pad(x, ((0, 0), (1, 1), (1, 1)))                 # (N, 30, 22)
    # Tiny conv1 im2col (Cin=1, K=9) built in XLA; all other layers stay in-kernel.
    taps = [xp[:, i:i + 27:2, j:j + 19:2].reshape(n, 140)
            for i in range(3) for j in range(3)]
    p1 = jnp.stack(taps, axis=-1)                             # (N, 140, 9)

    rep = lambda b: (0, 0)   # weights: constant block -> DMA'd once
    out = pl.pallas_call(
        disc_fused_kernel,
        out_shape=jax.ShapeDtypeStruct((n, 1, 1), jnp.float32),
        grid=(n,),
        in_specs=[
            pl.BlockSpec((1, 140, 9), lambda b: (b, 0, 0)),   # conv1 patches
            pl.BlockSpec((9, 64), rep),                       # w1m
            pl.BlockSpec((1, 64), rep),                       # b1
            pl.BlockSpec((576, 128), rep),                    # w2m
            pl.BlockSpec((1, 128), rep),                      # scale2
            pl.BlockSpec((1, 128), rep),                      # shift2
            pl.BlockSpec((1, 128), rep),                      # pad2
            pl.BlockSpec((1152, 256), rep),                   # w3m
            pl.BlockSpec((1, 256), rep),                      # scale3
            pl.BlockSpec((1, 256), rep),                      # shift3
            pl.BlockSpec((6, 256), rep),                      # wfm
            pl.BlockSpec((1, 1), rep),                        # bf
        ],
        out_specs=pl.BlockSpec((1, 1, 1), lambda b: (b, 0, 0)),
        scratch_shapes=[
            pltpu.VMEM((16, 12, 64), jnp.float32),            # padded act1
            pltpu.VMEM((8, 6, 128), jnp.float32),             # padded act2
        ],
        compiler_params=pltpu.CompilerParams(
            dimension_semantics=("parallel",)),
    )(p1, prepared["w1m"], prepared["b1"], prepared["w2m"],
      prepared["scale2"], prepared["shift2"], prepared["pad2"],
      prepared["w3m"], prepared["scale3"], prepared["shift3"],
      prepared["wfm"], prepared["bf"])
    return out.reshape(n, 1)


# ---------------------------------- setup ----------------------------------- #

def init_params(key):
    ks = jax.random.split(key, 12)

    def nrm(k, shape, s=0.05):
        return jax.random.normal(k, shape, jnp.float32) * s

    return {
        "w1": nrm(ks[0], (64, 1, 3, 3)),
        "b1": nrm(ks[1], (64,)),
        "w2": nrm(ks[2], (128, 64, 3, 3)),
        "b2": nrm(ks[3], (128,)),
        "g2": 1.0 + nrm(ks[4], (128,), 0.1),
        "be2": nrm(ks[5], (128,), 0.1),
        "w3": nrm(ks[6], (256, 128, 3, 3)),
        "b3": nrm(ks[7], (256,)),
        "g3": 1.0 + nrm(ks[8], (256,), 0.1),
        "be3": nrm(ks[9], (256,), 0.1),
        "wf": nrm(ks[10], (1, 256 * 3 * 2)),
        "bf": nrm(ks[11], (1,)),
    }


if __name__ == "__main__":
    key = jax.random.PRNGKey(0)
    pkey, xkey = jax.random.split(key)
    params = init_params(pkey)
    prepared = prepare_params(params)                 # one-time weight folding
    img = jax.random.normal(xkey, (2, 1, 28, 20), jnp.float32)   # NCHW input

    fwd = jax.jit(discriminator_forward)
    out = fwd(prepared, img)
    out = jax.block_until_ready(out)

    assert out.shape == (2, 1) and out.dtype == jnp.float32
    assert bool(jnp.all(jnp.isfinite(out)))
    assert bool(jnp.all((out >= 0.0) & (out <= 1.0)))
    print("KERNEL_OK")
</pallas_src>

<mosaic_0001>
module attributes {stable_mosaic.version = 11 : i64} {
  func.func @disc_fused_kernel(%arg0: i32, %arg1: memref<1x140x9xf32, #tpu.memory_space<vmem>>, %arg2: memref<9x64xf32, #tpu.memory_space<vmem>>, %arg3: memref<1x64xf32, #tpu.memory_space<vmem>>, %arg4: memref<576x128xf32, #tpu.memory_space<vmem>>, %arg5: memref<1x128xf32, #tpu.memory_space<vmem>>, %arg6: memref<1x128xf32, #tpu.memory_space<vmem>>, %arg7: memref<1x128xf32, #tpu.memory_space<vmem>>, %arg8: memref<1152x256xf32, #tpu.memory_space<vmem>>, %arg9: memref<1x256xf32, #tpu.memory_space<vmem>>, %arg10: memref<1x256xf32, #tpu.memory_space<vmem>>, %arg11: memref<6x256xf32, #tpu.memory_space<vmem>>, %arg12: memref<1x1xf32, #tpu.memory_space<vmem>>, %arg13: memref<1x1x1xf32, #tpu.memory_space<vmem>>, %arg14: memref<16x12x64xf32, #tpu.memory_space<vmem>>, %arg15: memref<8x6x128xf32, #tpu.memory_space<vmem>>) attributes {dimension_semantics = [#tpu.dimension_semantics<parallel>], iteration_bounds = array<i64: 2>, scalar_prefetch = 0 : i64, scratch_operands = 2 : i64, tpu.core_type = #tpu.core_type<tc>, window_params = [{transform_indices = @transform_0, window_bounds = array<i64: 1, 140, 9>}, {pipeline_mode = #tpu.pipeline_mode<synchronous>, transform_indices = @transform_1, window_bounds = array<i64: 9, 64>}, {pipeline_mode = #tpu.pipeline_mode<synchronous>, transform_indices = @transform_2, window_bounds = array<i64: 1, 64>}, {pipeline_mode = #tpu.pipeline_mode<synchronous>, transform_indices = @transform_3, window_bounds = array<i64: 576, 128>}, {pipeline_mode = #tpu.pipeline_mode<synchronous>, transform_indices = @transform_4, window_bounds = array<i64: 1, 128>}, {pipeline_mode = #tpu.pipeline_mode<synchronous>, transform_indices = @transform_5, window_bounds = array<i64: 1, 128>}, {pipeline_mode = #tpu.pipeline_mode<synchronous>, transform_indices = @transform_6, window_bounds = array<i64: 1, 128>}, {pipeline_mode = #tpu.pipeline_mode<synchronous>, transform_indices = @transform_7, window_bounds = array<i64: 1152, 256>}, {pipeline_mode = #tpu.pipeline_mode<synchronous>, transform_indices = @transform_8, window_bounds = array<i64: 1, 256>}, {pipeline_mode = #tpu.pipeline_mode<synchronous>, transform_indices = @transform_9, window_bounds = array<i64: 1, 256>}, {pipeline_mode = #tpu.pipeline_mode<synchronous>, transform_indices = @transform_10, window_bounds = array<i64: 6, 256>}, {pipeline_mode = #tpu.pipeline_mode<synchronous>, transform_indices = @transform_11, window_bounds = array<i64: 1, 1>}, {transform_indices = @transform_12, window_bounds = array<i64: 1, 1, 1>}]} {
    %c0 = arith.constant 0 : index
    %c0_0 = arith.constant 0 : index
    %c0_1 = arith.constant 0 : index
    %0 = vector.load %arg1[%c0, %c0_0, %c0_1] : memref<1x140x9xf32, #tpu.memory_space<vmem>>, vector<1x140x9xf32>
    %1 = vector.shape_cast %0 : vector<1x140x9xf32> to vector<140x9xf32>
    %c0_2 = arith.constant 0 : index
    %c0_3 = arith.constant 0 : index
    %2 = vector.load %arg2[%c0_2, %c0_3] : memref<9x64xf32, #tpu.memory_space<vmem>>, vector<9x64xf32>
    %cst = arith.constant dense<0.000000e+00> : vector<140x64xf32>
    %3 = tpu.matmul %1, %2, %cst {dimension_numbers = #tpu.dot_dimension_numbers<[1], [0], [0], [1], [0, 0, 1, 1], [], []>} : vector<140x9xf32>, vector<9x64xf32>, vector<140x64xf32> -> vector<140x64xf32>
    %c0_4 = arith.constant 0 : index
    %c0_5 = arith.constant 0 : index
    %4 = vector.load %arg3[%c0_4, %c0_5] : memref<1x64xf32, #tpu.memory_space<vmem>>, vector<1x64xf32>
    %5 = vector.broadcast %4 : vector<1x64xf32> to vector<140x64xf32>
    %6 = arith.addf %3, %5 : vector<140x64xf32>
    %cst_6 = arith.constant 0.000000e+00 : f32
    %7 = vector.broadcast %cst_6 : f32 to vector<140x64xf32>
    %8 = arith.cmpf ogt, %6, %7 : vector<140x64xf32>
    %cst_7 = arith.constant 2.000000e-01 : f32
    %9 = vector.broadcast %cst_7 : f32 to vector<140x64xf32>
    %10 = arith.mulf %9, %6 : vector<140x64xf32>
    %11 = arith.select %8, %6, %10 : vector<140x64xi1>, vector<140x64xf32>
    %cst_8 = arith.constant 0.000000e+00 : f32
    %12 = vector.broadcast %cst_8 : f32 to vector<16x12x64xf32>
    %c0_9 = arith.constant 0 : index
    %c0_10 = arith.constant 0 : index
    %c0_11 = arith.constant 0 : index
    %13 = vector.load %arg14[%c0_9, %c0_10, %c0_11] : memref<16x12x64xf32, #tpu.memory_space<vmem>>, vector<16x12x64xf32>
    tpu.vector_store %arg14[%c0_9, %c0_10, %c0_11], %12 {strides = array<i32>} : memref<16x12x64xf32, #tpu.memory_space<vmem>>, vector<16x12x64xf32>,
    %14 = vector.extract_strided_slice %11 {offsets = [0, 0], sizes = [10, 64], strides = [1, 1]} : vector<140x64xf32> to vector<10x64xf32>
    %c1 = arith.constant 1 : index
    %c1_12 = arith.constant 1 : index
    %c0_13 = arith.constant 0 : index
    %15 = vector.load %arg14[%c1, %c1_12, %c0_13] : memref<16x12x64xf32, #tpu.memory_space<vmem>>, vector<1x10x64xf32>
    %16 = vector.shape_cast %15 : vector<1x10x64xf32> to vector<10x64xf32>
    %17 = vector.shape_cast %14 : vector<10x64xf32> to vector<1x10x64xf32>
    tpu.vector_store %arg14[%c1, %c1_12, %c0_13], %17 {strides = array<i32>} : memref<16x12x64xf32, #tpu.memory_space<vmem>>, vector<1x10x64xf32>,
    %18 = vector.extract_strided_slice %11 {offsets = [10, 0], sizes = [10, 64], strides = [1, 1]} : vector<140x64xf32> to vector<10x64xf32>
    %c2 = arith.constant 2 : index
    %c1_14 = arith.constant 1 : index
    %c0_15 = arith.constant 0 : index
    %19 = vector.load %arg14[%c2, %c1_14, %c0_15] : memref<16x12x64xf32, #tpu.memory_space<vmem>>, vector<1x10x64xf32>
    %20 = vector.shape_cast %19 : vector<1x10x64xf32> to vector<10x64xf32>
    %21 = vector.shape_cast %18 : vector<10x64xf32> to vector<1x10x64xf32>
    tpu.vector_store %arg14[%c2, %c1_14, %c0_15], %21 {strides = array<i32>} : memref<16x12x64xf32, #tpu.memory_space<vmem>>, vector<1x10x64xf32>,
    %22 = vector.extract_strided_slice %11 {offsets = [20, 0], sizes = [10, 64], strides = [1, 1]} : vector<140x64xf32> to vector<10x64xf32>
    %c3 = arith.constant 3 : index
    %c1_16 = arith.constant 1 : index
    %c0_17 = arith.constant 0 : index
    %23 = vector.load %arg14[%c3, %c1_16, %c0_17] : memref<16x12x64xf32, #tpu.memory_space<vmem>>, vector<1x10x64xf32>
    %24 = vector.shape_cast %23 : vector<1x10x64xf32> to vector<10x64xf32>
    %25 = vector.shape_cast %22 : vector<10x64xf32> to vector<1x10x64xf32>
    tpu.vector_store %arg14[%c3, %c1_16, %c0_17], %25 {strides = array<i32>} : memref<16x12x64xf32, #tpu.memory_space<vmem>>, vector<1x10x64xf32>,
    %26 = vector.extract_strided_slice %11 {offsets = [30, 0], sizes = [10, 64], strides = [1, 1]} : vector<140x64xf32> to vector<10x64xf32>
    %c4 = arith.constant 4 : index
    %c1_18 = arith.constant 1 : index
    %c0_19 = arith.constant 0 : index
    %27 = vector.load %arg14[%c4, %c1_18, %c0_19] : memref<16x12x64xf32, #tpu.memory_space<vmem>>, vector<1x10x64xf32>
    %28 = vector.shape_cast %27 : vector<1x10x64xf32> to vector<10x64xf32>
    %29 = vector.shape_cast %26 : vector<10x64xf32> to vector<1x10x64xf32>
    tpu.vector_store %arg14[%c4, %c1_18, %c0_19], %29 {strides = array<i32>} : memref<16x12x64xf32, #tpu.memory_space<vmem>>, vector<1x10x64xf32>,
    %30 = vector.extract_strided_slice %11 {offsets = [40, 0], sizes = [10, 64], strides = [1, 1]} : vector<140x64xf32> to vector<10x64xf32>
    %c5 = arith.constant 5 : index
    %c1_20 = arith.constant 1 : index
    %c0_21 = arith.constant 0 : index
    %31 = vector.load %arg14[%c5, %c1_20, %c0_21] : memref<16x12x64xf32, #tpu.memory_space<vmem>>, vector<1x10x64xf32>
    %32 = vector.shape_cast %31 : vector<1x10x64xf32> to vector<10x64xf32>
    %33 = vector.shape_cast %30 : vector<10x64xf32> to vector<1x10x64xf32>
    tpu.vector_store %arg14[%c5, %c1_20, %c0_21], %33 {strides = array<i32>} : memref<16x12x64xf32, #tpu.memory_space<vmem>>, vector<1x10x64xf32>,
    %34 = vector.extract_strided_slice %11 {offsets = [50, 0], sizes = [10, 64], strides = [1, 1]} : vector<140x64xf32> to vector<10x64xf32>
    %c6 = arith.constant 6 : index
    %c1_22 = arith.constant 1 : index
    %c0_23 = arith.constant 0 : index
    %35 = vector.load %arg14[%c6, %c1_22, %c0_23] : memref<16x12x64xf32, #tpu.memory_space<vmem>>, vector<1x10x64xf32>
    %36 = vector.shape_cast %35 : vector<1x10x64xf32> to vector<10x64xf32>
    %37 = vector.shape_cast %34 : vector<10x64xf32> to vector<1x10x64xf32>
    tpu.vector_store %arg14[%c6, %c1_22, %c0_23], %37 {strides = array<i32>} : memref<16x12x64xf32, #tpu.memory_space<vmem>>, vector<1x10x64xf32>,
    %38 = vector.extract_strided_slice %11 {offsets = [60, 0], sizes = [10, 64], strides = [1, 1]} : vector<140x64xf32> to vector<10x64xf32>
    %c7 = arith.constant 7 : index
    %c1_24 = arith.constant 1 : index
    %c0_25 = arith.constant 0 : index
    %39 = vector.load %arg14[%c7, %c1_24, %c0_25] : memref<16x12x64xf32, #tpu.memory_space<vmem>>, vector<1x10x64xf32>
    %40 = vector.shape_cast %39 : vector<1x10x64xf32> to vector<10x64xf32>
    %41 = vector.shape_cast %38 : vector<10x64xf32> to vector<1x10x64xf32>
    tpu.vector_store %arg14[%c7, %c1_24, %c0_25], %41 {strides = array<i32>} : memref<16x12x64xf32, #tpu.memory_space<vmem>>, vector<1x10x64xf32>,
    %42 = vector.extract_strided_slice %11 {offsets = [70, 0], sizes = [10, 64], strides = [1, 1]} : vector<140x64xf32> to vector<10x64xf32>
    %c8 = arith.constant 8 : index
    %c1_26 = arith.constant 1 : index
    %c0_27 = arith.constant 0 : index
    %43 = vector.load %arg14[%c8, %c1_26, %c0_27] : memref<16x12x64xf32, #tpu.memory_space<vmem>>, vector<1x10x64xf32>
    %44 = vector.shape_cast %43 : vector<1x10x64xf32> to vector<10x64xf32>
    %45 = vector.shape_cast %42 : vector<10x64xf32> to vector<1x10x64xf32>
    tpu.vector_store %arg14[%c8, %c1_26, %c0_27], %45 {strides = array<i32>} : memref<16x12x64xf32, #tpu.memory_space<vmem>>, vector<1x10x64xf32>,
    %46 = vector.extract_strided_slice %11 {offsets = [80, 0], sizes = [10, 64], strides = [1, 1]} : vector<140x64xf32> to vector<10x64xf32>
    %c9 = arith.constant 9 : index
    %c1_28 = arith.constant 1 : index
    %c0_29 = arith.constant 0 : index
    %47 = vector.load %arg14[%c9, %c1_28, %c0_29] : memref<16x12x64xf32, #tpu.memory_space<vmem>>, vector<1x10x64xf32>
    %48 = vector.shape_cast %47 : vector<1x10x64xf32> to vector<10x64xf32>
    %49 = vector.shape_cast %46 : vector<10x64xf32> to vector<1x10x64xf32>
    tpu.vector_store %arg14[%c9, %c1_28, %c0_29], %49 {strides = array<i32>} : memref<16x12x64xf32, #tpu.memory_space<vmem>>, vector<1x10x64xf32>,
    %50 = vector.extract_strided_slice %11 {offsets = [90, 0], sizes = [10, 64], strides = [1, 1]} : vector<140x64xf32> to vector<10x64xf32>
    %c10 = arith.constant 10 : index
    %c1_30 = arith.constant 1 : index
    %c0_31 = arith.constant 0 : index
    %51 = vector.load %arg14[%c10, %c1_30, %c0_31] : memref<16x12x64xf32, #tpu.memory_space<vmem>>, vector<1x10x64xf32>
    %52 = vector.shape_cast %51 : vector<1x10x64xf32> to vector<10x64xf32>
    %53 = vector.shape_cast %50 : vector<10x64xf32> to vector<1x10x64xf32>
    tpu.vector_store %arg14[%c10, %c1_30, %c0_31], %53 {strides = array<i32>} : memref<16x12x64xf32, #tpu.memory_space<vmem>>, vector<1x10x64xf32>,
    %54 = vector.extract_strided_slice %11 {offsets = [100, 0], sizes = [10, 64], strides = [1, 1]} : vector<140x64xf32> to vector<10x64xf32>
    %c11 = arith.constant 11 : index
    %c1_32 = arith.constant 1 : index
    %c0_33 = arith.constant 0 : index
    %55 = vector.load %arg14[%c11, %c1_32, %c0_33] : memref<16x12x64xf32, #tpu.memory_space<vmem>>, vector<1x10x64xf32>
    %56 = vector.shape_cast %55 : vector<1x10x64xf32> to vector<10x64xf32>
    %57 = vector.shape_cast %54 : vector<10x64xf32> to vector<1x10x64xf32>
    tpu.vector_store %arg14[%c11, %c1_32, %c0_33], %57 {strides = array<i32>} : memref<16x12x64xf32, #tpu.memory_space<vmem>>, vector<1x10x64xf32>,
    %58 = vector.extract_strided_slice %11 {offsets = [110, 0], sizes = [10, 64], strides = [1, 1]} : vector<140x64xf32> to vector<10x64xf32>
    %c12 = arith.constant 12 : index
    %c1_34 = arith.constant 1 : index
    %c0_35 = arith.constant 0 : index
    %59 = vector.load %arg14[%c12, %c1_34, %c0_35] : memref<16x12x64xf32, #tpu.memory_space<vmem>>, vector<1x10x64xf32>
    %60 = vector.shape_cast %59 : vector<1x10x64xf32> to vector<10x64xf32>
    %61 = vector.shape_cast %58 : vector<10x64xf32> to vector<1x10x64xf32>
    tpu.vector_store %arg14[%c12, %c1_34, %c0_35], %61 {strides = array<i32>} : memref<16x12x64xf32, #tpu.memory_space<vmem>>, vector<1x10x64xf32>,
    %62 = vector.extract_strided_slice %11 {offsets = [120, 0], sizes = [10, 64], strides = [1, 1]} : vector<140x64xf32> to vector<10x64xf32>
    %c13 = arith.constant 13 : index
    %c1_36 = arith.constant 1 : index
    %c0_37 = arith.constant 0 : index
    %63 = vector.load %arg14[%c13, %c1_36, %c0_37] : memref<16x12x64xf32, #tpu.memory_space<vmem>>, vector<1x10x64xf32>
    %64 = vector.shape_cast %63 : vector<1x10x64xf32> to vector<10x64xf32>
    %65 = vector.shape_cast %62 : vector<10x64xf32> to vector<1x10x64xf32>
    tpu.vector_store %arg14[%c13, %c1_36, %c0_37], %65 {strides = array<i32>} : memref<16x12x64xf32, #tpu.memory_space<vmem>>, vector<1x10x64xf32>,
    %66 = vector.extract_strided_slice %11 {offsets = [130, 0], sizes = [10, 64], strides = [1, 1]} : vector<140x64xf32> to vector<10x64xf32>
    %c14 = arith.constant 14 : index
    %c1_38 = arith.constant 1 : index
    %c0_39 = arith.constant 0 : index
    %67 = vector.load %arg14[%c14, %c1_38, %c0_39] : memref<16x12x64xf32, #tpu.memory_space<vmem>>, vector<1x10x64xf32>
    %68 = vector.shape_cast %67 : vector<1x10x64xf32> to vector<10x64xf32>
    %69 = vector.shape_cast %66 : vector<10x64xf32> to vector<1x10x64xf32>
    tpu.vector_store %arg14[%c14, %c1_38, %c0_39], %69 {strides = array<i32>} : memref<16x12x64xf32, #tpu.memory_space<vmem>>, vector<1x10x64xf32>,
    %c0_40 = arith.constant 0 : index
    %c0_41 = arith.constant 0 : index
    %c0_42 = arith.constant 0 : index
    %70 = vector.load %arg14[%c0_40, %c0_41, %c0_42] : memref<16x12x64xf32, #tpu.memory_space<vmem>>, vector<16x12x64xf32>
    %71 = vector.extract_strided_slice %70 {offsets = [0, 0, 0], sizes = [16, 1, 64], strides = [1, 1, 1]} : vector<16x12x64xf32> to vector<16x1x64xf32>
    %72 = vector.extract_strided_slice %70 {offsets = [0, 2, 0], sizes = [16, 1, 64], strides = [1, 1, 1]} : vector<16x12x64xf32> to vector<16x1x64xf32>
    %73 = vector.extract_strided_slice %70 {offsets = [0, 4, 0], sizes = [16, 1, 64], strides = [1, 1, 1]} : vector<16x12x64xf32> to vector<16x1x64xf32>
    %74 = vector.extract_strided_slice %70 {offsets = [0, 6, 0], sizes = [16, 1, 64], strides = [1, 1, 1]} : vector<16x12x64xf32> to vector<16x1x64xf32>
    %75 = vector.extract_strided_slice %70 {offsets = [0, 8, 0], sizes = [16, 1, 64], strides = [1, 1, 1]} : vector<16x12x64xf32> to vector<16x1x64xf32>
    %76 = tpu.concatenate %71, %72, %73, %74, %75 in 1 : vector<16x1x64xf32>, vector<16x1x64xf32>, vector<16x1x64xf32>, vector<16x1x64xf32>, vector<16x1x64xf32> -> vector<16x5x64xf32>
    %77 = vector.extract_strided_slice %70 {offsets = [0, 1, 0], sizes = [16, 1, 64], strides = [1, 1, 1]} : vector<16x12x64xf32> to vector<16x1x64xf32>
    %78 = vector.extract_strided_slice %70 {offsets = [0, 3, 0], sizes = [16, 1, 64], strides = [1, 1, 1]} : vector<16x12x64xf32> to vector<16x1x64xf32>
    %79 = vector.extract_strided_slice %70 {offsets = [0, 5, 0], sizes = [16, 1, 64], strides = [1, 1, 1]} : vector<16x12x64xf32> to vector<16x1x64xf32>
    %80 = vector.extract_strided_slice %70 {offsets = [0, 7, 0], sizes = [16, 1, 64], strides = [1, 1, 1]} : vector<16x12x64xf32> to vector<16x1x64xf32>
    %81 = vector.extract_strided_slice %70 {offsets = [0, 9, 0], sizes = [16, 1, 64], strides = [1, 1, 1]} : vector<16x12x64xf32> to vector<16x1x64xf32>
    %82 = tpu.concatenate %77, %78, %79, %80, %81 in 1 : vector<16x1x64xf32>, vector<16x1x64xf32>, vector<16x1x64xf32>, vector<16x1x64xf32>, vector<16x1x64xf32> -> vector<16x5x64xf32>
    %83 = vector.extract_strided_slice %70 {offsets = [0, 2, 0], sizes = [16, 1, 64], strides = [1, 1, 1]} : vector<16x12x64xf32> to vector<16x1x64xf32>
    %84 = vector.extract_strided_slice %70 {offsets = [0, 4, 0], sizes = [16, 1, 64], strides = [1, 1, 1]} : vector<16x12x64xf32> to vector<16x1x64xf32>
    %85 = vector.extract_strided_slice %70 {offsets = [0, 6, 0], sizes = [16, 1, 64], strides = [1, 1, 1]} : vector<16x12x64xf32> to vector<16x1x64xf32>
    %86 = vector.extract_strided_slice %70 {offsets = [0, 8, 0], sizes = [16, 1, 64], strides = [1, 1, 1]} : vector<16x12x64xf32> to vector<16x1x64xf32>
    %87 = vector.extract_strided_slice %70 {offsets = [0, 10, 0], sizes = [16, 1, 64], strides = [1, 1, 1]} : vector<16x12x64xf32> to vector<16x1x64xf32>
    %88 = tpu.concatenate %83, %84, %85, %86, %87 in 1 : vector<16x1x64xf32>, vector<16x1x64xf32>, vector<16x1x64xf32>, vector<16x1x64xf32>, vector<16x1x64xf32> -> vector<16x5x64xf32>
    %89 = vector.extract_strided_slice %76 {offsets = [0, 0, 0], sizes = [1, 5, 64], strides = [1, 1, 1]} : vector<16x5x64xf32> to vector<1x5x64xf32>
    %90 = vector.shape_cast %89 : vector<1x5x64xf32> to vector<5x64xf32>
    %91 = vector.extract_strided_slice %82 {offsets = [0, 0, 0], sizes = [1, 5, 64], strides = [1, 1, 1]} : vector<16x5x64xf32> to vector<1x5x64xf32>
    %92 = vector.shape_cast %91 : vector<1x5x64xf32> to vector<5x64xf32>
    %93 = vector.extract_strided_slice %88 {offsets = [0, 0, 0], sizes = [1, 5, 64], strides = [1, 1, 1]} : vector<16x5x64xf32> to vector<1x5x64xf32>
    %94 = vector.shape_cast %93 : vector<1x5x64xf32> to vector<5x64xf32>
    %95 = vector.extract_strided_slice %76 {offsets = [1, 0, 0], sizes = [1, 5, 64], strides = [1, 1, 1]} : vector<16x5x64xf32> to vector<1x5x64xf32>
    %96 = vector.shape_cast %95 : vector<1x5x64xf32> to vector<5x64xf32>
    %97 = vector.extract_strided_slice %82 {offsets = [1, 0, 0], sizes = [1, 5, 64], strides = [1, 1, 1]} : vector<16x5x64xf32> to vector<1x5x64xf32>
    %98 = vector.shape_cast %97 : vector<1x5x64xf32> to vector<5x64xf32>
    %99 = vector.extract_strided_slice %88 {offsets = [1, 0, 0], sizes = [1, 5, 64], strides = [1, 1, 1]} : vector<16x5x64xf32> to vector<1x5x64xf32>
    %100 = vector.shape_cast %99 : vector<1x5x64xf32> to vector<5x64xf32>
    %101 = vector.extract_strided_slice %76 {offsets = [2, 0, 0], sizes = [1, 5, 64], strides = [1, 1, 1]} : vector<16x5x64xf32> to vector<1x5x64xf32>
    %102 = vector.shape_cast %101 : vector<1x5x64xf32> to vector<5x64xf32>
    %103 = vector.extract_strided_slice %82 {offsets = [2, 0, 0], sizes = [1, 5, 64], strides = [1, 1, 1]} : vector<16x5x64xf32> to vector<1x5x64xf32>
    %104 = vector.shape_cast %103 : vector<1x5x64xf32> to vector<5x64xf32>
    %105 = vector.extract_strided_slice %88 {offsets = [2, 0, 0], sizes = [1, 5, 64], strides = [1, 1, 1]} : vector<16x5x64xf32> to vector<1x5x64xf32>
    %106 = vector.shape_cast %105 : vector<1x5x64xf32> to vector<5x64xf32>
    %107 = tpu.concatenate %90, %92, %94, %96, %98, %100, %102, %104, %106 in 1 : vector<5x64xf32>, vector<5x64xf32>, vector<5x64xf32>, vector<5x64xf32>, vector<5x64xf32>, vector<5x64xf32>, vector<5x64xf32>, vector<5x64xf32>, vector<5x64xf32> -> vector<5x576xf32>
    %108 = vector.extract_strided_slice %76 {offsets = [2, 0, 0], sizes = [1, 5, 64], strides = [1, 1, 1]} : vector<16x5x64xf32> to vector<1x5x64xf32>
    %109 = vector.shape_cast %108 : vector<1x5x64xf32> to vector<5x64xf32>
    %110 = vector.extract_strided_slice %82 {offsets = [2, 0, 0], sizes = [1, 5, 64], strides = [1, 1, 1]} : vector<16x5x64xf32> to vector<1x5x64xf32>
    %111 = vector.shape_cast %110 : vector<1x5x64xf32> to vector<5x64xf32>
    %112 = vector.extract_strided_slice %88 {offsets = [2, 0, 0], sizes = [1, 5, 64], strides = [1, 1, 1]} : vector<16x5x64xf32> to vector<1x5x64xf32>
    %113 = vector.shape_cast %112 : vector<1x5x64xf32> to vector<5x64xf32>
    %114 = vector.extract_strided_slice %76 {offsets = [3, 0, 0], sizes = [1, 5, 64], strides = [1, 1, 1]} : vector<16x5x64xf32> to vector<1x5x64xf32>
    %115 = vector.shape_cast %114 : vector<1x5x64xf32> to vector<5x64xf32>
    %116 = vector.extract_strided_slice %82 {offsets = [3, 0, 0], sizes = [1, 5, 64], strides = [1, 1, 1]} : vector<16x5x64xf32> to vector<1x5x64xf32>
    %117 = vector.shape_cast %116 : vector<1x5x64xf32> to vector<5x64xf32>
    %118 = vector.extract_strided_slice %88 {offsets = [3, 0, 0], sizes = [1, 5, 64], strides = [1, 1, 1]} : vector<16x5x64xf32> to vector<1x5x64xf32>
    %119 = vector.shape_cast %118 : vector<1x5x64xf32> to vector<5x64xf32>
    %120 = vector.extract_strided_slice %76 {offsets = [4, 0, 0], sizes = [1, 5, 64], strides = [1, 1, 1]} : vector<16x5x64xf32> to vector<1x5x64xf32>
    %121 = vector.shape_cast %120 : vector<1x5x64xf32> to vector<5x64xf32>
    %122 = vector.extract_strided_slice %82 {offsets = [4, 0, 0], sizes = [1, 5, 64], strides = [1, 1, 1]} : vector<16x5x64xf32> to vector<1x5x64xf32>
    %123 = vector.shape_cast %122 : vector<1x5x64xf32> to vector<5x64xf32>
    %124 = vector.extract_strided_slice %88 {offsets = [4, 0, 0], sizes = [1, 5, 64], strides = [1, 1, 1]} : vector<16x5x64xf32> to vector<1x5x64xf32>
    %125 = vector.shape_cast %124 : vector<1x5x64xf32> to vector<5x64xf32>
    %126 = tpu.concatenate %109, %111, %113, %115, %117, %119, %121, %123, %125 in 1 : vector<5x64xf32>, vector<5x64xf32>, vector<5x64xf32>, vector<5x64xf32>, vector<5x64xf32>, vector<5x64xf32>, vector<5x64xf32>, vector<5x64xf32>, vector<5x64xf32> -> vector<5x576xf32>
    %127 = vector.extract_strided_slice %76 {offsets = [4, 0, 0], sizes = [1, 5, 64], strides = [1, 1, 1]} : vector<16x5x64xf32> to vector<1x5x64xf32>
    %128 = vector.shape_cast %127 : vector<1x5x64xf32> to vector<5x64xf32>
    %129 = vector.extract_strided_slice %82 {offsets = [4, 0, 0], sizes = [1, 5, 64], strides = [1, 1, 1]} : vector<16x5x64xf32> to vector<1x5x64xf32>
    %130 = vector.shape_cast %129 : vector<1x5x64xf32> to vector<5x64xf32>
    %131 = vector.extract_strided_slice %88 {offsets = [4, 0, 0], sizes = [1, 5, 64], strides = [1, 1, 1]} : vector<16x5x64xf32> to vector<1x5x64xf32>
    %132 = vector.shape_cast %131 : vector<1x5x64xf32> to vector<5x64xf32>
    %133 = vector.extract_strided_slice %76 {offsets = [5, 0, 0], sizes = [1, 5, 64], strides = [1, 1, 1]} : vector<16x5x64xf32> to vector<1x5x64xf32>
    %134 = vector.shape_cast %133 : vector<1x5x64xf32> to vector<5x64xf32>
    %135 = vector.extract_strided_slice %82 {offsets = [5, 0, 0], sizes = [1, 5, 64], strides = [1, 1, 1]} : vector<16x5x64xf32> to vector<1x5x64xf32>
    %136 = vector.shape_cast %135 : vector<1x5x64xf32> to vector<5x64xf32>
    %137 = vector.extract_strided_slice %88 {offsets = [5, 0, 0], sizes = [1, 5, 64], strides = [1, 1, 1]} : vector<16x5x64xf32> to vector<1x5x64xf32>
    %138 = vector.shape_cast %137 : vector<1x5x64xf32> to vector<5x64xf32>
    %139 = vector.extract_strided_slice %76 {offsets = [6, 0, 0], sizes = [1, 5, 64], strides = [1, 1, 1]} : vector<16x5x64xf32> to vector<1x5x64xf32>
    %140 = vector.shape_cast %139 : vector<1x5x64xf32> to vector<5x64xf32>
    %141 = vector.extract_strided_slice %82 {offsets = [6, 0, 0], sizes = [1, 5, 64], strides = [1, 1, 1]} : vector<16x5x64xf32> to vector<1x5x64xf32>
    %142 = vector.shape_cast %141 : vector<1x5x64xf32> to vector<5x64xf32>
    %143 = vector.extract_strided_slice %88 {offsets = [6, 0, 0], sizes = [1, 5, 64], strides = [1, 1, 1]} : vector<16x5x64xf32> to vector<1x5x64xf32>
    %144 = vector.shape_cast %143 : vector<1x5x64xf32> to vector<5x64xf32>
    %145 = tpu.concatenate %128, %130, %132, %134, %136, %138, %140, %142, %144 in 1 : vector<5x64xf32>, vector<5x64xf32>, vector<5x64xf32>, vector<5x64xf32>, vector<5x64xf32>, vector<5x64xf32>, vector<5x64xf32>, vector<5x64xf32>, vector<5x64xf32> -> vector<5x576xf32>
    %146 = vector.extract_strided_slice %76 {offsets = [6, 0, 0], sizes = [1, 5, 64], strides = [1, 1, 1]} : vector<16x5x64xf32> to vector<1x5x64xf32>
    %147 = vector.shape_cast %146 : vector<1x5x64xf32> to vector<5x64xf32>
    %148 = vector.extract_strided_slice %82 {offsets = [6, 0, 0], sizes = [1, 5, 64], strides = [1, 1, 1]} : vector<16x5x64xf32> to vector<1x5x64xf32>
    %149 = vector.shape_cast %148 : vector<1x5x64xf32> to vector<5x64xf32>
    %150 = vector.extract_strided_slice %88 {offsets = [6, 0, 0], sizes = [1, 5, 64], strides = [1, 1, 1]} : vector<16x5x64xf32> to vector<1x5x64xf32>
    %151 = vector.shape_cast %150 : vector<1x5x64xf32> to vector<5x64xf32>
    %152 = vector.extract_strided_slice %76 {offsets = [7, 0, 0], sizes = [1, 5, 64], strides = [1, 1, 1]} : vector<16x5x64xf32> to vector<1x5x64xf32>
    %153 = vector.shape_cast %152 : vector<1x5x64xf32> to vector<5x64xf32>
    %154 = vector.extract_strided_slice %82 {offsets = [7, 0, 0], sizes = [1, 5, 64], strides = [1, 1, 1]} : vector<16x5x64xf32> to vector<1x5x64xf32>
    %155 = vector.shape_cast %154 : vector<1x5x64xf32> to vector<5x64xf32>
    %156 = vector.extract_strided_slice %88 {offsets = [7, 0, 0], sizes = [1, 5, 64], strides = [1, 1, 1]} : vector<16x5x64xf32> to vector<1x5x64xf32>
    %157 = vector.shape_cast %156 : vector<1x5x64xf32> to vector<5x64xf32>
    %158 = vector.extract_strided_slice %76 {offsets = [8, 0, 0], sizes = [1, 5, 64], strides = [1, 1, 1]} : vector<16x5x64xf32> to vector<1x5x64xf32>
    %159 = vector.shape_cast %158 : vector<1x5x64xf32> to vector<5x64xf32>
    %160 = vector.extract_strided_slice %82 {offsets = [8, 0, 0], sizes = [1, 5, 64], strides = [1, 1, 1]} : vector<16x5x64xf32> to vector<1x5x64xf32>
    %161 = vector.shape_cast %160 : vector<1x5x64xf32> to vector<5x64xf32>
    %162 = vector.extract_strided_slice %88 {offsets = [8, 0, 0], sizes = [1, 5, 64], strides = [1, 1, 1]} : vector<16x5x64xf32> to vector<1x5x64xf32>
    %163 = vector.shape_cast %162 : vector<1x5x64xf32> to vector<5x64xf32>
    %164 = tpu.concatenate %147, %149, %151, %153, %155, %157, %159, %161, %163 in 1 : vector<5x64xf32>, vector<5x64xf32>, vector<5x64xf32>, vector<5x64xf32>, vector<5x64xf32>, vector<5x64xf32>, vector<5x64xf32>, vector<5x64xf32>, vector<5x64xf32> -> vector<5x576xf32>
    %165 = vector.extract_strided_slice %76 {offsets = [8, 0, 0], sizes = [1, 5, 64], strides = [1, 1, 1]} : vector<16x5x64xf32> to vector<1x5x64xf32>
    %166 = vector.shape_cast %165 : vector<1x5x64xf32> to vector<5x64xf32>
    %167 = vector.extract_strided_slice %82 {offsets = [8, 0, 0], sizes = [1, 5, 64], strides = [1, 1, 1]} : vector<16x5x64xf32> to vector<1x5x64xf32>
    %168 = vector.shape_cast %167 : vector<1x5x64xf32> to vector<5x64xf32>
    %169 = vector.extract_strided_slice %88 {offsets = [8, 0, 0], sizes = [1, 5, 64], strides = [1, 1, 1]} : vector<16x5x64xf32> to vector<1x5x64xf32>
    %170 = vector.shape_cast %169 : vector<1x5x64xf32> to vector<5x64xf32>
    %171 = vector.extract_strided_slice %76 {offsets = [9, 0, 0], sizes = [1, 5, 64], strides = [1, 1, 1]} : vector<16x5x64xf32> to vector<1x5x64xf32>
    %172 = vector.shape_cast %171 : vector<1x5x64xf32> to vector<5x64xf32>
    %173 = vector.extract_strided_slice %82 {offsets = [9, 0, 0], sizes = [1, 5, 64], strides = [1, 1, 1]} : vector<16x5x64xf32> to vector<1x5x64xf32>
    %174 = vector.shape_cast %173 : vector<1x5x64xf32> to vector<5x64xf32>
    %175 = vector.extract_strided_slice %88 {offsets = [9, 0, 0], sizes = [1, 5, 64], strides = [1, 1, 1]} : vector<16x5x64xf32> to vector<1x5x64xf32>
    %176 = vector.shape_cast %175 : vector<1x5x64xf32> to vector<5x64xf32>
    %177 = vector.extract_strided_slice %76 {offsets = [10, 0, 0], sizes = [1, 5, 64], strides = [1, 1, 1]} : vector<16x5x64xf32> to vector<1x5x64xf32>
    %178 = vector.shape_cast %177 : vector<1x5x64xf32> to vector<5x64xf32>
    %179 = vector.extract_strided_slice %82 {offsets = [10, 0, 0], sizes = [1, 5, 64], strides = [1, 1, 1]} : vector<16x5x64xf32> to vector<1x5x64xf32>
    %180 = vector.shape_cast %179 : vector<1x5x64xf32> to vector<5x64xf32>
    %181 = vector.extract_strided_slice %88 {offsets = [10, 0, 0], sizes = [1, 5, 64], strides = [1, 1, 1]} : vector<16x5x64xf32> to vector<1x5x64xf32>
    %182 = vector.shape_cast %181 : vector<1x5x64xf32> to vector<5x64xf32>
    %183 = tpu.concatenate %166, %168, %170, %172, %174, %176, %178, %180, %182 in 1 : vector<5x64xf32>, vector<5x64xf32>, vector<5x64xf32>, vector<5x64xf32>, vector<5x64xf32>, vector<5x64xf32>, vector<5x64xf32>, vector<5x64xf32>, vector<5x64xf32> -> vector<5x576xf32>
    %184 = vector.extract_strided_slice %76 {offsets = [10, 0, 0], sizes = [1, 5, 64], strides = [1, 1, 1]} : vector<16x5x64xf32> to vector<1x5x64xf32>
    %185 = vector.shape_cast %184 : vector<1x5x64xf32> to vector<5x64xf32>
    %186 = vector.extract_strided_slice %82 {offsets = [10, 0, 0], sizes = [1, 5, 64], strides = [1, 1, 1]} : vector<16x5x64xf32> to vector<1x5x64xf32>
    %187 = vector.shape_cast %186 : vector<1x5x64xf32> to vector<5x64xf32>
    %188 = vector.extract_strided_slice %88 {offsets = [10, 0, 0], sizes = [1, 5, 64], strides = [1, 1, 1]} : vector<16x5x64xf32> to vector<1x5x64xf32>
    %189 = vector.shape_cast %188 : vector<1x5x64xf32> to vector<5x64xf32>
    %190 = vector.extract_strided_slice %76 {offsets = [11, 0, 0], sizes = [1, 5, 64], strides = [1, 1, 1]} : vector<16x5x64xf32> to vector<1x5x64xf32>
    %191 = vector.shape_cast %190 : vector<1x5x64xf32> to vector<5x64xf32>
    %192 = vector.extract_strided_slice %82 {offsets = [11, 0, 0], sizes = [1, 5, 64], strides = [1, 1, 1]} : vector<16x5x64xf32> to vector<1x5x64xf32>
    %193 = vector.shape_cast %192 : vector<1x5x64xf32> to vector<5x64xf32>
    %194 = vector.extract_strided_slice %88 {offsets = [11, 0, 0], sizes = [1, 5, 64], strides = [1, 1, 1]} : vector<16x5x64xf32> to vector<1x5x64xf32>
    %195 = vector.shape_cast %194 : vector<1x5x64xf32> to vector<5x64xf32>
    %196 = vector.extract_strided_slice %76 {offsets = [12, 0, 0], sizes = [1, 5, 64], strides = [1, 1, 1]} : vector<16x5x64xf32> to vector<1x5x64xf32>
    %197 = vector.shape_cast %196 : vector<1x5x64xf32> to vector<5x64xf32>
    %198 = vector.extract_strided_slice %82 {offsets = [12, 0, 0], sizes = [1, 5, 64], strides = [1, 1, 1]} : vector<16x5x64xf32> to vector<1x5x64xf32>
    %199 = vector.shape_cast %198 : vector<1x5x64xf32> to vector<5x64xf32>
    %200 = vector.extract_strided_slice %88 {offsets = [12, 0, 0], sizes = [1, 5, 64], strides = [1, 1, 1]} : vector<16x5x64xf32> to vector<1x5x64xf32>
    %201 = vector.shape_cast %200 : vector<1x5x64xf32> to vector<5x64xf32>
    %202 = tpu.concatenate %185, %187, %189, %191, %193, %195, %197, %199, %201 in 1 : vector<5x64xf32>, vector<5x64xf32>, vector<5x64xf32>, vector<5x64xf32>, vector<5x64xf32>, vector<5x64xf32>, vector<5x64xf32>, vector<5x64xf32>, vector<5x64xf32> -> vector<5x576xf32>
    %203 = vector.extract_strided_slice %76 {offsets = [12, 0, 0], sizes = [1, 5, 64], strides = [1, 1, 1]} : vector<16x5x64xf32> to vector<1x5x64xf32>
    %204 = vector.shape_cast %203 : vector<1x5x64xf32> to vector<5x64xf32>
    %205 = vector.extract_strided_slice %82 {offsets = [12, 0, 0], sizes = [1, 5, 64], strides = [1, 1, 1]} : vector<16x5x64xf32> to vector<1x5x64xf32>
    %206 = vector.shape_cast %205 : vector<1x5x64xf32> to vector<5x64xf32>
    %207 = vector.extract_strided_slice %88 {offsets = [12, 0, 0], sizes = [1, 5, 64], strides = [1, 1, 1]} : vector<16x5x64xf32> to vector<1x5x64xf32>
    %208 = vector.shape_cast %207 : vector<1x5x64xf32> to vector<5x64xf32>
    %209 = vector.extract_strided_slice %76 {offsets = [13, 0, 0], sizes = [1, 5, 64], strides = [1, 1, 1]} : vector<16x5x64xf32> to vector<1x5x64xf32>
    %210 = vector.shape_cast %209 : vector<1x5x64xf32> to vector<5x64xf32>
    %211 = vector.extract_strided_slice %82 {offsets = [13, 0, 0], sizes = [1, 5, 64], strides = [1, 1, 1]} : vector<16x5x64xf32> to vector<1x5x64xf32>
    %212 = vector.shape_cast %211 : vector<1x5x64xf32> to vector<5x64xf32>
    %213 = vector.extract_strided_slice %88 {offsets = [13, 0, 0], sizes = [1, 5, 64], strides = [1, 1, 1]} : vector<16x5x64xf32> to vector<1x5x64xf32>
    %214 = vector.shape_cast %213 : vector<1x5x64xf32> to vector<5x64xf32>
    %215 = vector.extract_strided_slice %76 {offsets = [14, 0, 0], sizes = [1, 5, 64], strides = [1, 1, 1]} : vector<16x5x64xf32> to vector<1x5x64xf32>
    %216 = vector.shape_cast %215 : vector<1x5x64xf32> to vector<5x64xf32>
    %217 = vector.extract_strided_slice %82 {offsets = [14, 0, 0], sizes = [1, 5, 64], strides = [1, 1, 1]} : vector<16x5x64xf32> to vector<1x5x64xf32>
    %218 = vector.shape_cast %217 : vector<1x5x64xf32> to vector<5x64xf32>
    %219 = vector.extract_strided_slice %88 {offsets = [14, 0, 0], sizes = [1, 5, 64], strides = [1, 1, 1]} : vector<16x5x64xf32> to vector<1x5x64xf32>
    %220 = vector.shape_cast %219 : vector<1x5x64xf32> to vector<5x64xf32>
    %221 = tpu.concatenate %204, %206, %208, %210, %212, %214, %216, %218, %220 in 1 : vector<5x64xf32>, vector<5x64xf32>, vector<5x64xf32>, vector<5x64xf32>, vector<5x64xf32>, vector<5x64xf32>, vector<5x64xf32>, vector<5x64xf32>, vector<5x64xf32> -> vector<5x576xf32>
    %222 = tpu.concatenate %107, %126, %145, %164, %183, %202, %221 in 0 : vector<5x576xf32>, vector<5x576xf32>, vector<5x576xf32>, vector<5x576xf32>, vector<5x576xf32>, vector<5x576xf32>, vector<5x576xf32> -> vector<35x576xf32>
    %c0_43 = arith.constant 0 : index
    %c0_44 = arith.constant 0 : index
    %223 = vector.load %arg4[%c0_43, %c0_44] : memref<576x128xf32, #tpu.memory_space<vmem>>, vector<576x128xf32>
    %cst_45 = arith.constant dense<0.000000e+00> : vector<35x128xf32>
    %224 = tpu.matmul %222, %223, %cst_45 {dimension_numbers = #tpu.dot_dimension_numbers<[1], [0], [0], [1], [0, 0, 1, 1], [], []>} : vector<35x576xf32>, vector<576x128xf32>, vector<35x128xf32> -> vector<35x128xf32>
    %c0_46 = arith.constant 0 : index
    %c0_47 = arith.constant 0 : index
    %225 = vector.load %arg5[%c0_46, %c0_47] : memref<1x128xf32, #tpu.memory_space<vmem>>, vector<1x128xf32>
    %226 = vector.broadcast %225 : vector<1x128xf32> to vector<35x128xf32>
    %227 = arith.mulf %224, %226 : vector<35x128xf32>
    %c0_48 = arith.constant 0 : index
    %c0_49 = arith.constant 0 : index
    %228 = vector.load %arg6[%c0_48, %c0_49] : memref<1x128xf32, #tpu.memory_space<vmem>>, vector<1x128xf32>
    %229 = vector.broadcast %228 : vector<1x128xf32> to vector<35x128xf32>
    %230 = arith.addf %227, %229 : vector<35x128xf32>
    %cst_50 = arith.constant 0.000000e+00 : f32
    %231 = vector.broadcast %cst_50 : f32 to vector<35x128xf32>
    %232 = arith.cmpf ogt, %230, %231 : vector<35x128xf32>
    %cst_51 = arith.constant 2.000000e-01 : f32
    %233 = vector.broadcast %cst_51 : f32 to vector<35x128xf32>
    %234 = arith.mulf %233, %230 : vector<35x128xf32>
    %235 = arith.select %232, %230, %234 : vector<35x128xi1>, vector<35x128xf32>
    %c0_52 = arith.constant 0 : index
    %c0_53 = arith.constant 0 : index
    %236 = vector.load %arg7[%c0_52, %c0_53] : memref<1x128xf32, #tpu.memory_space<vmem>>, vector<1x128xf32>
    %237 = vector.shape_cast %236 : vector<1x128xf32> to vector<1x1x128xf32>
    %238 = vector.shape_cast %237 : vector<1x1x128xf32> to vector<1x1x128xf32>
    %239 = vector.broadcast %238 : vector<1x1x128xf32> to vector<8x6x128xf32>
    %c0_54 = arith.constant 0 : index
    %c0_55 = arith.constant 0 : index
    %c0_56 = arith.constant 0 : index
    %240 = vector.load %arg15[%c0_54, %c0_55, %c0_56] : memref<8x6x128xf32, #tpu.memory_space<vmem>>, vector<8x6x128xf32>
    tpu.vector_store %arg15[%c0_54, %c0_55, %c0_56], %239 {strides = array<i32>} : memref<8x6x128xf32, #tpu.memory_space<vmem>>, vector<8x6x128xf32>,
    %241 = vector.extract_strided_slice %235 {offsets = [0, 0], sizes = [5, 128], strides = [1, 1]} : vector<35x128xf32> to vector<5x128xf32>
    %c0_57 = arith.constant 0 : index
    %c0_58 = arith.constant 0 : index
    %c0_59 = arith.constant 0 : index
    %242 = vector.load %arg15[%c0_57, %c0_58, %c0_59] : memref<8x6x128xf32, #tpu.memory_space<vmem>>, vector<1x5x128xf32>
    %243 = vector.shape_cast %242 : vector<1x5x128xf32> to vector<5x128xf32>
    %244 = vector.shape_cast %241 : vector<5x128xf32> to vector<1x5x128xf32>
    tpu.vector_store %arg15[%c0_57, %c0_58, %c0_59], %244 {strides = array<i32>} : memref<8x6x128xf32, #tpu.memory_space<vmem>>, vector<1x5x128xf32>,
    %245 = vector.extract_strided_slice %235 {offsets = [5, 0], sizes = [5, 128], strides = [1, 1]} : vector<35x128xf32> to vector<5x128xf32>
    %c1_60 = arith.constant 1 : index
    %c0_61 = arith.constant 0 : index
    %c0_62 = arith.constant 0 : index
    %246 = vector.load %arg15[%c1_60, %c0_61, %c0_62] : memref<8x6x128xf32, #tpu.memory_space<vmem>>, vector<1x5x128xf32>
    %247 = vector.shape_cast %246 : vector<1x5x128xf32> to vector<5x128xf32>
    %248 = vector.shape_cast %245 : vector<5x128xf32> to vector<1x5x128xf32>
    tpu.vector_store %arg15[%c1_60, %c0_61, %c0_62], %248 {strides = array<i32>} : memref<8x6x128xf32, #tpu.memory_space<vmem>>, vector<1x5x128xf32>,
    %249 = vector.extract_strided_slice %235 {offsets = [10, 0], sizes = [5, 128], strides = [1, 1]} : vector<35x128xf32> to vector<5x128xf32>
    %c2_63 = arith.constant 2 : index
    %c0_64 = arith.constant 0 : index
    %c0_65 = arith.constant 0 : index
    %250 = vector.load %arg15[%c2_63, %c0_64, %c0_65] : memref<8x6x128xf32, #tpu.memory_space<vmem>>, vector<1x5x128xf32>
    %251 = vector.shape_cast %250 : vector<1x5x128xf32> to vector<5x128xf32>
    %252 = vector.shape_cast %249 : vector<5x128xf32> to vector<1x5x128xf32>
    tpu.vector_store %arg15[%c2_63, %c0_64, %c0_65], %252 {strides = array<i32>} : memref<8x6x128xf32, #tpu.memory_space<vmem>>, vector<1x5x128xf32>,
    %253 = vector.extract_strided_slice %235 {offsets = [15, 0], sizes = [5, 128], strides = [1, 1]} : vector<35x128xf32> to vector<5x128xf32>
    %c3_66 = arith.constant 3 : index
    %c0_67 = arith.constant 0 : index
    %c0_68 = arith.constant 0 : index
    %254 = vector.load %arg15[%c3_66, %c0_67, %c0_68] : memref<8x6x128xf32, #tpu.memory_space<vmem>>, vector<1x5x128xf32>
    %255 = vector.shape_cast %254 : vector<1x5x128xf32> to vector<5x128xf32>
    %256 = vector.shape_cast %253 : vector<5x128xf32> to vector<1x5x128xf32>
    tpu.vector_store %arg15[%c3_66, %c0_67, %c0_68], %256 {strides = array<i32>} : memref<8x6x128xf32, #tpu.memory_space<vmem>>, vector<1x5x128xf32>,
    %257 = vector.extract_strided_slice %235 {offsets = [20, 0], sizes = [5, 128], strides = [1, 1]} : vector<35x128xf32> to vector<5x128xf32>
    %c4_69 = arith.constant 4 : index
    %c0_70 = arith.constant 0 : index
    %c0_71 = arith.constant 0 : index
    %258 = vector.load %arg15[%c4_69, %c0_70, %c0_71] : memref<8x6x128xf32, #tpu.memory_space<vmem>>, vector<1x5x128xf32>
    %259 = vector.shape_cast %258 : vector<1x5x128xf32> to vector<5x128xf32>
    %260 = vector.shape_cast %257 : vector<5x128xf32> to vector<1x5x128xf32>
    tpu.vector_store %arg15[%c4_69, %c0_70, %c0_71], %260 {strides = array<i32>} : memref<8x6x128xf32, #tpu.memory_space<vmem>>, vector<1x5x128xf32>,
    %261 = vector.extract_strided_slice %235 {offsets = [25, 0], sizes = [5, 128], strides = [1, 1]} : vector<35x128xf32> to vector<5x128xf32>
    %c5_72 = arith.constant 5 : index
    %c0_73 = arith.constant 0 : index
    %c0_74 = arith.constant 0 : index
    %262 = vector.load %arg15[%c5_72, %c0_73, %c0_74] : memref<8x6x128xf32, #tpu.memory_space<vmem>>, vector<1x5x128xf32>
    %263 = vector.shape_cast %262 : vector<1x5x128xf32> to vector<5x128xf32>
    %264 = vector.shape_cast %261 : vector<5x128xf32> to vector<1x5x128xf32>
    tpu.vector_store %arg15[%c5_72, %c0_73, %c0_74], %264 {strides = array<i32>} : memref<8x6x128xf32, #tpu.memory_space<vmem>>, vector<1x5x128xf32>,
    %265 = vector.extract_strided_slice %235 {offsets = [30, 0], sizes = [5, 128], strides = [1, 1]} : vector<35x128xf32> to vector<5x128xf32>
    %c6_75 = arith.constant 6 : index
    %c0_76 = arith.constant 0 : index
    %c0_77 = arith.constant 0 : index
    %266 = vector.load %arg15[%c6_75, %c0_76, %c0_77] : memref<8x6x128xf32, #tpu.memory_space<vmem>>, vector<1x5x128xf32>
    %267 = vector.shape_cast %266 : vector<1x5x128xf32> to vector<5x128xf32>
    %268 = vector.shape_cast %265 : vector<5x128xf32> to vector<1x5x128xf32>
    tpu.vector_store %arg15[%c6_75, %c0_76, %c0_77], %268 {strides = array<i32>} : memref<8x6x128xf32, #tpu.memory_space<vmem>>, vector<1x5x128xf32>,
    %c0_78 = arith.constant 0 : index
    %c0_79 = arith.constant 0 : index
    %c0_80 = arith.constant 0 : index
    %269 = vector.load %arg15[%c0_78, %c0_79, %c0_80] : memref<8x6x128xf32, #tpu.memory_space<vmem>>, vector<8x6x128xf32>
    %270 = vector.extract_strided_slice %269 {offsets = [0, 0, 0], sizes = [8, 1, 128], strides = [1, 1, 1]} : vector<8x6x128xf32> to vector<8x1x128xf32>
    %271 = vector.extract_strided_slice %269 {offsets = [0, 2, 0], sizes = [8, 1, 128], strides = [1, 1, 1]} : vector<8x6x128xf32> to vector<8x1x128xf32>
    %272 = tpu.concatenate %270, %271 in 1 : vector<8x1x128xf32>, vector<8x1x128xf32> -> vector<8x2x128xf32>
    %273 = vector.extract_strided_slice %269 {offsets = [0, 1, 0], sizes = [8, 1, 128], strides = [1, 1, 1]} : vector<8x6x128xf32> to vector<8x1x128xf32>
    %274 = vector.extract_strided_slice %269 {offsets = [0, 3, 0], sizes = [8, 1, 128], strides = [1, 1, 1]} : vector<8x6x128xf32> to vector<8x1x128xf32>
    %275 = tpu.concatenate %273, %274 in 1 : vector<8x1x128xf32>, vector<8x1x128xf32> -> vector<8x2x128xf32>
    %276 = vector.extract_strided_slice %269 {offsets = [0, 2, 0], sizes = [8, 1, 128], strides = [1, 1, 1]} : vector<8x6x128xf32> to vector<8x1x128xf32>
    %277 = vector.extract_strided_slice %269 {offsets = [0, 4, 0], sizes = [8, 1, 128], strides = [1, 1, 1]} : vector<8x6x128xf32> to vector<8x1x128xf32>
    %278 = tpu.concatenate %276, %277 in 1 : vector<8x1x128xf32>, vector<8x1x128xf32> -> vector<8x2x128xf32>
    %279 = vector.extract_strided_slice %272 {offsets = [0, 0, 0], sizes = [1, 2, 128], strides = [1, 1, 1]} : vector<8x2x128xf32> to vector<1x2x128xf32>
    %280 = vector.shape_cast %279 : vector<1x2x128xf32> to vector<2x128xf32>
    %281 = vector.extract_strided_slice %275 {offsets = [0, 0, 0], sizes = [1, 2, 128], strides = [1, 1, 1]} : vector<8x2x128xf32> to vector<1x2x128xf32>
    %282 = vector.shape_cast %281 : vector<1x2x128xf32> to vector<2x128xf32>
    %283 = vector.extract_strided_slice %278 {offsets = [0, 0, 0], sizes = [1, 2, 128], strides = [1, 1, 1]} : vector<8x2x128xf32> to vector<1x2x128xf32>
    %284 = vector.shape_cast %283 : vector<1x2x128xf32> to vector<2x128xf32>
    %285 = vector.extract_strided_slice %272 {offsets = [1, 0, 0], sizes = [1, 2, 128], strides = [1, 1, 1]} : vector<8x2x128xf32> to vector<1x2x128xf32>
    %286 = vector.shape_cast %285 : vector<1x2x128xf32> to vector<2x128xf32>
    %287 = vector.extract_strided_slice %275 {offsets = [1, 0, 0], sizes = [1, 2, 128], strides = [1, 1, 1]} : vector<8x2x128xf32> to vector<1x2x128xf32>
    %288 = vector.shape_cast %287 : vector<1x2x128xf32> to vector<2x128xf32>
    %289 = vector.extract_strided_slice %278 {offsets = [1, 0, 0], sizes = [1, 2, 128], strides = [1, 1, 1]} : vector<8x2x128xf32> to vector<1x2x128xf32>
    %290 = vector.shape_cast %289 : vector<1x2x128xf32> to vector<2x128xf32>
    %291 = vector.extract_strided_slice %272 {offsets = [2, 0, 0], sizes = [1, 2, 128], strides = [1, 1, 1]} : vector<8x2x128xf32> to vector<1x2x128xf32>
    %292 = vector.shape_cast %291 : vector<1x2x128xf32> to vector<2x128xf32>
    %293 = vector.extract_strided_slice %275 {offsets = [2, 0, 0], sizes = [1, 2, 128], strides = [1, 1, 1]} : vector<8x2x128xf32> to vector<1x2x128xf32>
    %294 = vector.shape_cast %293 : vector<1x2x128xf32> to vector<2x128xf32>
    %295 = vector.extract_strided_slice %278 {offsets = [2, 0, 0], sizes = [1, 2, 128], strides = [1, 1, 1]} : vector<8x2x128xf32> to vector<1x2x128xf32>
    %296 = vector.shape_cast %295 : vector<1x2x128xf32> to vector<2x128xf32>
    %297 = tpu.concatenate %280, %282, %284, %286, %288, %290, %292, %294, %296 in 1 : vector<2x128xf32>, vector<2x128xf32>, vector<2x128xf32>, vector<2x128xf32>, vector<2x128xf32>, vector<2x128xf32>, vector<2x128xf32>, vector<2x128xf32>, vector<2x128xf32> -> vector<2x1152xf32>
    %298 = vector.extract_strided_slice %272 {offsets = [2, 0, 0], sizes = [1, 2, 128], strides = [1, 1, 1]} : vector<8x2x128xf32> to vector<1x2x128xf32>
    %299 = vector.shape_cast %298 : vector<1x2x128xf32> to vector<2x128xf32>
    %300 = vector.extract_strided_slice %275 {offsets = [2, 0, 0], sizes = [1, 2, 128], strides = [1, 1, 1]} : vector<8x2x128xf32> to vector<1x2x128xf32>
    %301 = vector.shape_cast %300 : vector<1x2x128xf32> to vector<2x128xf32>
    %302 = vector.extract_strided_slice %278 {offsets = [2, 0, 0], sizes = [1, 2, 128], strides = [1, 1, 1]} : vector<8x2x128xf32> to vector<1x2x128xf32>
    %303 = vector.shape_cast %302 : vector<1x2x128xf32> to vector<2x128xf32>
    %304 = vector.extract_strided_slice %272 {offsets = [3, 0, 0], sizes = [1, 2, 128], strides = [1, 1, 1]} : vector<8x2x128xf32> to vector<1x2x128xf32>
    %305 = vector.shape_cast %304 : vector<1x2x128xf32> to vector<2x128xf32>
    %306 = vector.extract_strided_slice %275 {offsets = [3, 0, 0], sizes = [1, 2, 128], strides = [1, 1, 1]} : vector<8x2x128xf32> to vector<1x2x128xf32>
    %307 = vector.shape_cast %306 : vector<1x2x128xf32> to vector<2x128xf32>
    %308 = vector.extract_strided_slice %278 {offsets = [3, 0, 0], sizes = [1, 2, 128], strides = [1, 1, 1]} : vector<8x2x128xf32> to vector<1x2x128xf32>
    %309 = vector.shape_cast %308 : vector<1x2x128xf32> to vector<2x128xf32>
    %310 = vector.extract_strided_slice %272 {offsets = [4, 0, 0], sizes = [1, 2, 128], strides = [1, 1, 1]} : vector<8x2x128xf32> to vector<1x2x128xf32>
    %311 = vector.shape_cast %310 : vector<1x2x128xf32> to vector<2x128xf32>
    %312 = vector.extract_strided_slice %275 {offsets = [4, 0, 0], sizes = [1, 2, 128], strides = [1, 1, 1]} : vector<8x2x128xf32> to vector<1x2x128xf32>
    %313 = vector.shape_cast %312 : vector<1x2x128xf32> to vector<2x128xf32>
    %314 = vector.extract_strided_slice %278 {offsets = [4, 0, 0], sizes = [1, 2, 128], strides = [1, 1, 1]} : vector<8x2x128xf32> to vector<1x2x128xf32>
    %315 = vector.shape_cast %314 : vector<1x2x128xf32> to vector<2x128xf32>
    %316 = tpu.concatenate %299, %301, %303, %305, %307, %309, %311, %313, %315 in 1 : vector<2x128xf32>, vector<2x128xf32>, vector<2x128xf32>, vector<2x128xf32>, vector<2x128xf32>, vector<2x128xf32>, vector<2x128xf32>, vector<2x128xf32>, vector<2x128xf32> -> vector<2x1152xf32>
    %317 = vector.extract_strided_slice %272 {offsets = [4, 0, 0], sizes = [1, 2, 128], strides = [1, 1, 1]} : vector<8x2x128xf32> to vector<1x2x128xf32>
    %318 = vector.shape_cast %317 : vector<1x2x128xf32> to vector<2x128xf32>
    %319 = vector.extract_strided_slice %275 {offsets = [4, 0, 0], sizes = [1, 2, 128], strides = [1, 1, 1]} : vector<8x2x128xf32> to vector<1x2x128xf32>
    %320 = vector.shape_cast %319 : vector<1x2x128xf32> to vector<2x128xf32>
    %321 = vector.extract_strided_slice %278 {offsets = [4, 0, 0], sizes = [1, 2, 128], strides = [1, 1, 1]} : vector<8x2x128xf32> to vector<1x2x128xf32>
    %322 = vector.shape_cast %321 : vector<1x2x128xf32> to vector<2x128xf32>
    %323 = vector.extract_strided_slice %272 {offsets = [5, 0, 0], sizes = [1, 2, 128], strides = [1, 1, 1]} : vector<8x2x128xf32> to vector<1x2x128xf32>
    %324 = vector.shape_cast %323 : vector<1x2x128xf32> to vector<2x128xf32>
    %325 = vector.extract_strided_slice %275 {offsets = [5, 0, 0], sizes = [1, 2, 128], strides = [1, 1, 1]} : vector<8x2x128xf32> to vector<1x2x128xf32>
    %326 = vector.shape_cast %325 : vector<1x2x128xf32> to vector<2x128xf32>
    %327 = vector.extract_strided_slice %278 {offsets = [5, 0, 0], sizes = [1, 2, 128], strides = [1, 1, 1]} : vector<8x2x128xf32> to vector<1x2x128xf32>
    %328 = vector.shape_cast %327 : vector<1x2x128xf32> to vector<2x128xf32>
    %329 = vector.extract_strided_slice %272 {offsets = [6, 0, 0], sizes = [1, 2, 128], strides = [1, 1, 1]} : vector<8x2x128xf32> to vector<1x2x128xf32>
    %330 = vector.shape_cast %329 : vector<1x2x128xf32> to vector<2x128xf32>
    %331 = vector.extract_strided_slice %275 {offsets = [6, 0, 0], sizes = [1, 2, 128], strides = [1, 1, 1]} : vector<8x2x128xf32> to vector<1x2x128xf32>
    %332 = vector.shape_cast %331 : vector<1x2x128xf32> to vector<2x128xf32>
    %333 = vector.extract_strided_slice %278 {offsets = [6, 0, 0], sizes = [1, 2, 128], strides = [1, 1, 1]} : vector<8x2x128xf32> to vector<1x2x128xf32>
    %334 = vector.shape_cast %333 : vector<1x2x128xf32> to vector<2x128xf32>
    %335 = tpu.concatenate %318, %320, %322, %324, %326, %328, %330, %332, %334 in 1 : vector<2x128xf32>, vector<2x128xf32>, vector<2x128xf32>, vector<2x128xf32>, vector<2x128xf32>, vector<2x128xf32>, vector<2x128xf32>, vector<2x128xf32>, vector<2x128xf32> -> vector<2x1152xf32>
    %336 = tpu.concatenate %297, %316, %335 in 0 : vector<2x1152xf32>, vector<2x1152xf32>, vector<2x1152xf32> -> vector<6x1152xf32>
    %c0_81 = arith.constant 0 : index
    %c0_82 = arith.constant 0 : index
    %337 = vector.load %arg8[%c0_81, %c0_82] : memref<1152x256xf32, #tpu.memory_space<vmem>>, vector<1152x256xf32>
    %cst_83 = arith.constant dense<0.000000e+00> : vector<6x256xf32>
    %338 = tpu.matmul %336, %337, %cst_83 {dimension_numbers = #tpu.dot_dimension_numbers<[1], [0], [0], [1], [0, 0, 1, 1], [], []>} : vector<6x1152xf32>, vector<1152x256xf32>, vector<6x256xf32> -> vector<6x256xf32>
    %c0_84 = arith.constant 0 : index
    %c0_85 = arith.constant 0 : index
    %339 = vector.load %arg9[%c0_84, %c0_85] : memref<1x256xf32, #tpu.memory_space<vmem>>, vector<1x256xf32>
    %340 = vector.broadcast %339 : vector<1x256xf32> to vector<6x256xf32>
    %341 = arith.mulf %338, %340 : vector<6x256xf32>
    %c0_86 = arith.constant 0 : index
    %c0_87 = arith.constant 0 : index
    %342 = vector.load %arg10[%c0_86, %c0_87] : memref<1x256xf32, #tpu.memory_space<vmem>>, vector<1x256xf32>
    %343 = vector.broadcast %342 : vector<1x256xf32> to vector<6x256xf32>
    %344 = arith.addf %341, %343 : vector<6x256xf32>
    %cst_88 = arith.constant 0.000000e+00 : f32
    %345 = vector.broadcast %cst_88 : f32 to vector<6x256xf32>
    %346 = arith.cmpf ogt, %344, %345 : vector<6x256xf32>
    %cst_89 = arith.constant 2.000000e-01 : f32
    %347 = vector.broadcast %cst_89 : f32 to vector<6x256xf32>
    %348 = arith.mulf %347, %344 : vector<6x256xf32>
    %349 = arith.select %346, %344, %348 : vector<6x256xi1>, vector<6x256xf32>
    %c0_90 = arith.constant 0 : index
    %c0_91 = arith.constant 0 : index
    %350 = vector.load %arg11[%c0_90, %c0_91] : memref<6x256xf32, #tpu.memory_space<vmem>>, vector<6x256xf32>
    %351 = arith.mulf %349, %350 : vector<6x256xf32>
    %cst_92 = arith.constant dense<0.000000e+00> : vector<6xf32>
    %352 = vector.multi_reduction <add>, %351, %cst_92 [1] : vector<6x256xf32> to vector<6xf32>
    %353 = vector.shape_cast %352 : vector<6xf32> to vector<6x1xf32>
    %cst_93 = arith.constant dense<0.000000e+00> : vector<1xf32>
    %354 = vector.multi_reduction <add>, %353, %cst_93 [0] : vector<6x1xf32> to vector<1xf32>
    %355 = vector.shape_cast %354 : vector<1xf32> to vector<1x1xf32>
    %c0_94 = arith.constant 0 : index
    %c0_95 = arith.constant 0 : index
    %356 = vector.load %arg12[%c0_94, %c0_95] : memref<1x1xf32, #tpu.memory_space<vmem>>, vector<1x1xf32>
    %357 = arith.addf %355, %356 : vector<1x1xf32>
    %cst_96 = arith.constant 0.000000e+00 : f32
    %358 = vector.broadcast %cst_96 : f32 to vector<1x1xf32>
    %359 = arith.subf %358, %357 : vector<1x1xf32>
    %360 = math.exp %359 : vector<1x1xf32>
    %cst_97 = arith.constant 1.000000e+00 : f32
    %361 = vector.broadcast %cst_97 : f32 to vector<1x1xf32>
    %362 = arith.addf %361, %360 : vector<1x1xf32>
    %363 = tpu.reciprocal %362 {approx = true} : vector<1x1xf32> -> vector<1x1xf32>
    %c0_98 = arith.constant 0 : index
    %c0_99 = arith.constant 0 : index
    %c0_100 = arith.constant 0 : index
    %364 = vector.load %arg13[%c0_98, %c0_99, %c0_100] : memref<1x1x1xf32, #tpu.memory_space<vmem>>, vector<1x1x1xf32>
    %365 = vector.shape_cast %364 : vector<1x1x1xf32> to vector<1x1xf32>
    %366 = vector.shape_cast %363 : vector<1x1xf32> to vector<1x1x1xf32>
    tpu.vector_store %arg13[%c0_98, %c0_99, %c0_100], %366 {strides = array<i32>} : memref<1x1x1xf32, #tpu.memory_space<vmem>>, vector<1x1x1xf32>,
    return
  }
  func.func @transform_0(%arg0: i32) -> (i32, i32, i32) {
    %c0_i32 = arith.constant 0 : i32
    %c0_i32_0 = arith.constant 0 : i32
    %c0_i32_1 = arith.constant 0 : i32
    return %arg0, %c0_i32, %c0_i32_0 : i32, i32, i32
  }
  func.func @transform_1(%arg0: i32) -> (i32, i32) {
    %c0_i32 = arith.constant 0 : i32
    %c0_i32_0 = arith.constant 0 : i32
    %c0_i32_1 = arith.constant 0 : i32
    return %c0_i32, %c0_i32_0 : i32, i32
  }
  func.func @transform_2(%arg0: i32) -> (i32, i32) {
    %c0_i32 = arith.constant 0 : i32
    %c0_i32_0 = arith.constant 0 : i32
    %c0_i32_1 = arith.constant 0 : i32
    return %c0_i32, %c0_i32_0 : i32, i32
  }
  func.func @transform_3(%arg0: i32) -> (i32, i32) {
    %c0_i32 = arith.constant 0 : i32
    %c0_i32_0 = arith.constant 0 : i32
    %c0_i32_1 = arith.constant 0 : i32
    return %c0_i32, %c0_i32_0 : i32, i32
  }
  func.func @transform_4(%arg0: i32) -> (i32, i32) {
    %c0_i32 = arith.constant 0 : i32
    %c0_i32_0 = arith.constant 0 : i32
    %c0_i32_1 = arith.constant 0 : i32
    return %c0_i32, %c0_i32_0 : i32, i32
  }
  func.func @transform_5(%arg0: i32) -> (i32, i32) {
    %c0_i32 = arith.constant 0 : i32
    %c0_i32_0 = arith.constant 0 : i32
    %c0_i32_1 = arith.constant 0 : i32
    return %c0_i32, %c0_i32_0 : i32, i32
  }
  func.func @transform_6(%arg0: i32) -> (i32, i32) {
    %c0_i32 = arith.constant 0 : i32
    %c0_i32_0 = arith.constant 0 : i32
    %c0_i32_1 = arith.constant 0 : i32
    return %c0_i32, %c0_i32_0 : i32, i32
  }
  func.func @transform_7(%arg0: i32) -> (i32, i32) {
    %c0_i32 = arith.constant 0 : i32
    %c0_i32_0 = arith.constant 0 : i32
    %c0_i32_1 = arith.constant 0 : i32
    return %c0_i32, %c0_i32_0 : i32, i32
  }
  func.func @transform_8(%arg0: i32) -> (i32, i32) {
    %c0_i32 = arith.constant 0 : i32
    %c0_i32_0 = arith.constant 0 : i32
    %c0_i32_1 = arith.constant 0 : i32
    return %c0_i32, %c0_i32_0 : i32, i32
  }
  func.func @transform_9(%arg0: i32) -> (i32, i32) {
    %c0_i32 = arith.constant 0 : i32
    %c0_i32_0 = arith.constant 0 : i32
    %c0_i32_1 = arith.constant 0 : i32
    return %c0_i32, %c0_i32_0 : i32, i32
  }
  func.func @transform_10(%arg0: i32) -> (i32, i32) {
    %c0_i32 = arith.constant 0 : i32
    %c0_i32_0 = arith.constant 0 : i32
    %c0_i32_1 = arith.constant 0 : i32
    return %c0_i32, %c0_i32_0 : i32, i32
  }
  func.func @transform_11(%arg0: i32) -> (i32, i32) {
    %c0_i32 = arith.constant 0 : i32
    %c0_i32_0 = arith.constant 0 : i32
    %c0_i32_1 = arith.constant 0 : i32
    return %c0_i32, %c0_i32_0 : i32, i32
  }
  func.func @transform_12(%arg0: i32) -> (i32, i32, i32) {
    %c0_i32 = arith.constant 0 : i32
    %c0_i32_0 = arith.constant 0 : i32
    %c0_i32_1 = arith.constant 0 : i32
    return %arg0, %c0_i32, %c0_i32_0 : i32, i32, i32
  }
}

</mosaic_0001>

<llo_original>
// kernel: discriminator_forward.1
$region0: #{discriminator_forward.1}
  #allocation0 [shape = 'u32[]', space=smem, size = 0x4, offset = 0x4, fixed_abs, tag = 'smem constant byte address 0x4 - core index']
  #allocation1 [shape = 'u32[144,128]{1,0:T(1,128)}', space=vmem, size = 0x12000, scoped, tag = 'internal scratch']
  #allocation2 [shape = 'f32[16,12,64]{2,1,0:T(8,128)}', space=vmem, size = 0x20000, scoped, tag = 'scratch operand']
  #allocation3 [shape = 'f32[8,6,128]{2,1,0:T(8,128)}', space=vmem, size = 0x8000, scoped, tag = 'scratch operand']
  #allocation4 [shape = 'f32[1,1]{1,0:T(1,128)S(1)}', space=vmem, size = 0x200, scoped, tag = 'scoped memory for discriminator_forward.1']
  %s0 = inlined_call_operand.vmem [shape: f32[2,140,9], index: 0, kind: input, shape index: {}]
  %s1 = inlined_call_operand.hbm [shape: f32[9,64], index: 1, kind: input, shape index: {}]
  %s2 = inlined_call_operand.hbm [shape: f32[1,64], index: 2, kind: input, shape index: {}]
  %s3 = inlined_call_operand.hbm [shape: f32[576,128], index: 3, kind: input, shape index: {}]
  %s4 = inlined_call_operand.hbm [shape: f32[1,128], index: 4, kind: input, shape index: {}]
  %s5 = inlined_call_operand.hbm [shape: f32[1,128], index: 5, kind: input, shape index: {}]
  %s6 = inlined_call_operand.hbm [shape: f32[1,128], index: 6, kind: input, shape index: {}]
  %s7 = inlined_call_operand.hbm [shape: f32[1152,256], index: 7, kind: input, shape index: {}]
  %s8 = inlined_call_operand.hbm [shape: f32[1,256], index: 8, kind: input, shape index: {}]
  %s9 = inlined_call_operand.hbm [shape: f32[1,256], index: 9, kind: input, shape index: {}]
  %s10 = inlined_call_operand.hbm [shape: f32[6,256], index: 10, kind: input, shape index: {}]
  %s11 = inlined_call_operand.<no memory space> [shape: f32[1,1], index: 11, kind: input, shape index: {}]
  %s12 = inlined_call_operand.vmem [shape: f32[2,1,1], index: 12, kind: output, shape index: {}]
  %s13 = sld [smem:[#allocation0]]
  $region121: #{discriminator_forward.1} parent=0
    _
  %s15 = ssub.s32 1, %s13
  %s16 = scalar_select 0, %s15, %s13
  %v17 = vstv %s11
  %18 = vst [vmem:[#allocation4] sm:$0x1] %v17
  $region1: #{discriminator_forward.1} parent=0
    #allocation5 [shape = 'u8[8192]{0}', space=vmem, size = 0x2000, scoped, tag = 'input window, operand 1, single buffered']
    #allocation6 [shape = 's32[2]{0}', space=sflag, size = 0x8, scoped, tag = 'scoped memory for discriminator_forward.1']
    #allocation7 [shape = 'u8[512]{0}', space=vmem, size = 0x400, scoped, tag = 'input window, operand 2, single buffered']
    #allocation8 [shape = 's32[1]{0}', space=sflag, size = 0x4, scoped, tag = 'scoped memory for discriminator_forward.1']
    #allocation9 [shape = 'u8[294912]{0}', space=vmem, size = 0x48000, scoped, tag = 'input window, operand 3, single buffered']
    #allocation10 [shape = 'u8[512]{0}', space=vmem, size = 0x400, scoped, tag = 'input window, operand 4, single buffered']
    #allocation11 [shape = 's32[1]{0}', space=sflag, size = 0x4, scoped, tag = 'scoped memory for discriminator_forward.1']
    #allocation12 [shape = 'u8[512]{0}', space=vmem, size = 0x400, scoped, tag = 'input window, operand 5, single buffered']
    #allocation13 [shape = 'u8[512]{0}', space=vmem, size = 0x400, scoped, tag = 'input window, operand 6, single buffered']
    #allocation14 [shape = 's32[1]{0}', space=sflag, size = 0x4, scoped, tag = 'scoped memory for discriminator_forward.1']
    #allocation15 [shape = 'u8[1179648]{0}', space=vmem, size = 0x120000, scoped, tag = 'input window, operand 7, single buffered']
    #allocation16 [shape = 'u8[1024]{0}', space=vmem, size = 0x400, scoped, tag = 'input window, operand 8, single buffered']
    #allocation17 [shape = 's32[1]{0}', space=sflag, size = 0x4, scoped, tag = 'scoped memory for discriminator_forward.1']
    #allocation18 [shape = 'u8[1024]{0}', space=vmem, size = 0x400, scoped, tag = 'input window, operand 9, single buffered']
    #allocation19 [shape = 'u8[8192]{0}', space=vmem, size = 0x2000, scoped, tag = 'input window, operand 10, single buffered']
    #allocation20 [shape = 's32[1]{0}', space=sflag, size = 0x4, scoped, tag = 'scoped memory for discriminator_forward.1']
    %19 = vsyncpa [#allocation6], 0
    %20 = vsyncpa [#allocation8], 0
    %21 = vsyncpa [#allocation11], 0
    %22 = vsyncpa [#allocation14], 0
    %23 = vsyncpa [#allocation17], 0
    %24 = vsyncpa [#allocation20], 0
    loop: start=0, step=1, limit=4
    $region2: #{discriminator_forward.1} parent=1 // loop_pre_header
      _
    $region3: #{discriminator_forward.1} parent=1 // loop_header
      %s26 = sphi 0, %s30
      %p27 = scmp.ge.s32.totalorder %s26, 4
      %s36 = sphi 0, %s38
      %s39 = sphi 0, %s36
      %s40 = sphi 0, %s39
      %s56 = sphi 0, %s40
      %s60 = sphi 0, %s60
      %s62 = sphi 0, %s60
      %s63 = sphi 0, %s62
      %s77 = sphi 0, %s63
      %s81 = sphi 0, %s81
      %s83 = sphi 0, %s81
      %s84 = sphi 0, %s83
      %s98 = sphi 0, %s84
      %s102 = sphi 0, %s102
      %s104 = sphi 0, %s102
      %s105 = sphi 0, %s104
      %s119 = sphi 0, %s105
      %s123 = sphi 0, %s123
      %s125 = sphi 0, %s123
      %s126 = sphi 0, %s125
      %s140 = sphi 0, %s126
      %s144 = sphi 0, %s144
      %s146 = sphi 0, %s144
      %s147 = sphi 0, %s146
      %s161 = sphi 0, %s147
      %s165 = sphi 0, %s165
      %s167 = sphi 0, %s165
      %s168 = sphi 0, %s167
      %s182 = sphi 0, %s168
      %s186 = sphi 0, %s186
      %s188 = sphi 0, %s186
      %s189 = sphi 0, %s188
      %s203 = sphi 0, %s189
      %s207 = sphi 0, %s207
      %s209 = sphi 0, %s207
      %s210 = sphi 0, %s209
      %s224 = sphi 0, %s210
      %s228 = sphi 0, %s228
      %s230 = sphi 0, %s228
      %s231 = sphi 0, %s230
      %s245 = sphi 0, %s231
      %s249 = sphi 0, %s249
      %s251 = sphi 0, %s249
      %s252 = sphi 0, %s251
      %s266 = sphi 0, %s252
      %s270 = sphi 0, %s270
      %s272 = sphi 0, %s270
      %s273 = sphi 0, %s272
      %s287 = sphi 0, %s273
      %s293 = sphi 0, %s295
      %s296 = sphi 0, %s293
      %s297 = sphi 0, %s296
      %s313 = sphi 0, %s297
    $region4: #{discriminator_forward.1} parent=1 // loop_header_branch
      %29 = sbr.rel (%p27) target = $region8
    $region5: #{discriminator_forward.1} parent=1 // loop_body
      %s31 = ssub.s32 %s26, 1
      %s32 = ssub.s32 %s26, 2
      %s33 = sadd.s32 %s26, 1
      %s34 = ssub.s32 %s26, %s33
      %p35 = scmp.eq.s32.totalorder %s34, 0
      %s37 = sadd.s32 %s36, 1
      %s38 = scalar_select %p35, %s36, %s37
      %p41 = pneg %p35
      %p42 = scmp.eq.s32.totalorder %s26, 1
      %p43 = por %p41, %p42
      %p44 = scmp.ne.s32.totalorder %s36, %s39
      %p45 = scmp.eq.s32.totalorder %s26, 0
      %p46 = por %p44, %p45
      %p47 = scmp.ne.s32.totalorder %s36, %s39
      %p48 = scmp.eq.s32.totalorder %s31, 1
      %p49 = por %p47, %p48
      %p50 = scmp.ne.s32.totalorder %s39, %s40
      %p51 = scmp.eq.s32.totalorder %s31, 0
      %p52 = por %p50, %p51
      %p53 = scmp.ne.s32.totalorder %s39, %s40
      %p54 = scmp.eq.s32.totalorder %s32, 1
      %p55 = por %p53, %p54
      %p57 = scmp.ne.s32.totalorder %s40, %s56
      %p58 = scmp.eq.s32.totalorder %s32, 0
      %p59 = por %p57, %p58
      %s61 = sadd.s32 %s60, 1
      %p64 = scmp.eq.s32.totalorder %s26, 1
      %p65 = scmp.ne.s32.totalorder %s60, %s62
      %p66 = scmp.eq.s32.totalorder %s26, 0
      %p67 = por %p65, %p66
      %p68 = scmp.ne.s32.totalorder %s60, %s62
      %p69 = scmp.eq.s32.totalorder %s31, 1
      %p70 = por %p68, %p69
      %p71 = scmp.ne.s32.totalorder %s62, %s63
      %p72 = scmp.eq.s32.totalorder %s31, 0
      %p73 = por %p71, %p72
      %p74 = scmp.ne.s32.totalorder %s62, %s63
      %p75 = scmp.eq.s32.totalorder %s32, 1
      %p76 = por %p74, %p75
      %p78 = scmp.ne.s32.totalorder %s63, %s77
      %p79 = scmp.eq.s32.totalorder %s32, 0
      %p80 = por %p78, %p79
      %s82 = sadd.s32 %s81, 1
      %p85 = scmp.eq.s32.totalorder %s26, 1
      %p86 = scmp.ne.s32.totalorder %s81, %s83
      %p87 = scmp.eq.s32.totalorder %s26, 0
      %p88 = por %p86, %p87
      %p89 = scmp.ne.s32.totalorder %s81, %s83
      %p90 = scmp.eq.s32.totalorder %s31, 1
      %p91 = por %p89, %p90
      %p92 = scmp.ne.s32.totalorder %s83, %s84
      %p93 = scmp.eq.s32.totalorder %s31, 0
      %p94 = por %p92, %p93
      %p95 = scmp.ne.s32.totalorder %s83, %s84
      %p96 = scmp.eq.s32.totalorder %s32, 1
      %p97 = por %p95, %p96
      %p99 = scmp.ne.s32.totalorder %s84, %s98
      %p100 = scmp.eq.s32.totalorder %s32, 0
      %p101 = por %p99, %p100
      %s103 = sadd.s32 %s102, 1
      %p106 = scmp.eq.s32.totalorder %s26, 1
      %p107 = scmp.ne.s32.totalorder %s102, %s104
      %p108 = scmp.eq.s32.totalorder %s26, 0
      %p109 = por %p107, %p108
      %p110 = scmp.ne.s32.totalorder %s102, %s104
      %p111 = scmp.eq.s32.totalorder %s31, 1
      %p112 = por %p110, %p111
      %p113 = scmp.ne.s32.totalorder %s104, %s105
      %p114 = scmp.eq.s32.totalorder %s31, 0
      %p115 = por %p113, %p114
      %p116 = scmp.ne.s32.totalorder %s104, %s105
      %p117 = scmp.eq.s32.totalorder %s32, 1
      %p118 = por %p116, %p117
      %p120 = scmp.ne.s32.totalorder %s105, %s119
      %p121 = scmp.eq.s32.totalorder %s32, 0
      %p122 = por %p120, %p121
      %s124 = sadd.s32 %s123, 1
      %p127 = scmp.eq.s32.totalorder %s26, 1
      %p128 = scmp.ne.s32.totalorder %s123, %s125
      %p129 = scmp.eq.s32.totalorder %s26, 0
      %p130 = por %p128, %p129
      %p131 = scmp.ne.s32.totalorder %s123, %s125
      %p132 = scmp.eq.s32.totalorder %s31, 1
      %p133 = por %p131, %p132
      %p134 = scmp.ne.s32.totalorder %s125, %s126
      %p135 = scmp.eq.s32.totalorder %s31, 0
      %p136 = por %p134, %p135
      %p137 = scmp.ne.s32.totalorder %s125, %s126
      %p138 = scmp.eq.s32.totalorder %s32, 1
      %p139 = por %p137, %p138
      %p141 = scmp.ne.s32.totalorder %s126, %s140
      %p142 = scmp.eq.s32.totalorder %s32, 0
      %p143 = por %p141, %p142
      %s145 = sadd.s32 %s144, 1
      %p148 = scmp.eq.s32.totalorder %s26, 1
      %p149 = scmp.ne.s32.totalorder %s144, %s146
      %p150 = scmp.eq.s32.totalorder %s26, 0
      %p151 = por %p149, %p150
      %p152 = scmp.ne.s32.totalorder %s144, %s146
      %p153 = scmp.eq.s32.totalorder %s31, 1
      %p154 = por %p152, %p153
      %p155 = scmp.ne.s32.totalorder %s146, %s147
      %p156 = scmp.eq.s32.totalorder %s31, 0
      %p157 = por %p155, %p156
      %p158 = scmp.ne.s32.totalorder %s146, %s147
      %p159 = scmp.eq.s32.totalorder %s32, 1
      %p160 = por %p158, %p159
      %p162 = scmp.ne.s32.totalorder %s147, %s161
      %p163 = scmp.eq.s32.totalorder %s32, 0
      %p164 = por %p162, %p163
      %s166 = sadd.s32 %s165, 1
      %p169 = scmp.eq.s32.totalorder %s26, 1
      %p170 = scmp.ne.s32.totalorder %s165, %s167
      %p171 = scmp.eq.s32.totalorder %s26, 0
      %p172 = por %p170, %p171
      %p173 = scmp.ne.s32.totalorder %s165, %s167
      %p174 = scmp.eq.s32.totalorder %s31, 1
      %p175 = por %p173, %p174
      %p176 = scmp.ne.s32.totalorder %s167, %s168
      %p177 = scmp.eq.s32.totalorder %s31, 0
      %p178 = por %p176, %p177
      %p179 = scmp.ne.s32.totalorder %s167, %s168
      %p180 = scmp.eq.s32.totalorder %s32, 1
      %p181 = por %p179, %p180
      %p183 = scmp.ne.s32.totalorder %s168, %s182
      %p184 = scmp.eq.s32.totalorder %s32, 0
      %p185 = por %p183, %p184
      %s187 = sadd.s32 %s186, 1
      %p190 = scmp.eq.s32.totalorder %s26, 1
      %p191 = scmp.ne.s32.totalorder %s186, %s188
      %p192 = scmp.eq.s32.totalorder %s26, 0
      %p193 = por %p191, %p192
      %p194 = scmp.ne.s32.totalorder %s186, %s188
      %p195 = scmp.eq.s32.totalorder %s31, 1
      %p196 = por %p194, %p195
      %p197 = scmp.ne.s32.totalorder %s188, %s189
      %p198 = scmp.eq.s32.totalorder %s31, 0
      %p199 = por %p197, %p198
      %p200 = scmp.ne.s32.totalorder %s188, %s189
      %p201 = scmp.eq.s32.totalorder %s32, 1
      %p202 = por %p200, %p201
      %p204 = scmp.ne.s32.totalorder %s189, %s203
      %p205 = scmp.eq.s32.totalorder %s32, 0
      %p206 = por %p204, %p205
      %s208 = sadd.s32 %s207, 1
      %p211 = scmp.eq.s32.totalorder %s26, 1
      %p212 = scmp.ne.s32.totalorder %s207, %s209
      %p213 = scmp.eq.s32.totalorder %s26, 0
      %p214 = por %p212, %p213
      %p215 = scmp.ne.s32.totalorder %s207, %s209
      %p216 = scmp.eq.s32.totalorder %s31, 1
      %p217 = por %p215, %p216
      %p218 = scmp.ne.s32.totalorder %s209, %s210
      %p219 = scmp.eq.s32.totalorder %s31, 0
      %p220 = por %p218, %p219
      %p221 = scmp.ne.s32.totalorder %s209, %s210
      %p222 = scmp.eq.s32.totalorder %s32, 1
      %p223 = por %p221, %p222
      %p225 = scmp.ne.s32.totalorder %s210, %s224
      %p226 = scmp.eq.s32.totalorder %s32, 0
      %p227 = por %p225, %p226
      %s229 = sadd.s32 %s228, 1
      %p232 = scmp.eq.s32.totalorder %s26, 1
      %p233 = scmp.ne.s32.totalorder %s228, %s230
      %p234 = scmp.eq.s32.totalorder %s26, 0
      %p235 = por %p233, %p234
      %p236 = scmp.ne.s32.totalorder %s228, %s230
      %p237 = scmp.eq.s32.totalorder %s31, 1
      %p238 = por %p236, %p237
      %p239 = scmp.ne.s32.totalorder %s230, %s231
      %p240 = scmp.eq.s32.totalorder %s31, 0
      %p241 = por %p239, %p240
      %p242 = scmp.ne.s32.totalorder %s230, %s231
      %p243 = scmp.eq.s32.totalorder %s32, 1
      %p244 = por %p242, %p243
      %p246 = scmp.ne.s32.totalorder %s231, %s245
      %p247 = scmp.eq.s32.totalorder %s32, 0
      %p248 = por %p246, %p247
      %s250 = sadd.s32 %s249, 1
      %p253 = scmp.eq.s32.totalorder %s26, 1
      %p254 = scmp.ne.s32.totalorder %s249, %s251
      %p255 = scmp.eq.s32.totalorder %s26, 0
      %p256 = por %p254, %p255
      %p257 = scmp.ne.s32.totalorder %s249, %s251
      %p258 = scmp.eq.s32.totalorder %s31, 1
      %p259 = por %p257, %p258
      %p260 = scmp.ne.s32.totalorder %s251, %s252
      %p261 = scmp.eq.s32.totalorder %s31, 0
      %p262 = por %p260, %p261
      %p263 = scmp.ne.s32.totalorder %s251, %s252
      %p264 = scmp.eq.s32.totalorder %s32, 1
      %p265 = por %p263, %p264
      %p267 = scmp.ne.s32.totalorder %s252, %s266
      %p268 = scmp.eq.s32.totalorder %s32, 0
      %p269 = por %p267, %p268
      %s271 = sadd.s32 %s270, 1
      %p274 = scmp.eq.s32.totalorder %s26, 1
      %p275 = scmp.ne.s32.totalorder %s270, %s272
      %p276 = scmp.eq.s32.totalorder %s26, 0
      %p277 = por %p275, %p276
      %p278 = scmp.ne.s32.totalorder %s270, %s272
      %p279 = scmp.eq.s32.totalorder %s31, 1
      %p280 = por %p278, %p279
      %p281 = scmp.ne.s32.totalorder %s272, %s273
      %p282 = scmp.eq.s32.totalorder %s31, 0
      %p283 = por %p281, %p282
      %p284 = scmp.ne.s32.totalorder %s272, %s273
      %p285 = scmp.eq.s32.totalorder %s32, 1
      %p286 = por %p284, %p285
      %p288 = scmp.ne.s32.totalorder %s273, %s287
      %p289 = scmp.eq.s32.totalorder %s32, 0
      %p290 = por %p288, %p289
      %s291 = ssub.s32 %s26, %s33
      %p292 = scmp.eq.s32.totalorder %s291, 0
      %s294 = sadd.s32 %s293, 1
      %s295 = scalar_select %p292, %s293, %s294
      %p298 = pneg %p292
      %p299 = scmp.eq.s32.totalorder %s26, 1
      %p300 = por %p298, %p299
      %p301 = scmp.ne.s32.totalorder %s293, %s296
      %p302 = scmp.eq.s32.totalorder %s26, 0
      %p303 = por %p301, %p302
      %p304 = scmp.ne.s32.totalorder %s293, %s296
      %p305 = scmp.eq.s32.totalorder %s31, 1
      %p306 = por %p304, %p305
      %p307 = scmp.ne.s32.totalorder %s296, %s297
      %p308 = scmp.eq.s32.totalorder %s31, 0
      %p309 = por %p307, %p308
      %p310 = scmp.ne.s32.totalorder %s296, %s297
      %p311 = scmp.eq.s32.totalorder %s32, 1
      %p312 = por %p310, %p311
      %p314 = scmp.ne.s32.totalorder %s297, %s313
      %p315 = scmp.eq.s32.totalorder %s32, 0
      %p316 = por %p314, %p315
      %p317 = scmp.le.s32.totalorder 1, %s26
      %p318 = scmp.lt.s32.totalorder %s26, 3
      %p319 = pnand %p317, %p318
      %p320 = pneg %p319
      // Predicated region
      $region9: #{discriminator_forward.1} parent=5 // pred_check
        _
      $region10: #{discriminator_forward.1} parent=5 // pred_check_branch
        %322 = sbr.rel (%p319) target = $region12
      $region11: #{discriminator_forward.1} parent=5 // pred_region
        %s323 = ssub.s32 %s26, 1
        // Predicated region
        $region13: #{discriminator_forward.1} parent=11 // pred_check
          %p324 = pneg %p73
        $region14: #{discriminator_forward.1} parent=11 // pred_check_branch
          %326 = sbr.rel (%p324) target = $region16
        $region15: #{discriminator_forward.1} parent=11 // pred_region
          %s328 = ssub.s32 256, 256
          %329 = vsyncadd [#allocation6], %s328
          %s330 = sshll.u32 [#allocation5], 4
          %s331 = int_to_ptr.vmem [resolvable:$true] %s330
          %336 = dma.hbm_to_vmem [thread:$0]  %s1, 256, %s331, [#allocation6], 128, 128, 8
        $region16: #{discriminator_forward.1} parent=11 // pred_fallthru
          _
        // Predicated region
        $region17: #{discriminator_forward.1} parent=11 // pred_check
          %p337 = pneg %p94
        $region18: #{discriminator_forward.1} parent=11 // pred_check_branch
          %339 = sbr.rel (%p337) target = $region20
        $region19: #{discriminator_forward.1} parent=11 // pred_region
          %s341 = ssub.s32 16, 16
          %342 = vsyncadd [#allocation8], %s341
          %s344 = sshll.u32 [#allocation7], 4
          %s345 = int_to_ptr.vmem [resolvable:$true] %s344
          %347 = dma.hbm_to_vmem [thread:$0]  %s2, 16, %s345, [#allocation8]
        $region20: #{discriminator_forward.1} parent=11 // pred_fallthru
          _
        // Predicated region
        $region21: #{discriminator_forward.1} parent=11 // pred_check
          %p348 = pneg %p115
        $region22: #{discriminator_forward.1} parent=11 // pred_check_branch
          %350 = sbr.rel (%p348) target = $region24
        $region23: #{discriminator_forward.1} parent=11 // pred_region
          %s352 = ssub.s32 9216, 9216
          %353 = vsyncadd [#allocation8], %s352
          %s354 = sshll.u32 [#allocation9], 4
          %s355 = int_to_ptr.vmem [resolvable:$true] %s354
          %360 = dma.hbm_to_vmem [thread:$0]  %s3, 9216, %s355, [#allocation8], 128, 128, 8
        $region24: #{discriminator_forward.1} parent=11 // pred_fallthru
          _
        // Predicated region
        $region25: #{discriminator_forward.1} parent=11 // pred_check
          %p361 = pneg %p136
        $region26: #{discriminator_forward.1} parent=11 // pred_check_branch
          %363 = sbr.rel (%p361) target = $region28
        $region27: #{discriminator_forward.1} parent=11 // pred_region
          %s365 = ssub.s32 16, 16
          %366 = vsyncadd [#allocation11], %s365
          %s368 = sshll.u32 [#allocation10], 4
          %s369 = int_to_ptr.vmem [resolvable:$true] %s368
          %371 = dma.hbm_to_vmem [thread:$0]  %s4, 16, %s369, [#allocation11]
        $region28: #{discriminator_forward.1} parent=11 // pred_fallthru
          _
        // Predicated region
        $region29: #{discriminator_forward.1} parent=11 // pred_check
          %p372 = pneg %p157
        $region30: #{discriminator_forward.1} parent=11 // pred_check_branch
          %374 = sbr.rel (%p372) target = $region32
        $region31: #{discriminator_forward.1} parent=11 // pred_region
          %s376 = ssub.s32 16, 16
          %377 = vsyncadd [#allocation11], %s376
          %s379 = sshll.u32 [#allocation12], 4
          %s380 = int_to_ptr.vmem [resolvable:$true] %s379
          %382 = dma.hbm_to_vmem [thread:$0]  %s5, 16, %s380, [#allocation11]
        $region32: #{discriminator_forward.1} parent=11 // pred_fallthru
          _
        // Predicated region
        $region33: #{discriminator_forward.1} parent=11 // pred_check
          %p383 = pneg %p178
        $region34: #{discriminator_forward.1} parent=11 // pred_check_branch
          %385 = sbr.rel (%p383) target = $region36
        $region35: #{discriminator_forward.1} parent=11 // pred_region
          %s387 = ssub.s32 16, 16
          %388 = vsyncadd [#allocation14], %s387
          %s390 = sshll.u32 [#allocation13], 4
          %s391 = int_to_ptr.vmem [resolvable:$true] %s390
          %393 = dma.hbm_to_vmem [thread:$0]  %s6, 16, %s391, [#allocation14]
        $region36: #{discriminator_forward.1} parent=11 // pred_fallthru
          _
        // Predicated region
        $region37: #{discriminator_forward.1} parent=11 // pred_check
          %p394 = pneg %p199
        $region38: #{discriminator_forward.1} parent=11 // pred_check_branch
          %396 = sbr.rel (%p394) target = $region40
        $region39: #{discriminator_forward.1} parent=11 // pred_region
          %s398 = ssub.s32 36864, 36864
          %399 = vsyncadd [#allocation14], %s398
          %s400 = sshll.u32 [#allocation15], 4
          %s401 = int_to_ptr.vmem [resolvable:$true] %s400
          %406 = dma.hbm_to_vmem [thread:$0]  %s7, 36864, %s401, [#allocation14], 256, 256, 16
        $region40: #{discriminator_forward.1} parent=11 // pred_fallthru
          _
        // Predicated region
        $region41: #{discriminator_forward.1} parent=11 // pred_check
          %p407 = pneg %p220
        $region42: #{discriminator_forward.1} parent=11 // pred_check_branch
          %409 = sbr.rel (%p407) target = $region44
        $region43: #{discriminator_forward.1} parent=11 // pred_region
          %s411 = ssub.s32 32, 32
          %412 = vsyncadd [#allocation17], %s411
          %s414 = sshll.u32 [#allocation16], 4
          %s415 = int_to_ptr.vmem [resolvable:$true] %s414
          %417 = dma.hbm_to_vmem [thread:$0]  %s8, 32, %s415, [#allocation17]
        $region44: #{discriminator_forward.1} parent=11 // pred_fallthru
          _
        // Predicated region
        $region45: #{discriminator_forward.1} parent=11 // pred_check
          %p418 = pneg %p241
        $region46: #{discriminator_forward.1} parent=11 // pred_check_branch
          %420 = sbr.rel (%p418) target = $region48
        $region47: #{discriminator_forward.1} parent=11 // pred_region
          %s422 = ssub.s32 32, 32
          %423 = vsyncadd [#allocation17], %s422
          %s425 = sshll.u32 [#allocation18], 4
          %s426 = int_to_ptr.vmem [resolvable:$true] %s425
          %428 = dma.hbm_to_vmem [thread:$0]  %s9, 32, %s426, [#allocation17]
        $region48: #{discriminator_forward.1} parent=11 // pred_fallthru
          _
        // Predicated region
        $region49: #{discriminator_forward.1} parent=11 // pred_check
          %p429 = pneg %p262
        $region50: #{discriminator_forward.1} parent=11 // pred_check_branch
          %431 = sbr.rel (%p429) target = $region52
        $region51: #{discriminator_forward.1} parent=11 // pred_region
          %s433 = ssub.s32 256, 256
          %434 = vsyncadd [#allocation20], %s433
          %s436 = sshll.u32 [#allocation19], 4
          %s437 = int_to_ptr.vmem [resolvable:$true] %s436
          %439 = dma.hbm_to_vmem [thread:$0]  %s10, 256, %s437, [#allocation20]
        $region52: #{discriminator_forward.1} parent=11 // pred_fallthru
          _
        // Predicated region
        $region53: #{discriminator_forward.1} parent=11 // pred_check
          %p440 = pneg %p283
        $region54: #{discriminator_forward.1} parent=11 // pred_check_branch
          %442 = sbr.rel (%p440) target = $region56
        $region55: #{discriminator_forward.1} parent=11 // pred_region
          _
        $region56: #{discriminator_forward.1} parent=11 // pred_fallthru
          _
      $region12: #{discriminator_forward.1} parent=5 // pred_fallthru
        _
      %p443 = scmp.lt.s32.totalorder %s26, 2
      // Predicated region
      $region57: #{discriminator_forward.1} parent=5 // pred_check
        %p444 = pneg %p443
      $region58: #{discriminator_forward.1} parent=5 // pred_check_branch
        %446 = sbr.rel (%p444) target = $region60
      $region59: #{discriminator_forward.1} parent=5 // pred_region
        // Predicated region
        $region61: #{discriminator_forward.1} parent=59 // pred_check
          %p447 = pneg %p46
        $region62: #{discriminator_forward.1} parent=59 // pred_check_branch
          %449 = sbr.rel (%p447) target = $region64
        $region63: #{discriminator_forward.1} parent=59 // pred_region
          %p450 = scmp.lt.s32.totalorder %s26, 1
          %s451 = scalar_select %p450, %s26, 1
          %s452 = smul.addr %s451, 18
          %s453 = smul.addr %s452, 8
          %s454 = scalar_lea.vmem %s0, %s453
        $region64: #{discriminator_forward.1} parent=59 // pred_fallthru
          _
      $region60: #{discriminator_forward.1} parent=5 // pred_fallthru
        _
      %p455 = scmp.le.s32.totalorder 1, %s26
      %p456 = scmp.lt.s32.totalorder %s26, 3
      %p457 = pnand %p455, %p456
      %p458 = pneg %p457
      // Predicated region
      $region65: #{discriminator_forward.1} parent=5 // pred_check
        _
      $region66: #{discriminator_forward.1} parent=5 // pred_check_branch
        %460 = sbr.rel (%p457) target = $region68
      $region67: #{discriminator_forward.1} parent=5 // pred_region
        %s461 = ssub.s32 %s26, 1
        // Predicated region
        $region69: #{discriminator_forward.1} parent=67 // pred_check
          %p462 = pneg %p73
        $region70: #{discriminator_forward.1} parent=67 // pred_check_branch
          %464 = sbr.rel (%p462) target = $region72
        $region71: #{discriminator_forward.1} parent=67 // pred_region
          %465 = dma.done [#allocation6], 256
        $region72: #{discriminator_forward.1} parent=67 // pred_fallthru
          _
        // Predicated region
        $region73: #{discriminator_forward.1} parent=67 // pred_check
          %p466 = pneg %p94
        $region74: #{discriminator_forward.1} parent=67 // pred_check_branch
          %468 = sbr.rel (%p466) target = $region76
        $region75: #{discriminator_forward.1} parent=67 // pred_region
          %469 = dma.done [#allocation8], 16
        $region76: #{discriminator_forward.1} parent=67 // pred_fallthru
          _
        // Predicated region
        $region77: #{discriminator_forward.1} parent=67 // pred_check
          %p470 = pneg %p115
        $region78: #{discriminator_forward.1} parent=67 // pred_check_branch
          %472 = sbr.rel (%p470) target = $region80
        $region79: #{discriminator_forward.1} parent=67 // pred_region
          %473 = dma.done [#allocation8], 9216
        $region80: #{discriminator_forward.1} parent=67 // pred_fallthru
          _
        // Predicated region
        $region81: #{discriminator_forward.1} parent=67 // pred_check
          %p474 = pneg %p136
        $region82: #{discriminator_forward.1} parent=67 // pred_check_branch
          %476 = sbr.rel (%p474) target = $region84
        $region83: #{discriminator_forward.1} parent=67 // pred_region
          %477 = dma.done [#allocation11], 16
        $region84: #{discriminator_forward.1} parent=67 // pred_fallthru
          _
        // Predicated region
        $region85: #{discriminator_forward.1} parent=67 // pred_check
          %p478 = pneg %p157
        $region86: #{discriminator_forward.1} parent=67 // pred_check_branch
          %480 = sbr.rel (%p478) target = $region88
        $region87: #{discriminator_forward.1} parent=67 // pred_region
          %481 = dma.done [#allocation11], 16
        $region88: #{discriminator_forward.1} parent=67 // pred_fallthru
          _
        // Predicated region
        $region89: #{discriminator_forward.1} parent=67 // pred_check
          %p482 = pneg %p178
        $region90: #{discriminator_forward.1} parent=67 // pred_check_branch
          %484 = sbr.rel (%p482) target = $region92
        $region91: #{discriminator_forward.1} parent=67 // pred_region
          %485 = dma.done [#allocation14], 16
        $region92: #{discriminator_forward.1} parent=67 // pred_fallthru
          _
        // Predicated region
        $region93: #{discriminator_forward.1} parent=67 // pred_check
          %p486 = pneg %p199
        $region94: #{discriminator_forward.1} parent=67 // pred_check_branch
          %488 = sbr.rel (%p486) target = $region96
        $region95: #{discriminator_forward.1} parent=67 // pred_region
          %489 = dma.done [#allocation14], 36864
        $region96: #{discriminator_forward.1} parent=67 // pred_fallthru
          _
        // Predicated region
        $region97: #{discriminator_forward.1} parent=67 // pred_check
          %p490 = pneg %p220
        $region98: #{discriminator_forward.1} parent=67 // pred_check_branch
          %492 = sbr.rel (%p490) target = $region100
        $region99: #{discriminator_forward.1} parent=67 // pred_region
          %493 = dma.done [#allocation17], 32
        $region100: #{discriminator_forward.1} parent=67 // pred_fallthru
          _
        // Predicated region
        $region101: #{discriminator_forward.1} parent=67 // pred_check
          %p494 = pneg %p241
        $region102: #{discriminator_forward.1} parent=67 // pred_check_branch
          %496 = sbr.rel (%p494) target = $region104
        $region103: #{discriminator_forward.1} parent=67 // pred_region
          %497 = dma.done [#allocation17], 32
        $region104: #{discriminator_forward.1} parent=67 // pred_fallthru
          _
        // Predicated region
        $region105: #{discriminator_forward.1} parent=67 // pred_check
          %p498 = pneg %p262
        $region106: #{discriminator_forward.1} parent=67 // pred_check_branch
          %500 = sbr.rel (%p498) target = $region108
        $region107: #{discriminator_forward.1} parent=67 // pred_region
          %501 = dma.done [#allocation20], 256
        $region108: #{discriminator_forward.1} parent=67 // pred_fallthru
          _
        %p502 = scmp.lt.s32.totalorder %s31, 1
        %s503 = scalar_select %p502, %s31, 1
        %s504 = smul.addr %s503, 18
        %s505 = smul.addr %s504, 8
        %s506 = scalar_lea.vmem %s0, %s505
        %p507 = pneg %p52
        %p508 = pneg %p49
        %p509 = pneg %p73
        %p510 = pneg %p70
        %p511 = pneg %p94
        %p512 = pneg %p91
        %p513 = pneg %p115
        %p514 = pneg %p112
        %p515 = pneg %p136
        %p516 = pneg %p133
        %p517 = pneg %p157
        %p518 = pneg %p154
        %p519 = pneg %p178
        %p520 = pneg %p175
        %p521 = pneg %p199
        %p522 = pneg %p196
        %p523 = pneg %p220
        %p524 = pneg %p217
        %p525 = pneg %p241
        %p526 = pneg %p238
        %p527 = pneg %p262
        %p528 = pneg %p259
        %p529 = pneg %p283
        %p530 = pneg %p280
        %p531 = pneg %p309
        %p532 = pneg %p306
        %p533 = scmp.lt.s32.totalorder %s31, 1
        %s534 = scalar_select %p533, %s31, 1
        %s535 = scalar_lea.vmem %s12, %s534
        %p536 = scmp.lt.s32.totalorder %s31, 1
        %s537 = scalar_select %p536, %s31, 1
        %s538 = smul.addr %s537, 18
        %s539 = smul.addr %s538, 8
        %s540 = scalar_lea.vmem %s0, %s539
        %p541 = scmp.lt.s32.totalorder %s31, 1
        %s542 = scalar_select %p541, %s31, 1
        %s543 = scalar_lea.vmem %s12, %s542
        %v544 = vld [vmem:[%s540] sm:$0xff]
        %v545 = vld [vmem:[%s540 + $0x8] sm:$0xff]
        %v546 = vld [vmem:[%s540 + $0x10] sm:$0xff]
        %v547 = vld [vmem:[%s540 + $0x18] sm:$0xff]
        %v548 = vld [vmem:[%s540 + $0x20] sm:$0xff]
        %v549 = vld [vmem:[%s540 + $0x28] sm:$0xff]
        %v550 = vld [vmem:[%s540 + $0x30] sm:$0xff]
        %v551 = vld [vmem:[%s540 + $0x38] sm:$0xff]
        %v552 = vld [vmem:[%s540 + $0x40] sm:$0xff]
        %v553 = vld [vmem:[%s540 + $0x48] sm:$0xff]
        %v554 = vld [vmem:[%s540 + $0x50] sm:$0xff]
        %v555 = vld [vmem:[%s540 + $0x58] sm:$0xff]
        %v556 = vld [vmem:[%s540 + $0x60] sm:$0xff]
        %v557 = vld [vmem:[%s540 + $0x68] sm:$0xff]
        %v558 = vld [vmem:[%s540 + $0x70] sm:$0xff]
        %v559 = vld [vmem:[%s540 + $0x78] sm:$0xff]
        %v560 = vld [vmem:[%s540 + $0x80] sm:$0xff]
        %v561 = vld [vmem:[%s540 + $0x88] sm:$0xf]
        %v562 = vld [vmem:[#allocation5] sm:$0xff]
        %v563 = vld [vmem:[#allocation5 + $0x8] sm:$0x1]
        %v564 = vld [vmem:[#allocation7] sm:$0x1]
        %v566 = vlaneseq
        %v567 = vshrl.u32 %v566, 7
        %v568 = vsub.s32 0, %v567
        %v569 = vrot.slane %v564, %v568
        %vm571 = vcmask 72704
        %v573 = vsel %vm571, %v544, 0
        %v576 = vsel %vm571, %v545, 0
        %v579 = vsel %vm571, %v546, 0
        %v582 = vsel %vm571, %v547, 0
        %v585 = vsel %vm571, %v548, 0
        %v588 = vsel %vm571, %v549, 0
        %v591 = vsel %vm571, %v550, 0
        %v594 = vsel %vm571, %v551, 0
        %v597 = vsel %vm571, %v552, 0
        %v600 = vsel %vm571, %v553, 0
        %v603 = vsel %vm571, %v554, 0
        %v606 = vsel %vm571, %v555, 0
        %v609 = vsel %vm571, %v556, 0
        %v612 = vsel %vm571, %v557, 0
        %v615 = vsel %vm571, %v558, 0
        %v618 = vsel %vm571, %v559, 0
        %v621 = vsel %vm571, %v560, 0
        %v624 = vsel %vm571, %v561, 0
        %vm626 = vcmask 1040384
        %v628 = vsel %vm626, %v563, 0
        %630 = vmatprep.subr.mxu0 0.0
        %631 = vmatpush1.msra.mxu0 %v562
        %632 = vmatprep.subr.mxu0 0.0
        %633 = vmatpush1.msra.mxu0 %v628
        %634 = vmatprep.subr.mxu0 0.0
        %635 = vmatpush1.msra.mxu0 0.0
        %636 = vmatprep.subr.mxu0 0.0
        %637 = vmatpush1.msra.mxu0 0.0
        %638 = vmatprep.subr.mxu0 0.0
        %639 = vmatpush1.msra.mxu0 0.0
        %640 = vmatprep.subr.mxu0 0.0
        %641 = vmatpush1.msra.mxu0 0.0
        %642 = vmatprep.subr.mxu0 0.0
        %643 = vmatpush1.msra.mxu0 0.0
        %644 = vmatprep.subr.mxu0 0.0
        %645 = vmatpush1.msra.mxu0 0.0
        %646 = vmatprep.subr.mxu0 0.0
        %647 = vmatpush1.msra.mxu0 0.0
        %648 = vmatprep.subr.mxu0 0.0
        %649 = vmatpush1.msra.mxu0 0.0
        %650 = vmatprep.subr.mxu0 0.0
        %651 = vmatpush1.msra.mxu0 0.0
        %652 = vmatprep.subr.mxu0 0.0
        %653 = vmatpush1.msra.mxu0 0.0
        %654 = vmatprep.subr.mxu0 0.0
        %655 = vmatpush1.msra.mxu0 0.0
        %656 = vmatprep.subr.mxu0 0.0
        %657 = vmatpush1.msra.mxu0 0.0
        %658 = vmatprep.subr.mxu0 0.0
        %659 = vmatpush1.msra.mxu0 0.0
        %660 = vmatprep.subr.mxu0 0.0
        %661 = vmatpush1.msra.mxu0 0.0
        %662 = vmatprep.subr.mxu0 0.0
        %663 = vmatpush1.msra.mxu0 0.0
        %664 = vmatprep.subr.mxu0 0.0
        %665 = vmatpush1.msra.mxu0 0.0
        %666 = vmatprep.subr.mxu0 0.0
        %667 = vmatpush1.msra.mxu0 0.0
        %668 = vmatprep.subr.mxu0 0.0
        %669 = vmatpush1.msra.mxu0 0.0
        %670 = vmatprep.subr.mxu0 0.0
        %671 = vmatpush1.msra.mxu0 0.0
        %672 = vmatprep.subr.mxu0 0.0
        %673 = vmatpush1.msra.mxu0 0.0
        %674 = vmatprep.subr.mxu0 0.0
        %675 = vmatpush1.msra.mxu0 0.0
        %676 = vmatprep.subr.mxu0 0.0
        %677 = vmatpush1.msra.mxu0 0.0
        %678 = vmatprep.subr.mxu0 0.0
        %679 = vmatpush1.msra.mxu0 0.0
        %680 = vmatprep.subr.mxu0 0.0
        %681 = vmatpush1.msra.mxu0 0.0
        %682 = vmatprep.subr.mxu0 0.0
        %683 = vmatpush1.msra.mxu0 0.0
        %684 = vmatprep.subr.mxu0 0.0
        %685 = vmatpush1.msra.mxu0 0.0
        %686 = vmatprep.subr.mxu0 0.0
        %687 = vmatpush1.msra.mxu0 0.0
        %688 = vmatprep.subr.mxu0 0.0
        %689 = vmatpush1.msra.mxu0 0.0
        %690 = vmatprep.subr.mxu0 0.0
        %691 = vmatpush1.msra.mxu0 0.0
        %692 = vmatprep.subr.mxu0 0.0
        %693 = vmatpush1.msra.mxu0 0.0
        %694 = vmatprep.mubr.f32.mxu0 0.0
        %695 = vmatmul.mubr.f32.gmra.mrb[0].mxu0 %v573
        %v696 = vpop.f32.mrb[0].mxu0
        %v697 = vadd.f32 %v569, %v696
        %v698 = vpop.f32.mrb[0].mxu0
        %699 = vmatprep.mubr.f32.mxu0 0.0
        %700 = vmatmul.mubr.f32.gmra.mrb[0].mxu0 %v576
        %v701 = vpop.f32.mrb[0].mxu0
        %v702 = vadd.f32 %v569, %v701
        %v703 = vpop.f32.mrb[0].mxu0
        %704 = vmatprep.mubr.f32.mxu0 0.0
        %705 = vmatmul.mubr.f32.gmra.mrb[0].mxu0 %v579
        %v706 = vpop.f32.mrb[0].mxu0
        %v707 = vadd.f32 %v569, %v706
        %v708 = vpop.f32.mrb[0].mxu0
        %709 = vmatprep.mubr.f32.mxu0 0.0
        %710 = vmatmul.mubr.f32.gmra.mrb[0].mxu0 %v582
        %v711 = vpop.f32.mrb[0].mxu0
        %v712 = vadd.f32 %v569, %v711
        %v713 = vpop.f32.mrb[0].mxu0
        %714 = vmatprep.mubr.f32.mxu0 0.0
        %715 = vmatmul.mubr.f32.gmra.mrb[0].mxu0 %v585
        %v716 = vpop.f32.mrb[0].mxu0
        %v717 = vadd.f32 %v569, %v716
        %v718 = vpop.f32.mrb[0].mxu0
        %719 = vmatprep.mubr.f32.mxu0 0.0
        %720 = vmatmul.mubr.f32.gmra.mrb[0].mxu0 %v588
        %v721 = vpop.f32.mrb[0].mxu0
        %v722 = vadd.f32 %v569, %v721
        %v723 = vpop.f32.mrb[0].mxu0
        %724 = vmatprep.mubr.f32.mxu0 0.0
        %725 = vmatmul.mubr.f32.gmra.mrb[0].mxu0 %v591
        %v726 = vpop.f32.mrb[0].mxu0
        %v727 = vadd.f32 %v569, %v726
        %v728 = vpop.f32.mrb[0].mxu0
        %729 = vmatprep.mubr.f32.mxu0 0.0
        %730 = vmatmul.mubr.f32.gmra.mrb[0].mxu0 %v594
        %v731 = vpop.f32.mrb[0].mxu0
        %v732 = vadd.f32 %v569, %v731
        %v733 = vpop.f32.mrb[0].mxu0
        %734 = vmatprep.mubr.f32.mxu0 0.0
        %735 = vmatmul.mubr.f32.gmra.mrb[0].mxu0 %v597
        %v736 = vpop.f32.mrb[0].mxu0
        %v737 = vadd.f32 %v569, %v736
        %v738 = vpop.f32.mrb[0].mxu0
        %739 = vmatprep.mubr.f32.mxu0 0.0
        %740 = vmatmul.mubr.f32.gmra.mrb[0].mxu0 %v600
        %v741 = vpop.f32.mrb[0].mxu0
        %v742 = vadd.f32 %v569, %v741
        %v743 = vpop.f32.mrb[0].mxu0
        %744 = vmatprep.mubr.f32.mxu0 0.0
        %745 = vmatmul.mubr.f32.gmra.mrb[0].mxu0 %v603
        %v746 = vpop.f32.mrb[0].mxu0
        %v747 = vadd.f32 %v569, %v746
        %v748 = vpop.f32.mrb[0].mxu0
        %749 = vmatprep.mubr.f32.mxu0 0.0
        %750 = vmatmul.mubr.f32.gmra.mrb[0].mxu0 %v606
        %v751 = vpop.f32.mrb[0].mxu0
        %v752 = vadd.f32 %v569, %v751
        %v753 = vpop.f32.mrb[0].mxu0
        %754 = vmatprep.mubr.f32.mxu0 0.0
        %755 = vmatmul.mubr.f32.gmra.mrb[0].mxu0 %v609
        %v756 = vpop.f32.mrb[0].mxu0
        %v757 = vadd.f32 %v569, %v756
        %v758 = vpop.f32.mrb[0].mxu0
        %759 = vmatprep.mubr.f32.mxu0 0.0
        %760 = vmatmul.mubr.f32.gmra.mrb[0].mxu0 %v612
        %v761 = vpop.f32.mrb[0].mxu0
        %v762 = vadd.f32 %v569, %v761
        %v763 = vpop.f32.mrb[0].mxu0
        %764 = vmatprep.mubr.f32.mxu0 0.0
        %765 = vmatmul.mubr.f32.gmra.mrb[0].mxu0 %v615
        %v766 = vpop.f32.mrb[0].mxu0
        %v767 = vadd.f32 %v569, %v766
        %v768 = vpop.f32.mrb[0].mxu0
        %769 = vmatprep.mubr.f32.mxu0 0.0
        %770 = vmatmul.mubr.f32.gmra.mrb[0].mxu0 %v618
        %v771 = vpop.f32.mrb[0].mxu0
        %v772 = vadd.f32 %v569, %v771
        %v773 = vpop.f32.mrb[0].mxu0
        %774 = vmatprep.mubr.f32.mxu0 0.0
        %775 = vmatmul.mubr.f32.gmra.mrb[0].mxu0 %v621
        %v776 = vpop.f32.mrb[0].mxu0
        %v777 = vadd.f32 %v569, %v776
        %v778 = vpop.f32.mrb[0].mxu0
        %779 = vmatprep.mubr.f32.mxu0 0.0
        %780 = vmatmul.mubr.f32.gmra.mrb[0].mxu0 %v624
        %v781 = vpop.f32.mrb[0].mxu0
        %v782 = vadd.f32 %v569, %v781
        %v783 = vpop.f32.mrb[0].mxu0
        %784 = vdwg.mxu0
        %vm785 = vcmp.gt.f32.partialorder %v697, 0.0
        %vm786 = vcmp.gt.f32.partialorder %v702, 0.0
        %vm787 = vcmp.gt.f32.partialorder %v707, 0.0
        %vm788 = vcmp.gt.f32.partialorder %v712, 0.0
        %vm789 = vcmp.gt.f32.partialorder %v717, 0.0
        %vm790 = vcmp.gt.f32.partialorder %v722, 0.0
        %vm791 = vcmp.gt.f32.partialorder %v727, 0.0
        %vm792 = vcmp.gt.f32.partialorder %v732, 0.0
        %vm793 = vcmp.gt.f32.partialorder %v737, 0.0
        %vm794 = vcmp.gt.f32.partialorder %v742, 0.0
        %vm795 = vcmp.gt.f32.partialorder %v747, 0.0
        %vm796 = vcmp.gt.f32.partialorder %v752, 0.0
        %vm797 = vcmp.gt.f32.partialorder %v757, 0.0
        %vm798 = vcmp.gt.f32.partialorder %v762, 0.0
        %vm799 = vcmp.gt.f32.partialorder %v767, 0.0
        %vm800 = vcmp.gt.f32.partialorder %v772, 0.0
        %vm801 = vcmp.gt.f32.partialorder %v777, 0.0
        %vm802 = vcmp.gt.f32.partialorder %v782, 0.0
        %v803 = vmul.f32 %v697, 0.2
        %v804 = vmul.f32 %v702, 0.2
        %v805 = vmul.f32 %v707, 0.2
        %v806 = vmul.f32 %v712, 0.2
        %v807 = vmul.f32 %v717, 0.2
        %v808 = vmul.f32 %v722, 0.2
        %v809 = vmul.f32 %v727, 0.2
        %v810 = vmul.f32 %v732, 0.2
        %v811 = vmul.f32 %v737, 0.2
        %v812 = vmul.f32 %v742, 0.2
        %v813 = vmul.f32 %v747, 0.2
        %v814 = vmul.f32 %v752, 0.2
        %v815 = vmul.f32 %v757, 0.2
        %v816 = vmul.f32 %v762, 0.2
        %v817 = vmul.f32 %v767, 0.2
        %v818 = vmul.f32 %v772, 0.2
        %v819 = vmul.f32 %v777, 0.2
        %v820 = vmul.f32 %v782, 0.2
        %v821 = vsel %vm785, %v697, %v803
        %v822 = vsel %vm786, %v702, %v804
        %v823 = vsel %vm787, %v707, %v805
        %v824 = vsel %vm788, %v712, %v806
        %v825 = vsel %vm789, %v717, %v807
        %v826 = vsel %vm790, %v722, %v808
        %v827 = vsel %vm791, %v727, %v809
        %v828 = vsel %vm792, %v732, %v810
        %v829 = vsel %vm793, %v737, %v811
        %v830 = vsel %vm794, %v742, %v812
        %v831 = vsel %vm795, %v747, %v813
        %v832 = vsel %vm796, %v752, %v814
        %v833 = vsel %vm797, %v757, %v815
        %v834 = vsel %vm798, %v762, %v816
        %v835 = vsel %vm799, %v767, %v817
        %v836 = vsel %vm800, %v772, %v818
        %v837 = vsel %vm801, %v777, %v819
        %v838 = vsel %vm802, %v782, %v820
        %vm839 = vcmask 523264
        %840 = vst.msk [vmem:[#allocation2] sm:$0xff] %vm839, 0.0
        %vm841 = vcmask 519168
        %842 = vst.msk [vmem:[#allocation2 + $0x8] sm:$0xf] %vm841, 0.0
        %843 = vst.msk [vmem:[#allocation2 + $0x10] sm:$0xff] %vm839, 0.0
        %844 = vst.msk [vmem:[#allocation2 + $0x18] sm:$0xf] %vm841, 0.0
        %845 = vst.msk [vmem:[#allocation2 + $0x20] sm:$0xff] %vm839, 0.0
        %846 = vst.msk [vmem:[#allocation2 + $0x28] sm:$0xf] %vm841, 0.0
        %847 = vst.msk [vmem:[#allocation2 + $0x30] sm:$0xff] %vm839, 0.0
        %848 = vst.msk [vmem:[#allocation2 + $0x38] sm:$0xf] %vm841, 0.0
        %849 = vst.msk [vmem:[#allocation2 + $0x40] sm:$0xff] %vm839, 0.0
        %850 = vst.msk [vmem:[#allocation2 + $0x48] sm:$0xf] %vm841, 0.0
        %851 = vst.msk [vmem:[#allocation2 + $0x50] sm:$0xff] %vm839, 0.0
        %852 = vst.msk [vmem:[#allocation2 + $0x58] sm:$0xf] %vm841, 0.0
        %853 = vst.msk [vmem:[#allocation2 + $0x60] sm:$0xff] %vm839, 0.0
        %854 = vst.msk [vmem:[#allocation2 + $0x68] sm:$0xf] %vm841, 0.0
        %855 = vst.msk [vmem:[#allocation2 + $0x70] sm:$0xff] %vm839, 0.0
        %856 = vst.msk [vmem:[#allocation2 + $0x78] sm:$0xf] %vm841, 0.0
        %857 = vst.msk [vmem:[#allocation2 + $0x80] sm:$0xff] %vm839, 0.0
        %858 = vst.msk [vmem:[#allocation2 + $0x88] sm:$0xf] %vm841, 0.0
        %859 = vst.msk [vmem:[#allocation2 + $0x90] sm:$0xff] %vm839, 0.0
        %860 = vst.msk [vmem:[#allocation2 + $0x98] sm:$0xf] %vm841, 0.0
        %861 = vst.msk [vmem:[#allocation2 + $0xa0] sm:$0xff] %vm839, 0.0
        %862 = vst.msk [vmem:[#allocation2 + $0xa8] sm:$0xf] %vm841, 0.0
        %863 = vst.msk [vmem:[#allocation2 + $0xb0] sm:$0xff] %vm839, 0.0
        %864 = vst.msk [vmem:[#allocation2 + $0xb8] sm:$0xf] %vm841, 0.0
        %865 = vst.msk [vmem:[#allocation2 + $0xc0] sm:$0xff] %vm839, 0.0
        %866 = vst.msk [vmem:[#allocation2 + $0xc8] sm:$0xf] %vm841, 0.0
        %867 = vst.msk [vmem:[#allocation2 + $0xd0] sm:$0xff] %vm839, 0.0
        %868 = vst.msk [vmem:[#allocation2 + $0xd8] sm:$0xf] %vm841, 0.0
        %869 = vst.msk [vmem:[#allocation2 + $0xe0] sm:$0xff] %vm839, 0.0
        %870 = vst.msk [vmem:[#allocation2 + $0xe8] sm:$0xf] %vm841, 0.0
        %871 = vst.msk [vmem:[#allocation2 + $0xf0] sm:$0xff] %vm839, 0.0
        %872 = vst.msk [vmem:[#allocation2 + $0xf8] sm:$0xf] %vm841, 0.0
        %s873 = scalar_lea.vmem [#allocation2], 16
        %874 = vst.msk [vmem:[%s873 + $0x1] sm:$0xff] %vm839, %v821
        %vm875 = vcmask 517120
        %876 = vst.msk [vmem:[%s873 + $0x9] sm:$0x3] %vm875, %v822
        %s877 = scalar_lea.vmem [#allocation2], 32
        %vm878 = vcmask 523266
        %879 = vst.msk [vmem:[%s877 - $0x1] sm:$0xfc] %vm878, %v822
        %880 = vst.msk [vmem:[%s877 + $0x7] sm:$0xf] %vm841, %v823
        %s881 = scalar_lea.vmem [#allocation2], 48
        %vm882 = vcmask 523268
        %883 = vst.msk [vmem:[%s881 - $0x3] sm:$0xf0] %vm882, %v823
        %vm884 = vcmask 521216
        %885 = vst.msk [vmem:[%s881 + $0x5] sm:$0x3f] %vm884, %v824
        %s886 = scalar_lea.vmem [#allocation2], 64
        %vm887 = vcmask 523270
        %888 = vst.msk [vmem:[%s886 - $0x5] sm:$0xc0] %vm887, %v824
        %889 = vst.msk [vmem:[%s886 + $0x3] sm:$0xff] %vm839, %v825
        %s890 = scalar_lea.vmem [#allocation2], 80
        %891 = vst.msk [vmem:[%s890 + $0x1] sm:$0xff] %vm839, %v826
        %892 = vst.msk [vmem:[%s890 + $0x9] sm:$0x3] %vm875, %v827
        %s893 = scalar_lea.vmem [#allocation2], 96
        %894 = vst.msk [vmem:[%s893 - $0x1] sm:$0xfc] %vm878, %v827
        %895 = vst.msk [vmem:[%s893 + $0x7] sm:$0xf] %vm841, %v828
        %s896 = scalar_lea.vmem [#allocation2], 112
        %897 = vst.msk [vmem:[%s896 - $0x3] sm:$0xf0] %vm882, %v828
        %898 = vst.msk [vmem:[%s896 + $0x5] sm:$0x3f] %vm884, %v829
        %s899 = scalar_lea.vmem [#allocation2], 128
        %900 = vst.msk [vmem:[%s899 - $0x5] sm:$0xc0] %vm887, %v829
        %901 = vst.msk [vmem:[%s899 + $0x3] sm:$0xff] %vm839, %v830
        %s902 = scalar_lea.vmem [#allocation2], 144
        %903 = vst.msk [vmem:[%s902 + $0x1] sm:$0xff] %vm839, %v831
        %904 = vst.msk [vmem:[%s902 + $0x9] sm:$0x3] %vm875, %v832
        %s905 = scalar_lea.vmem [#allocation2], 160
        %906 = vst.msk [vmem:[%s905 - $0x1] sm:$0xfc] %vm878, %v832
        %907 = vst.msk [vmem:[%s905 + $0x7] sm:$0xf] %vm841, %v833
        %s908 = scalar_lea.vmem [#allocation2], 176
        %909 = vst.msk [vmem:[%s908 - $0x3] sm:$0xf0] %vm882, %v833
        %910 = vst.msk [vmem:[%s908 + $0x5] sm:$0x3f] %vm884, %v834
        %s911 = scalar_lea.vmem [#allocation2], 192
        %912 = vst.msk [vmem:[%s911 - $0x5] sm:$0xc0] %vm887, %v834
        %913 = vst.msk [vmem:[%s911 + $0x3] sm:$0xff] %vm839, %v835
        %s914 = scalar_lea.vmem [#allocation2], 208
        %915 = vst.msk [vmem:[%s914 + $0x1] sm:$0xff] %vm839, %v836
        %916 = vst.msk [vmem:[%s914 + $0x9] sm:$0x3] %vm875, %v837
        %s917 = scalar_lea.vmem [#allocation2], 224
        %918 = vst.msk [vmem:[%s917 - $0x1] sm:$0xfc] %vm878, %v837
        %919 = vst.msk [vmem:[%s917 + $0x7] sm:$0xf] %vm841, %v838
        %v920 = vld [vmem:[#allocation2] sm:$0xff]
        %v921 = vld [vmem:[#allocation2 + $0x8] sm:$0xf]
        %v922 = vld [vmem:[#allocation2 + $0x10] sm:$0xff]
        %v923 = vld [vmem:[#allocation2 + $0x18] sm:$0xf]
        %v924 = vld [vmem:[#allocation2 + $0x20] sm:$0xff]
        %v925 = vld [vmem:[#allocation2 + $0x28] sm:$0xf]
        %v926 = vld [vmem:[#allocation2 + $0x30] sm:$0xff]
        %v927 = vld [vmem:[#allocation2 + $0x38] sm:$0xf]
        %v928 = vld [vmem:[#allocation2 + $0x40] sm:$0xff]
        %v929 = vld [vmem:[#allocation2 + $0x48] sm:$0xf]
        %v930 = vld [vmem:[#allocation2 + $0x50] sm:$0xff]
        %v931 = vld [vmem:[#allocation2 + $0x58] sm:$0xf]
        %v932 = vld [vmem:[#allocation2 + $0x60] sm:$0xff]
        %v933 = vld [vmem:[#allocation2 + $0x68] sm:$0xf]
        %v934 = vld [vmem:[#allocation2 + $0x70] sm:$0xff]
        %v935 = vld [vmem:[#allocation2 + $0x78] sm:$0xf]
        %v936 = vld [vmem:[#allocation2 + $0x80] sm:$0xff]
        %v937 = vld [vmem:[#allocation2 + $0x88] sm:$0xf]
        %v938 = vld [vmem:[#allocation2 + $0x90] sm:$0xff]
        %v939 = vld [vmem:[#allocation2 + $0x98] sm:$0xf]
        %v940 = vld [vmem:[#allocation2 + $0xa0] sm:$0xff]
        %v941 = vld [vmem:[#allocation2 + $0xa8] sm:$0xf]
        %v942 = vld [vmem:[#allocation2 + $0xb0] sm:$0xff]
        %v943 = vld [vmem:[#allocation2 + $0xb8] sm:$0xf]
        %v944 = vld [vmem:[#allocation2 + $0xc0] sm:$0xff]
        %v945 = vld [vmem:[#allocation2 + $0xc8] sm:$0xf]
        %v946 = vld [vmem:[#allocation2 + $0xd0] sm:$0xff]
        %v947 = vld [vmem:[#allocation2 + $0xd8] sm:$0xf]
        %v948 = vld [vmem:[#allocation2 + $0xe0] sm:$0xff]
        %v949 = vld [vmem:[#allocation2 + $0xe8] sm:$0xf]
        %v965 = vrot.slane %v920, 1
        %v966 = vrot.slane %v922, 1
        %v967 = vrot.slane %v924, 1
        %v968 = vrot.slane %v926, 1
        %v969 = vrot.slane %v928, 1
        %v970 = vrot.slane %v930, 1
        %v971 = vrot.slane %v932, 1
        %v972 = vrot.slane %v934, 1
        %v973 = vrot.slane %v936, 1
        %v974 = vrot.slane %v938, 1
        %v975 = vrot.slane %v940, 1
        %v976 = vrot.slane %v942, 1
        %v977 = vrot.slane %v944, 1
        %v978 = vrot.slane %v946, 1
        %v979 = vrot.slane %v948, 1
        %v995 = vrot.slane %v920, 2
        %v996 = vrot.slane %v922, 2
        %v997 = vrot.slane %v924, 2
        %v998 = vrot.slane %v926, 2
        %v999 = vrot.slane %v928, 2
        %v1000 = vrot.slane %v930, 2
        %v1001 = vrot.slane %v932, 2
        %v1002 = vrot.slane %v934, 2
        %v1003 = vrot.slane %v936, 2
        %v1004 = vrot.slane %v938, 2
        %v1005 = vrot.slane %v940, 2
        %v1006 = vrot.slane %v942, 2
        %v1007 = vrot.slane %v944, 2
        %v1008 = vrot.slane %v946, 2
        %v1009 = vrot.slane %v948, 2
        %v1025 = vrot.slane %v920, 3
        %v1026 = vrot.slane %v922, 3
        %v1027 = vrot.slane %v924, 3
        %v1028 = vrot.slane %v926, 3
        %v1029 = vrot.slane %v928, 3
        %v1030 = vrot.slane %v930, 3
        %v1031 = vrot.slane %v932, 3
        %v1032 = vrot.slane %v934, 3
        %v1033 = vrot.slane %v936, 3
        %v1034 = vrot.slane %v938, 3
        %v1035 = vrot.slane %v940, 3
        %v1036 = vrot.slane %v942, 3
        %v1037 = vrot.slane %v944, 3
        %v1038 = vrot.slane %v946, 3
        %v1039 = vrot.slane %v948, 3
        %v1070 = vrot.slane %v921, 4
        %v1071 = vrot.slane %v923, 4
        %v1072 = vrot.slane %v925, 4
        %v1073 = vrot.slane %v927, 4
        %v1074 = vrot.slane %v929, 4
        %v1075 = vrot.slane %v931, 4
        %v1076 = vrot.slane %v933, 4
        %v1077 = vrot.slane %v935, 4
        %v1078 = vrot.slane %v937, 4
        %v1079 = vrot.slane %v939, 4
        %v1080 = vrot.slane %v941, 4
        %v1081 = vrot.slane %v943, 4
        %v1082 = vrot.slane %v945, 4
        %v1083 = vrot.slane %v947, 4
        %v1084 = vrot.slane %v949, 4
        %v1100 = vsel %vm626, %v920, %v965
        %v1101 = vsel %vm626, %v922, %v966
        %v1102 = vsel %vm626, %v924, %v967
        %v1103 = vsel %vm626, %v926, %v968
        %v1104 = vsel %vm626, %v928, %v969
        %v1105 = vsel %vm626, %v930, %v970
        %v1106 = vsel %vm626, %v932, %v971
        %v1107 = vsel %vm626, %v934, %v972
        %v1108 = vsel %vm626, %v936, %v973
        %v1109 = vsel %vm626, %v938, %v974
        %v1110 = vsel %vm626, %v940, %v975
        %v1111 = vsel %vm626, %v942, %v976
        %v1112 = vsel %vm626, %v944, %v977
        %v1113 = vsel %vm626, %v946, %v978
        %v1114 = vsel %vm626, %v948, %v979
        %vm1115 = vcmask 1041408
        %v1116 = vsel %vm1115, %v1100, %v995
        %v1117 = vsel %vm1115, %v1101, %v996
        %v1118 = vsel %vm1115, %v1102, %v997
        %v1119 = vsel %vm1115, %v1103, %v998
        %v1120 = vsel %vm1115, %v1104, %v999
        %v1121 = vsel %vm1115, %v1105, %v1000
        %v1122 = vsel %vm1115, %v1106, %v1001
        %v1123 = vsel %vm1115, %v1107, %v1002
        %v1124 = vsel %vm1115, %v1108, %v1003
        %v1125 = vsel %vm1115, %v1109, %v1004
        %v1126 = vsel %vm1115, %v1110, %v1005
        %v1127 = vsel %vm1115, %v1111, %v1006
        %v1128 = vsel %vm1115, %v1112, %v1007
        %v1129 = vsel %vm1115, %v1113, %v1008
        %v1130 = vsel %vm1115, %v1114, %v1009
        %vm1131 = vcmask 1042432
        %v1132 = vsel %vm1131, %v1116, %v1025
        %v1133 = vsel %vm1131, %v1117, %v1026
        %v1134 = vsel %vm1131, %v1118, %v1027
        %v1135 = vsel %vm1131, %v1119, %v1028
        %v1136 = vsel %vm1131, %v1120, %v1029
        %v1137 = vsel %vm1131, %v1121, %v1030
        %v1138 = vsel %vm1131, %v1122, %v1031
        %v1139 = vsel %vm1131, %v1123, %v1032
        %v1140 = vsel %vm1131, %v1124, %v1033
        %v1141 = vsel %vm1131, %v1125, %v1034
        %v1142 = vsel %vm1131, %v1126, %v1035
        %v1143 = vsel %vm1131, %v1127, %v1036
        %v1144 = vsel %vm1131, %v1128, %v1037
        %v1145 = vsel %vm1131, %v1129, %v1038
        %v1146 = vsel %vm1131, %v1130, %v1039
        %vm1147 = vcmask 1043456
        %v1148 = vsel %vm1147, %v1132, %v1070
        %v1149 = vsel %vm1147, %v1133, %v1071
        %v1150 = vsel %vm1147, %v1134, %v1072
        %v1151 = vsel %vm1147, %v1135, %v1073
        %v1152 = vsel %vm1147, %v1136, %v1074
        %v1153 = vsel %vm1147, %v1137, %v1075
        %v1154 = vsel %vm1147, %v1138, %v1076
        %v1155 = vsel %vm1147, %v1139, %v1077
        %v1156 = vsel %vm1147, %v1140, %v1078
        %v1157 = vsel %vm1147, %v1141, %v1079
        %v1158 = vsel %vm1147, %v1142, %v1080
        %v1159 = vsel %vm1147, %v1143, %v1081
        %v1160 = vsel %vm1147, %v1144, %v1082
        %v1161 = vsel %vm1147, %v1145, %v1083
        %v1162 = vsel %vm1147, %v1146, %v1084
        %v1163 = vrot.slane %v920, 4
        %v1164 = vrot.slane %v922, 4
        %v1165 = vrot.slane %v924, 4
        %v1166 = vrot.slane %v926, 4
        %v1167 = vrot.slane %v928, 4
        %v1168 = vrot.slane %v930, 4
        %v1169 = vrot.slane %v932, 4
        %v1170 = vrot.slane %v934, 4
        %v1171 = vrot.slane %v936, 4
        %v1172 = vrot.slane %v938, 4
        %v1173 = vrot.slane %v940, 4
        %v1174 = vrot.slane %v942, 4
        %v1175 = vrot.slane %v944, 4
        %v1176 = vrot.slane %v946, 4
        %v1177 = vrot.slane %v948, 4
        %v1193 = vrot.slane %v921, 5
        %v1194 = vrot.slane %v923, 5
        %v1195 = vrot.slane %v925, 5
        %v1196 = vrot.slane %v927, 5
        %v1197 = vrot.slane %v929, 5
        %v1198 = vrot.slane %v931, 5
        %v1199 = vrot.slane %v933, 5
        %v1200 = vrot.slane %v935, 5
        %v1201 = vrot.slane %v937, 5
        %v1202 = vrot.slane %v939, 5
        %v1203 = vrot.slane %v941, 5
        %v1204 = vrot.slane %v943, 5
        %v1205 = vrot.slane %v945, 5
        %v1206 = vrot.slane %v947, 5
        %v1207 = vrot.slane %v949, 5
        %v1223 = vsel %vm626, %v965, %v995
        %v1224 = vsel %vm626, %v966, %v996
        %v1225 = vsel %vm626, %v967, %v997
        %v1226 = vsel %vm626, %v968, %v998
        %v1227 = vsel %vm626, %v969, %v999
        %v1228 = vsel %vm626, %v970, %v1000
        %v1229 = vsel %vm626, %v971, %v1001
        %v1230 = vsel %vm626, %v972, %v1002
        %v1231 = vsel %vm626, %v973, %v1003
        %v1232 = vsel %vm626, %v974, %v1004
        %v1233 = vsel %vm626, %v975, %v1005
        %v1234 = vsel %vm626, %v976, %v1006
        %v1235 = vsel %vm626, %v977, %v1007
        %v1236 = vsel %vm626, %v978, %v1008
        %v1237 = vsel %vm626, %v979, %v1009
        %v1238 = vsel %vm1115, %v1223, %v1025
        %v1239 = vsel %vm1115, %v1224, %v1026
        %v1240 = vsel %vm1115, %v1225, %v1027
        %v1241 = vsel %vm1115, %v1226, %v1028
        %v1242 = vsel %vm1115, %v1227, %v1029
        %v1243 = vsel %vm1115, %v1228, %v1030
        %v1244 = vsel %vm1115, %v1229, %v1031
        %v1245 = vsel %vm1115, %v1230, %v1032
        %v1246 = vsel %vm1115, %v1231, %v1033
        %v1247 = vsel %vm1115, %v1232, %v1034
        %v1248 = vsel %vm1115, %v1233, %v1035
        %v1249 = vsel %vm1115, %v1234, %v1036
        %v1250 = vsel %vm1115, %v1235, %v1037
        %v1251 = vsel %vm1115, %v1236, %v1038
        %v1252 = vsel %vm1115, %v1237, %v1039
        %v1253 = vsel %vm1131, %v1238, %v1163
        %v1254 = vsel %vm1131, %v1239, %v1164
        %v1255 = vsel %vm1131, %v1240, %v1165
        %v1256 = vsel %vm1131, %v1241, %v1166
        %v1257 = vsel %vm1131, %v1242, %v1167
        %v1258 = vsel %vm1131, %v1243, %v1168
        %v1259 = vsel %vm1131, %v1244, %v1169
        %v1260 = vsel %vm1131, %v1245, %v1170
        %v1261 = vsel %vm1131, %v1246, %v1171
        %v1262 = vsel %vm1131, %v1247, %v1172
        %v1263 = vsel %vm1131, %v1248, %v1173
        %v1264 = vsel %vm1131, %v1249, %v1174
        %v1265 = vsel %vm1131, %v1250, %v1175
        %v1266 = vsel %vm1131, %v1251, %v1176
        %v1267 = vsel %vm1131, %v1252, %v1177
        %v1268 = vsel %vm1147, %v1253, %v1193
        %v1269 = vsel %vm1147, %v1254, %v1194
        %v1270 = vsel %vm1147, %v1255, %v1195
        %v1271 = vsel %vm1147, %v1256, %v1196
        %v1272 = vsel %vm1147, %v1257, %v1197
        %v1273 = vsel %vm1147, %v1258, %v1198
        %v1274 = vsel %vm1147, %v1259, %v1199
        %v1275 = vsel %vm1147, %v1260, %v1200
        %v1276 = vsel %vm1147, %v1261, %v1201
        %v1277 = vsel %vm1147, %v1262, %v1202
        %v1278 = vsel %vm1147, %v1263, %v1203
        %v1279 = vsel %vm1147, %v1264, %v1204
        %v1280 = vsel %vm1147, %v1265, %v1205
        %v1281 = vsel %vm1147, %v1266, %v1206
        %v1282 = vsel %vm1147, %v1267, %v1207
        %v1283 = vrot.slane %v921, 6
        %v1284 = vrot.slane %v923, 6
        %v1285 = vrot.slane %v925, 6
        %v1286 = vrot.slane %v927, 6
        %v1287 = vrot.slane %v929, 6
        %v1288 = vrot.slane %v931, 6
        %v1289 = vrot.slane %v933, 6
        %v1290 = vrot.slane %v935, 6
        %v1291 = vrot.slane %v937, 6
        %v1292 = vrot.slane %v939, 6
        %v1293 = vrot.slane %v941, 6
        %v1294 = vrot.slane %v943, 6
        %v1295 = vrot.slane %v945, 6
        %v1296 = vrot.slane %v947, 6
        %v1297 = vrot.slane %v949, 6
        %v1313 = vsel %vm626, %v995, %v1025
        %v1314 = vsel %vm626, %v996, %v1026
        %v1315 = vsel %vm626, %v997, %v1027
        %v1316 = vsel %vm626, %v998, %v1028
        %v1317 = vsel %vm626, %v999, %v1029
        %v1318 = vsel %vm626, %v1000, %v1030
        %v1319 = vsel %vm626, %v1001, %v1031
        %v1320 = vsel %vm626, %v1002, %v1032
        %v1321 = vsel %vm626, %v1003, %v1033
        %v1322 = vsel %vm626, %v1004, %v1034
        %v1323 = vsel %vm626, %v1005, %v1035
        %v1324 = vsel %vm626, %v1006, %v1036
        %v1325 = vsel %vm626, %v1007, %v1037
        %v1326 = vsel %vm626, %v1008, %v1038
        %v1327 = vsel %vm626, %v1009, %v1039
        %v1328 = vsel %vm1115, %v1313, %v1163
        %v1329 = vsel %vm1115, %v1314, %v1164
        %v1330 = vsel %vm1115, %v1315, %v1165
        %v1331 = vsel %vm1115, %v1316, %v1166
        %v1332 = vsel %vm1115, %v1317, %v1167
        %v1333 = vsel %vm1115, %v1318, %v1168
        %v1334 = vsel %vm1115, %v1319, %v1169
        %v1335 = vsel %vm1115, %v1320, %v1170
        %v1336 = vsel %vm1115, %v1321, %v1171
        %v1337 = vsel %vm1115, %v1322, %v1172
        %v1338 = vsel %vm1115, %v1323, %v1173
        %v1339 = vsel %vm1115, %v1324, %v1174
        %v1340 = vsel %vm1115, %v1325, %v1175
        %v1341 = vsel %vm1115, %v1326, %v1176
        %v1342 = vsel %vm1115, %v1327, %v1177
        %v1343 = vsel %vm1131, %v1328, %v1193
        %v1344 = vsel %vm1131, %v1329, %v1194
        %v1345 = vsel %vm1131, %v1330, %v1195
        %v1346 = vsel %vm1131, %v1331, %v1196
        %v1347 = vsel %vm1131, %v1332, %v1197
        %v1348 = vsel %vm1131, %v1333, %v1198
        %v1349 = vsel %vm1131, %v1334, %v1199
        %v1350 = vsel %vm1131, %v1335, %v1200
        %v1351 = vsel %vm1131, %v1336, %v1201
        %v1352 = vsel %vm1131, %v1337, %v1202
        %v1353 = vsel %vm1131, %v1338, %v1203
        %v1354 = vsel %vm1131, %v1339, %v1204
        %v1355 = vsel %vm1131, %v1340, %v1205
        %v1356 = vsel %vm1131, %v1341, %v1206
        %v1357 = vsel %vm1131, %v1342, %v1207
        %v1358 = vsel %vm1147, %v1343, %v1283
        %v1359 = vsel %vm1147, %v1344, %v1284
        %v1360 = vsel %vm1147, %v1345, %v1285
        %v1361 = vsel %vm1147, %v1346, %v1286
        %v1362 = vsel %vm1147, %v1347, %v1287
        %v1363 = vsel %vm1147, %v1348, %v1288
        %v1364 = vsel %vm1147, %v1349, %v1289
        %v1365 = vsel %vm1147, %v1350, %v1290
        %v1366 = vsel %vm1147, %v1351, %v1291
        %v1367 = vsel %vm1147, %v1352, %v1292
        %v1368 = vsel %vm1147, %v1353, %v1293
        %v1369 = vsel %vm1147, %v1354, %v1294
        %v1370 = vsel %vm1147, %v1355, %v1295
        %v1371 = vsel %vm1147, %v1356, %v1296
        %v1372 = vsel %vm1147, %v1357, %v1297
        %1374 = vrot.lane.b32.xlu0 %v1268, 64
        %v1375 = vpop.permute.xlu0 %1374
        %1378 = vrot.lane.b32.xlu0 %v1149, 64
        %v1379 = vpop.permute.xlu0 %1378
        %1382 = vrot.lane.b32.xlu0 %v1359, 64
        %v1383 = vpop.permute.xlu0 %1382
        %1386 = vrot.lane.b32.xlu0 %v1270, 64
        %v1387 = vpop.permute.xlu0 %1386
        %v1389 = vsel %vm839, %v1148, %v1375
        %v1390 = vsel %vm839, %v1358, %v1379
        %v1391 = vsel %vm839, %v1269, %v1383
        %v1392 = vsel %vm839, %v1150, %v1387
        %1394 = vrot.lane.b32.xlu0 %v1151, 64
        %v1395 = vpop.permute.xlu0 %1394
        %1398 = vrot.lane.b32.xlu0 %v1361, 64
        %v1399 = vpop.permute.xlu0 %1398
        %1402 = vrot.lane.b32.xlu0 %v1272, 64
        %v1403 = vpop.permute.xlu0 %1402
        %v1405 = vsel %vm839, %v1360, %v1395
        %v1406 = vsel %vm839, %v1271, %v1399
        %v1407 = vsel %vm839, %v1152, %v1403
        %1409 = vrot.lane.b32.xlu0 %v1153, 64
        %v1410 = vpop.permute.xlu0 %1409
        %1413 = vrot.lane.b32.xlu0 %v1363, 64
        %v1414 = vpop.permute.xlu0 %1413
        %1417 = vrot.lane.b32.xlu0 %v1274, 64
        %v1418 = vpop.permute.xlu0 %1417
        %v1420 = vsel %vm839, %v1362, %v1410
        %v1421 = vsel %vm839, %v1273, %v1414
        %v1422 = vsel %vm839, %v1154, %v1418
        %1424 = vrot.lane.b32.xlu0 %v1155, 64
        %v1425 = vpop.permute.xlu0 %1424
        %1428 = vrot.lane.b32.xlu0 %v1365, 64
        %v1429 = vpop.permute.xlu0 %1428
        %1432 = vrot.lane.b32.xlu0 %v1276, 64
        %v1433 = vpop.permute.xlu0 %1432
        %v1435 = vsel %vm839, %v1364, %v1425
        %v1436 = vsel %vm839, %v1275, %v1429
        %v1437 = vsel %vm839, %v1156, %v1433
        %1439 = vrot.lane.b32.xlu0 %v1157, 64
        %v1440 = vpop.permute.xlu0 %1439
        %1443 = vrot.lane.b32.xlu0 %v1367, 64
        %v1444 = vpop.permute.xlu0 %1443
        %1447 = vrot.lane.b32.xlu0 %v1278, 64
        %v1448 = vpop.permute.xlu0 %1447
        %v1450 = vsel %vm839, %v1366, %v1440
        %v1451 = vsel %vm839, %v1277, %v1444
        %v1452 = vsel %vm839, %v1158, %v1448
        %1454 = vrot.lane.b32.xlu0 %v1159, 64
        %v1455 = vpop.permute.xlu0 %1454
        %1458 = vrot.lane.b32.xlu0 %v1369, 64
        %v1459 = vpop.permute.xlu0 %1458
        %1462 = vrot.lane.b32.xlu0 %v1280, 64
        %v1463 = vpop.permute.xlu0 %1462
        %v1465 = vsel %vm839, %v1368, %v1455
        %v1466 = vsel %vm839, %v1279, %v1459
        %v1467 = vsel %vm839, %v1160, %v1463
        %1469 = vrot.lane.b32.xlu0 %v1161, 64
        %v1470 = vpop.permute.xlu0 %1469
        %1473 = vrot.lane.b32.xlu0 %v1371, 64
        %v1474 = vpop.permute.xlu0 %1473
        %1477 = vrot.lane.b32.xlu0 %v1282, 64
        %v1478 = vpop.permute.xlu0 %1477
        %v1480 = vsel %vm839, %v1370, %v1470
        %v1481 = vsel %vm839, %v1281, %v1474
        %v1482 = vsel %vm839, %v1162, %v1478
        %v1488 = vrot.slane %v1392, 3
        %v1489 = vrot.slane %v1405, 3
        %v1490 = vrot.slane %v1406, 3
        %v1491 = vrot.slane %v1407, 3
        %v1492 = vrot.slane %v1362, 3
        %v1502 = vrot.slane %v1407, 6
        %v1503 = vrot.slane %v1420, 6
        %v1504 = vrot.slane %v1421, 6
        %v1505 = vrot.slane %v1422, 6
        %v1506 = vrot.slane %v1364, 6
        %v1516 = vrot.slane %v1422, 1
        %v1517 = vrot.slane %v1435, 1
        %v1518 = vrot.slane %v1436, 1
        %v1519 = vrot.slane %v1437, 1
        %v1520 = vrot.slane %v1366, 1
        %v1530 = vrot.slane %v1437, 4
        %v1531 = vrot.slane %v1450, 4
        %v1532 = vrot.slane %v1451, 4
        %v1533 = vrot.slane %v1452, 4
        %v1534 = vrot.slane %v1368, 4
        %v1544 = vrot.slane %v1452, 7
        %v1545 = vrot.slane %v1465, 7
        %v1546 = vrot.slane %v1466, 7
        %v1547 = vrot.slane %v1467, 7
        %v1548 = vrot.slane %v1370, 7
        %v1558 = vrot.slane %v1467, 2
        %v1559 = vrot.slane %v1480, 2
        %v1560 = vrot.slane %v1481, 2
        %v1561 = vrot.slane %v1482, 2
        %v1562 = vrot.slane %v1372, 2
        %vm1568 = vcmask 1044480
        %v1569 = vsel %vm1568, %v1389, %v1488
        %v1570 = vsel %vm1568, %v1390, %v1489
        %v1571 = vsel %vm1568, %v1391, %v1490
        %v1572 = vsel %vm1568, %v1392, %v1491
        %v1573 = vsel %vm1568, %v1360, %v1492
        %v1574 = vsel %vm1115, %v1488, %v1502
        %v1575 = vsel %vm1115, %v1489, %v1503
        %v1576 = vsel %vm1115, %v1490, %v1504
        %v1577 = vsel %vm1115, %v1491, %v1505
        %v1578 = vsel %vm1115, %v1492, %v1506
        %vm1579 = vcmask 1046528
        %v1580 = vsel %vm1579, %v1574, %v1516
        %v1581 = vsel %vm1579, %v1575, %v1517
        %v1582 = vsel %vm1579, %v1576, %v1518
        %v1583 = vsel %vm1579, %v1577, %v1519
        %v1584 = vsel %vm1579, %v1578, %v1520
        %v1585 = vsel %vm1147, %v1516, %v1530
        %v1586 = vsel %vm1147, %v1517, %v1531
        %v1587 = vsel %vm1147, %v1518, %v1532
        %v1588 = vsel %vm1147, %v1519, %v1533
        %v1589 = vsel %vm1147, %v1520, %v1534
        %v1590 = vsel %vm626, %v1530, %v1544
        %v1591 = vsel %vm626, %v1531, %v1545
        %v1592 = vsel %vm626, %v1532, %v1546
        %v1593 = vsel %vm626, %v1533, %v1547
        %v1594 = vsel %vm626, %v1534, %v1548
        %vm1595 = vcmask 1045504
        %v1596 = vsel %vm1595, %v1590, %v1558
        %v1597 = vsel %vm1595, %v1591, %v1559
        %v1598 = vsel %vm1595, %v1592, %v1560
        %v1599 = vsel %vm1595, %v1593, %v1561
        %v1600 = vsel %vm1595, %v1594, %v1562
        %v1601 = vld [vmem:[#allocation9] sm:$0xff]
        %v1602 = vld [vmem:[#allocation9 + $0x8] sm:$0xff]
        %v1603 = vld [vmem:[#allocation9 + $0x10] sm:$0xff]
        %v1604 = vld [vmem:[#allocation9 + $0x18] sm:$0xff]
        %v1605 = vld [vmem:[#allocation9 + $0x20] sm:$0xff]
        %v1606 = vld [vmem:[#allocation9 + $0x28] sm:$0xff]
        %v1607 = vld [vmem:[#allocation9 + $0x30] sm:$0xff]
        %v1608 = vld [vmem:[#allocation9 + $0x38] sm:$0xff]
        %v1609 = vld [vmem:[#allocation9 + $0x40] sm:$0xff]
        %v1610 = vld [vmem:[#allocation9 + $0x48] sm:$0xff]
        %v1611 = vld [vmem:[#allocation9 + $0x50] sm:$0xff]
        %v1612 = vld [vmem:[#allocation9 + $0x58] sm:$0xff]
        %v1613 = vld [vmem:[#allocation9 + $0x60] sm:$0xff]
        %v1614 = vld [vmem:[#allocation9 + $0x68] sm:$0xff]
        %v1615 = vld [vmem:[#allocation9 + $0x70] sm:$0xff]
        %v1616 = vld [vmem:[#allocation9 + $0x78] sm:$0xff]
        %v1617 = vld [vmem:[#allocation9 + $0x80] sm:$0xff]
        %v1618 = vld [vmem:[#allocation9 + $0x88] sm:$0xff]
        %v1619 = vld [vmem:[#allocation9 + $0x90] sm:$0xff]
        %v1620 = vld [vmem:[#allocation9 + $0x98] sm:$0xff]
        %v1621 = vld [vmem:[#allocation9 + $0xa0] sm:$0xff]
        %v1622 = vld [vmem:[#allocation9 + $0xa8] sm:$0xff]
        %v1623 = vld [vmem:[#allocation9 + $0xb0] sm:$0xff]
        %v1624 = vld [vmem:[#allocation9 + $0xb8] sm:$0xff]
        %v1625 = vld [vmem:[#allocation9 + $0xc0] sm:$0xff]
        %v1626 = vld [vmem:[#allocation9 + $0xc8] sm:$0xff]
        %v1627 = vld [vmem:[#allocation9 + $0xd0] sm:$0xff]
        %v1628 = vld [vmem:[#allocation9 + $0xd8] sm:$0xff]
        %v1629 = vld [vmem:[#allocation9 + $0xe0] sm:$0xff]
        %v1630 = vld [vmem:[#allocation9 + $0xe8] sm:$0xff]
        %v1631 = vld [vmem:[#allocation9 + $0xf0] sm:$0xff]
        %v1632 = vld [vmem:[#allocation9 + $0xf8] sm:$0xff]
        %v1633 = vld [vmem:[#allocation9 + $0x100] sm:$0xff]
        %v1634 = vld [vmem:[#allocation9 + $0x108] sm:$0xff]
        %v1635 = vld [vmem:[#allocation9 + $0x110] sm:$0xff]
        %v1636 = vld [vmem:[#allocation9 + $0x118] sm:$0xff]
        %v1637 = vld [vmem:[#allocation9 + $0x120] sm:$0xff]
        %v1638 = vld [vmem:[#allocation9 + $0x128] sm:$0xff]
        %v1639 = vld [vmem:[#allocation9 + $0x130] sm:$0xff]
        %v1640 = vld [vmem:[#allocation9 + $0x138] sm:$0xff]
        %v1641 = vld [vmem:[#allocation9 + $0x140] sm:$0xff]
        %v1642 = vld [vmem:[#allocation9 + $0x148] sm:$0xff]
        %v1643 = vld [vmem:[#allocation9 + $0x150] sm:$0xff]
        %v1644 = vld [vmem:[#allocation9 + $0x158] sm:$0xff]
        %v1645 = vld [vmem:[#allocation9 + $0x160] sm:$0xff]
        %v1646 = vld [vmem:[#allocation9 + $0x168] sm:$0xff]
        %v1647 = vld [vmem:[#allocation9 + $0x170] sm:$0xff]
        %v1648 = vld [vmem:[#allocation9 + $0x178] sm:$0xff]
        %v1649 = vld [vmem:[#allocation9 + $0x180] sm:$0xff]
        %v1650 = vld [vmem:[#allocation9 + $0x188] sm:$0xff]
        %v1651 = vld [vmem:[#allocation9 + $0x190] sm:$0xff]
        %v1652 = vld [vmem:[#allocation9 + $0x198] sm:$0xff]
        %v1653 = vld [vmem:[#allocation9 + $0x1a0] sm:$0xff]
        %v1654 = vld [vmem:[#allocation9 + $0x1a8] sm:$0xff]
        %v1655 = vld [vmem:[#allocation9 + $0x1b0] sm:$0xff]
        %v1656 = vld [vmem:[#allocation9 + $0x1b8] sm:$0xff]
        %v1657 = vld [vmem:[#allocation9 + $0x1c0] sm:$0xff]
        %v1658 = vld [vmem:[#allocation9 + $0x1c8] sm:$0xff]
        %v1659 = vld [vmem:[#allocation9 + $0x1d0] sm:$0xff]
        %v1660 = vld [vmem:[#allocation9 + $0x1d8] sm:$0xff]
        %v1661 = vld [vmem:[#allocation9 + $0x1e0] sm:$0xff]
        %v1662 = vld [vmem:[#allocation9 + $0x1e8] sm:$0xff]
        %v1663 = vld [vmem:[#allocation9 + $0x1f0] sm:$0xff]
        %v1664 = vld [vmem:[#allocation9 + $0x1f8] sm:$0xff]
        %v1665 = vld [vmem:[#allocation9 + $0x200] sm:$0xff]
        %v1666 = vld [vmem:[#allocation9 + $0x208] sm:$0xff]
        %v1667 = vld [vmem:[#allocation9 + $0x210] sm:$0xff]
        %v1668 = vld [vmem:[#allocation9 + $0x218] sm:$0xff]
        %v1669 = vld [vmem:[#allocation9 + $0x220] sm:$0xff]
        %v1670 = vld [vmem:[#allocation9 + $0x228] sm:$0xff]
        %v1671 = vld [vmem:[#allocation9 + $0x230] sm:$0xff]
        %v1672 = vld [vmem:[#allocation9 + $0x238] sm:$0xff]
        %v1674 = vsel %vm839, %v1573, 0
        %v1677 = vsel %vm839, %v1584, 0
        %v1680 = vsel %vm839, %v1589, 0
        %v1683 = vsel %vm839, %v1600, 0
        %v1685 = vsel %vm839, %v1562, 0
        %1687 = vmatprep.subr.mxu0 0.0
        %1688 = vmatpush1.msra.mxu0 %v1601
        %1689 = vmatprep.subr.mxu0 0.0
        %1690 = vmatpush1.msra.mxu0 %v1602
        %1691 = vmatprep.subr.mxu0 0.0
        %1692 = vmatpush1.msra.mxu0 %v1603
        %1693 = vmatprep.subr.mxu0 0.0
        %1694 = vmatpush1.msra.mxu0 %v1604
        %1695 = vmatprep.subr.mxu0 0.0
        %1696 = vmatpush1.msra.mxu0 %v1605
        %1697 = vmatprep.subr.mxu0 0.0
        %1698 = vmatpush1.msra.mxu0 %v1606
        %1699 = vmatprep.subr.mxu0 0.0
        %1700 = vmatpush1.msra.mxu0 %v1607
        %1701 = vmatprep.subr.mxu0 0.0
        %1702 = vmatpush1.msra.mxu0 %v1608
        %1703 = vmatprep.subr.mxu0 0.0
        %1704 = vmatpush1.msra.mxu0 %v1609
        %1705 = vmatprep.subr.mxu0 0.0
        %1706 = vmatpush1.msra.mxu0 %v1610
        %1707 = vmatprep.subr.mxu0 0.0
        %1708 = vmatpush1.msra.mxu0 %v1611
        %1709 = vmatprep.subr.mxu0 0.0
        %1710 = vmatpush1.msra.mxu0 %v1612
        %1711 = vmatprep.subr.mxu0 0.0
        %1712 = vmatpush1.msra.mxu0 %v1613
        %1713 = vmatprep.subr.mxu0 0.0
        %1714 = vmatpush1.msra.mxu0 %v1614
        %1715 = vmatprep.subr.mxu0 0.0
        %1716 = vmatpush1.msra.mxu0 %v1615
        %1717 = vmatprep.subr.mxu0 0.0
        %1718 = vmatpush1.msra.mxu0 %v1616
        %1719 = vmatprep.subr.mxu0 0.0
        %1720 = vmatpush1.msra.mxu0 %v1617
        %1721 = vmatprep.subr.mxu0 0.0
        %1722 = vmatpush1.msra.mxu0 %v1618
        %1723 = vmatprep.subr.mxu0 0.0
        %1724 = vmatpush1.msra.mxu0 %v1619
        %1725 = vmatprep.subr.mxu0 0.0
        %1726 = vmatpush1.msra.mxu0 %v1620
        %1727 = vmatprep.subr.mxu0 0.0
        %1728 = vmatpush1.msra.mxu0 %v1621
        %1729 = vmatprep.subr.mxu0 0.0
        %1730 = vmatpush1.msra.mxu0 %v1622
        %1731 = vmatprep.subr.mxu0 0.0
        %1732 = vmatpush1.msra.mxu0 %v1623
        %1733 = vmatprep.subr.mxu0 0.0
        %1734 = vmatpush1.msra.mxu0 %v1624
        %1735 = vmatprep.subr.mxu0 0.0
        %1736 = vmatpush1.msra.mxu0 %v1625
        %1737 = vmatprep.subr.mxu0 0.0
        %1738 = vmatpush1.msra.mxu0 %v1626
        %1739 = vmatprep.subr.mxu0 0.0
        %1740 = vmatpush1.msra.mxu0 %v1627
        %1741 = vmatprep.subr.mxu0 0.0
        %1742 = vmatpush1.msra.mxu0 %v1628
        %1743 = vmatprep.subr.mxu0 0.0
        %1744 = vmatpush1.msra.mxu0 %v1629
        %1745 = vmatprep.subr.mxu0 0.0
        %1746 = vmatpush1.msra.mxu0 %v1630
        %1747 = vmatprep.subr.mxu0 0.0
        %1748 = vmatpush1.msra.mxu0 %v1631
        %1749 = vmatprep.subr.mxu0 0.0
        %1750 = vmatpush1.msra.mxu0 %v1632
        %1751 = vmatprep.mubr.f32.mxu0 %v1570
        %1752 = vmatmul.mubr.f32.gmra.mrb[0].mxu0 %v1569
        %v1753 = vpop.f32.mrb[0].mxu0
        %v1754 = vadd.f32 0.0, %v1753
        %v1755 = vpop.f32.mrb[0].mxu0
        %1756 = vmatprep.mubr.f32.mxu0 %v1581
        %1757 = vmatmul.mubr.f32.gmra.mrb[0].mxu0 %v1580
        %v1758 = vpop.f32.mrb[0].mxu0
        %v1759 = vadd.f32 0.0, %v1758
        %v1760 = vpop.f32.mrb[0].mxu0
        %1761 = vmatprep.mubr.f32.mxu0 %v1586
        %1762 = vmatmul.mubr.f32.gmra.mrb[0].mxu0 %v1585
        %v1763 = vpop.f32.mrb[0].mxu0
        %v1764 = vadd.f32 0.0, %v1763
        %v1765 = vpop.f32.mrb[0].mxu0
        %1766 = vmatprep.mubr.f32.mxu0 %v1597
        %1767 = vmatmul.mubr.f32.gmra.mrb[0].mxu0 %v1596
        %v1768 = vpop.f32.mrb[0].mxu0
        %v1769 = vadd.f32 0.0, %v1768
        %v1770 = vpop.f32.mrb[0].mxu0
        %1771 = vmatprep.mubr.f32.mxu0 %v1559
        %1772 = vmatmul.mubr.f32.gmra.mrb[0].mxu0 %v1558
        %v1773 = vpop.f32.mrb[0].mxu0
        %v1774 = vadd.f32 0.0, %v1773
        %v1775 = vpop.f32.mrb[0].mxu0
        %1776 = vdwg.mxu0
        %1777 = vmatprep.subr.mxu0 0.0
        %1778 = vmatpush1.msra.mxu0 %v1633
        %1779 = vmatprep.subr.mxu0 0.0
        %1780 = vmatpush1.msra.mxu0 %v1634
        %1781 = vmatprep.subr.mxu0 0.0
        %1782 = vmatpush1.msra.mxu0 %v1635
        %1783 = vmatprep.subr.mxu0 0.0
        %1784 = vmatpush1.msra.mxu0 %v1636
        %1785 = vmatprep.subr.mxu0 0.0
        %1786 = vmatpush1.msra.mxu0 %v1637
        %1787 = vmatprep.subr.mxu0 0.0
        %1788 = vmatpush1.msra.mxu0 %v1638
        %1789 = vmatprep.subr.mxu0 0.0
        %1790 = vmatpush1.msra.mxu0 %v1639
        %1791 = vmatprep.subr.mxu0 0.0
        %1792 = vmatpush1.msra.mxu0 %v1640
        %1793 = vmatprep.subr.mxu0 0.0
        %1794 = vmatpush1.msra.mxu0 %v1641
        %1795 = vmatprep.subr.mxu0 0.0
        %1796 = vmatpush1.msra.mxu0 %v1642
        %1797 = vmatprep.subr.mxu0 0.0
        %1798 = vmatpush1.msra.mxu0 %v1643
        %1799 = vmatprep.subr.mxu0 0.0
        %1800 = vmatpush1.msra.mxu0 %v1644
        %1801 = vmatprep.subr.mxu0 0.0
        %1802 = vmatpush1.msra.mxu0 %v1645
        %1803 = vmatprep.subr.mxu0 0.0
        %1804 = vmatpush1.msra.mxu0 %v1646
        %1805 = vmatprep.subr.mxu0 0.0
        %1806 = vmatpush1.msra.mxu0 %v1647
        %1807 = vmatprep.subr.mxu0 0.0
        %1808 = vmatpush1.msra.mxu0 %v1648
        %1809 = vmatprep.subr.mxu0 0.0
        %1810 = vmatpush1.msra.mxu0 %v1649
        %1811 = vmatprep.subr.mxu0 0.0
        %1812 = vmatpush1.msra.mxu0 %v1650
        %1813 = vmatprep.subr.mxu0 0.0
        %1814 = vmatpush1.msra.mxu0 %v1651
        %1815 = vmatprep.subr.mxu0 0.0
        %1816 = vmatpush1.msra.mxu0 %v1652
        %1817 = vmatprep.subr.mxu0 0.0
        %1818 = vmatpush1.msra.mxu0 %v1653
        %1819 = vmatprep.subr.mxu0 0.0
        %1820 = vmatpush1.msra.mxu0 %v1654
        %1821 = vmatprep.subr.mxu0 0.0
        %1822 = vmatpush1.msra.mxu0 %v1655
        %1823 = vmatprep.subr.mxu0 0.0
        %1824 = vmatpush1.msra.mxu0 %v1656
        %1825 = vmatprep.subr.mxu0 0.0
        %1826 = vmatpush1.msra.mxu0 %v1657
        %1827 = vmatprep.subr.mxu0 0.0
        %1828 = vmatpush1.msra.mxu0 %v1658
        %1829 = vmatprep.subr.mxu0 0.0
        %1830 = vmatpush1.msra.mxu0 %v1659
        %1831 = vmatprep.subr.mxu0 0.0
        %1832 = vmatpush1.msra.mxu0 %v1660
        %1833 = vmatprep.subr.mxu0 0.0
        %1834 = vmatpush1.msra.mxu0 %v1661
        %1835 = vmatprep.subr.mxu0 0.0
        %1836 = vmatpush1.msra.mxu0 %v1662
        %1837 = vmatprep.subr.mxu0 0.0
        %1838 = vmatpush1.msra.mxu0 %v1663
        %1839 = vmatprep.subr.mxu0 0.0
        %1840 = vmatpush1.msra.mxu0 %v1664
        %1841 = vmatprep.mubr.f32.mxu0 %v1572
        %1842 = vmatmul.mubr.f32.gmra.mrb[0].mxu0 %v1571
        %v1843 = vpop.f32.mrb[0].mxu0
        %v1844 = vadd.f32 %v1754, %v1843
        %v1845 = vpop.f32.mrb[0].mxu0
        %1846 = vmatprep.mubr.f32.mxu0 %v1583
        %1847 = vmatmul.mubr.f32.gmra.mrb[0].mxu0 %v1582
        %v1848 = vpop.f32.mrb[0].mxu0
        %v1849 = vadd.f32 %v1759, %v1848
        %v1850 = vpop.f32.mrb[0].mxu0
        %1851 = vmatprep.mubr.f32.mxu0 %v1588
        %1852 = vmatmul.mubr.f32.gmra.mrb[0].mxu0 %v1587
        %v1853 = vpop.f32.mrb[0].mxu0
        %v1854 = vadd.f32 %v1764, %v1853
        %v1855 = vpop.f32.mrb[0].mxu0
        %1856 = vmatprep.mubr.f32.mxu0 %v1599
        %1857 = vmatmul.mubr.f32.gmra.mrb[0].mxu0 %v1598
        %v1858 = vpop.f32.mrb[0].mxu0
        %v1859 = vadd.f32 %v1769, %v1858
        %v1860 = vpop.f32.mrb[0].mxu0
        %1861 = vmatprep.mubr.f32.mxu0 %v1561
        %1862 = vmatmul.mubr.f32.gmra.mrb[0].mxu0 %v1560
        %v1863 = vpop.f32.mrb[0].mxu0
        %v1864 = vadd.f32 %v1774, %v1863
        %v1865 = vpop.f32.mrb[0].mxu0
        %1866 = vdwg.mxu0
        %1867 = vmatprep.subr.mxu0 0.0
        %1868 = vmatpush1.msra.mxu0 %v1665
        %1869 = vmatprep.subr.mxu0 0.0
        %1870 = vmatpush1.msra.mxu0 %v1666
        %1871 = vmatprep.subr.mxu0 0.0
        %1872 = vmatpush1.msra.mxu0 %v1667
        %1873 = vmatprep.subr.mxu0 0.0
        %1874 = vmatpush1.msra.mxu0 %v1668
        %1875 = vmatprep.subr.mxu0 0.0
        %1876 = vmatpush1.msra.mxu0 %v1669
        %1877 = vmatprep.subr.mxu0 0.0
        %1878 = vmatpush1.msra.mxu0 %v1670
        %1879 = vmatprep.subr.mxu0 0.0
        %1880 = vmatpush1.msra.mxu0 %v1671
        %1881 = vmatprep.subr.mxu0 0.0
        %1882 = vmatpush1.msra.mxu0 %v1672
        %1883 = vmatprep.subr.mxu0 0.0
        %1884 = vmatpush1.msra.mxu0 0.0
        %1885 = vmatprep.subr.mxu0 0.0
        %1886 = vmatpush1.msra.mxu0 0.0
        %1887 = vmatprep.subr.mxu0 0.0
        %1888 = vmatpush1.msra.mxu0 0.0
        %1889 = vmatprep.subr.mxu0 0.0
        %1890 = vmatpush1.msra.mxu0 0.0
        %1891 = vmatprep.subr.mxu0 0.0
        %1892 = vmatpush1.msra.mxu0 0.0
        %1893 = vmatprep.subr.mxu0 0.0
        %1894 = vmatpush1.msra.mxu0 0.0
        %1895 = vmatprep.subr.mxu0 0.0
        %1896 = vmatpush1.msra.mxu0 0.0
        %1897 = vmatprep.subr.mxu0 0.0
        %1898 = vmatpush1.msra.mxu0 0.0
        %1899 = vmatprep.subr.mxu0 0.0
        %1900 = vmatpush1.msra.mxu0 0.0
        %1901 = vmatprep.subr.mxu0 0.0
        %1902 = vmatpush1.msra.mxu0 0.0
        %1903 = vmatprep.subr.mxu0 0.0
        %1904 = vmatpush1.msra.mxu0 0.0
        %1905 = vmatprep.subr.mxu0 0.0
        %1906 = vmatpush1.msra.mxu0 0.0
        %1907 = vmatprep.subr.mxu0 0.0
        %1908 = vmatpush1.msra.mxu0 0.0
        %1909 = vmatprep.subr.mxu0 0.0
        %1910 = vmatpush1.msra.mxu0 0.0
        %1911 = vmatprep.subr.mxu0 0.0
        %1912 = vmatpush1.msra.mxu0 0.0
        %1913 = vmatprep.subr.mxu0 0.0
        %1914 = vmatpush1.msra.mxu0 0.0
        %1915 = vmatprep.subr.mxu0 0.0
        %1916 = vmatpush1.msra.mxu0 0.0
        %1917 = vmatprep.subr.mxu0 0.0
        %1918 = vmatpush1.msra.mxu0 0.0
        %1919 = vmatprep.subr.mxu0 0.0
        %1920 = vmatpush1.msra.mxu0 0.0
        %1921 = vmatprep.subr.mxu0 0.0
        %1922 = vmatpush1.msra.mxu0 0.0
        %1923 = vmatprep.subr.mxu0 0.0
        %1924 = vmatpush1.msra.mxu0 0.0
        %1925 = vmatprep.subr.mxu0 0.0
        %1926 = vmatpush1.msra.mxu0 0.0
        %1927 = vmatprep.subr.mxu0 0.0
        %1928 = vmatpush1.msra.mxu0 0.0
        %1929 = vmatprep.subr.mxu0 0.0
        %1930 = vmatpush1.msra.mxu0 0.0
        %1931 = vmatprep.mubr.f32.mxu0 0.0
        %1932 = vmatmul.mubr.f32.gmra.mrb[0].mxu0 %v1674
        %v1933 = vpop.f32.mrb[0].mxu0
        %v1934 = vadd.f32 %v1844, %v1933
        %v1935 = vpop.f32.mrb[0].mxu0
        %1936 = vmatprep.mubr.f32.mxu0 0.0
        %1937 = vmatmul.mubr.f32.gmra.mrb[0].mxu0 %v1677
        %v1938 = vpop.f32.mrb[0].mxu0
        %v1939 = vadd.f32 %v1849, %v1938
        %v1940 = vpop.f32.mrb[0].mxu0
        %1941 = vmatprep.mubr.f32.mxu0 0.0
        %1942 = vmatmul.mubr.f32.gmra.mrb[0].mxu0 %v1680
        %v1943 = vpop.f32.mrb[0].mxu0
        %v1944 = vadd.f32 %v1854, %v1943
        %v1945 = vpop.f32.mrb[0].mxu0
        %1946 = vmatprep.mubr.f32.mxu0 0.0
        %1947 = vmatmul.mubr.f32.gmra.mrb[0].mxu0 %v1683
        %v1948 = vpop.f32.mrb[0].mxu0
        %v1949 = vadd.f32 %v1859, %v1948
        %v1950 = vpop.f32.mrb[0].mxu0
        %1951 = vmatprep.mubr.f32.mxu0 0.0
        %1952 = vmatmul.mubr.f32.gmra.mrb[0].mxu0 %v1685
        %v1953 = vpop.f32.mrb[0].mxu0
        %v1954 = vadd.f32 %v1864, %v1953
        %v1955 = vpop.f32.mrb[0].mxu0
        %1956 = vdwg.mxu0
        %v1957 = vld [vmem:[#allocation10] sm:$0x1]
        %v1959 = vlaneseq
        %v1960 = vshrl.u32 %v1959, 7
        %v1961 = vsub.s32 0, %v1960
        %v1962 = vrot.slane %v1957, %v1961
        %v1964 = vmul.f32 %v1934, %v1962
        %v1965 = vmul.f32 %v1939, %v1962
        %v1966 = vmul.f32 %v1944, %v1962
        %v1967 = vmul.f32 %v1949, %v1962
        %v1968 = vmul.f32 %v1954, %v1962
        %v1969 = vld [vmem:[#allocation12] sm:$0x1]
        %v1971 = vlaneseq
        %v1972 = vshrl.u32 %v1971, 7
        %v1973 = vsub.s32 0, %v1972
        %v1974 = vrot.slane %v1969, %v1973
        %v1976 = vadd.f32 %v1964, %v1974
        %v1977 = vadd.f32 %v1965, %v1974
        %v1978 = vadd.f32 %v1966, %v1974
        %v1979 = vadd.f32 %v1967, %v1974
        %v1980 = vadd.f32 %v1968, %v1974
        %vm1981 = vcmp.gt.f32.partialorder %v1976, 0.0
        %vm1982 = vcmp.gt.f32.partialorder %v1977, 0.0
        %vm1983 = vcmp.gt.f32.partialorder %v1978, 0.0
        %vm1984 = vcmp.gt.f32.partialorder %v1979, 0.0
        %vm1985 = vcmp.gt.f32.partialorder %v1980, 0.0
        %v1986 = vmul.f32 %v1976, 0.2
        %v1987 = vmul.f32 %v1977, 0.2
        %v1988 = vmul.f32 %v1978, 0.2
        %v1989 = vmul.f32 %v1979, 0.2
        %v1990 = vmul.f32 %v1980, 0.2
        %v1991 = vsel %vm1981, %v1976, %v1986
        %v1992 = vsel %vm1982, %v1977, %v1987
        %v1993 = vsel %vm1983, %v1978, %v1988
        %v1994 = vsel %vm1984, %v1979, %v1989
        %v1995 = vsel %vm1985, %v1980, %v1990
        %v1996 = vld [vmem:[#allocation13] sm:$0x1]
        %v1998 = vlaneseq
        %v1999 = vshrl.u32 %v1998, 7
        %v2000 = vsub.s32 0, %v1999
        %v2001 = vrot.slane %v1996, %v2000
        %2003 = vst [vmem:[#allocation3] sm:$0x3f] %v2001
        %2004 = vst [vmem:[#allocation3 + $0x8] sm:$0x3f] %v2001
        %2005 = vst [vmem:[#allocation3 + $0x10] sm:$0x3f] %v2001
        %2006 = vst [vmem:[#allocation3 + $0x18] sm:$0x3f] %v2001
        %2007 = vst [vmem:[#allocation3 + $0x20] sm:$0x3f] %v2001
        %2008 = vst [vmem:[#allocation3 + $0x28] sm:$0x3f] %v2001
        %2009 = vst [vmem:[#allocation3 + $0x30] sm:$0x3f] %v2001
        %2010 = vst [vmem:[#allocation3 + $0x38] sm:$0x3f] %v2001
        %2011 = vst [vmem:[#allocation3] sm:$0x1f] %v1991
        %s2012 = scalar_lea.vmem [#allocation3], 8
        %2013 = vst [vmem:[%s2012 - $0x5] sm:$0xe0] %v1991
        %2014 = vst [vmem:[%s2012 + $0x3] sm:$0x3] %v1992
        %s2015 = scalar_lea.vmem [#allocation3], 16
        %2016 = vst [vmem:[%s2015 - $0x2] sm:$0x7c] %v1992
        %s2017 = scalar_lea.vmem [#allocation3], 24
        %2018 = vst [vmem:[%s2017 - $0x7] sm:$0x80] %v1992
        %2019 = vst [vmem:[%s2017 + $0x1] sm:$0xf] %v1993
        %s2020 = scalar_lea.vmem [#allocation3], 32
        %2021 = vst [vmem:[%s2020 - $0x4] sm:$0xf0] %v1993
        %2022 = vst [vmem:[%s2020 + $0x4] sm:$0x1] %v1994
        %s2023 = scalar_lea.vmem [#allocation3], 40
        %2024 = vst [vmem:[%s2023 - $0x1] sm:$0x3e] %v1994
        %s2025 = scalar_lea.vmem [#allocation3], 48
        %2026 = vst [vmem:[%s2025 - $0x6] sm:$0xc0] %v1994
        %2027 = vst [vmem:[%s2025 + $0x2] sm:$0x7] %v1995
        %v2028 = vld [vmem:[#allocation3] sm:$0x3f]
        %v2029 = vld [vmem:[#allocation3 + $0x8] sm:$0x3f]
        %v2030 = vld [vmem:[#allocation3 + $0x10] sm:$0x3f]
        %v2031 = vld [vmem:[#allocation3 + $0x18] sm:$0x3f]
        %v2032 = vld [vmem:[#allocation3 + $0x20] sm:$0x3f]
        %v2033 = vld [vmem:[#allocation3 + $0x28] sm:$0x3f]
        %v2034 = vld [vmem:[#allocation3 + $0x30] sm:$0x3f]
        %v2042 = vrot.slane %v2028, 1
        %v2043 = vrot.slane %v2029, 1
        %v2044 = vrot.slane %v2030, 1
        %v2045 = vrot.slane %v2031, 1
        %v2046 = vrot.slane %v2032, 1
        %v2047 = vrot.slane %v2033, 1
        %v2048 = vrot.slane %v2034, 1
        %v2056 = vsel %vm626, %v2028, %v2042
        %v2057 = vsel %vm626, %v2029, %v2043
        %v2058 = vsel %vm626, %v2030, %v2044
        %v2059 = vsel %vm626, %v2031, %v2045
        %v2060 = vsel %vm626, %v2032, %v2046
        %v2061 = vsel %vm626, %v2033, %v2047
        %v2062 = vsel %vm626, %v2034, %v2048
        %v2063 = vrot.slane %v2028, 2
        %v2064 = vrot.slane %v2029, 2
        %v2065 = vrot.slane %v2030, 2
        %v2066 = vrot.slane %v2031, 2
        %v2067 = vrot.slane %v2032, 2
        %v2068 = vrot.slane %v2033, 2
        %v2069 = vrot.slane %v2034, 2
        %v2077 = vsel %vm626, %v2042, %v2063
        %v2078 = vsel %vm626, %v2043, %v2064
        %v2079 = vsel %vm626, %v2044, %v2065
        %v2080 = vsel %vm626, %v2045, %v2066
        %v2081 = vsel %vm626, %v2046, %v2067
        %v2082 = vsel %vm626, %v2047, %v2068
        %v2083 = vsel %vm626, %v2048, %v2069
        %v2084 = vrot.slane %v2028, 3
        %v2085 = vrot.slane %v2029, 3
        %v2086 = vrot.slane %v2030, 3
        %v2087 = vrot.slane %v2031, 3
        %v2088 = vrot.slane %v2032, 3
        %v2089 = vrot.slane %v2033, 3
        %v2090 = vrot.slane %v2034, 3
        %v2098 = vsel %vm626, %v2063, %v2084
        %v2099 = vsel %vm626, %v2064, %v2085
        %v2100 = vsel %vm626, %v2065, %v2086
        %v2101 = vsel %vm626, %v2066, %v2087
        %v2102 = vsel %vm626, %v2067, %v2088
        %v2103 = vsel %vm626, %v2068, %v2089
        %v2104 = vsel %vm626, %v2069, %v2090
        %v2114 = vrot.slane %v2058, 6
        %v2115 = vrot.slane %v2079, 6
        %v2116 = vrot.slane %v2100, 6
        %v2117 = vrot.slane %v2059, 6
        %v2118 = vrot.slane %v2080, 6
        %v2119 = vrot.slane %v2101, 6
        %v2120 = vrot.slane %v2060, 6
        %v2121 = vrot.slane %v2081, 6
        %v2122 = vrot.slane %v2102, 6
        %v2138 = vrot.slane %v2060, 4
        %v2139 = vrot.slane %v2081, 4
        %v2140 = vrot.slane %v2102, 4
        %v2141 = vrot.slane %v2061, 4
        %v2142 = vrot.slane %v2082, 4
        %v2143 = vrot.slane %v2103, 4
        %v2144 = vrot.slane %v2062, 4
        %v2145 = vrot.slane %v2083, 4
        %v2146 = vrot.slane %v2104, 4
        %v2156 = vsel %vm1115, %v2056, %v2114
        %v2157 = vsel %vm1115, %v2077, %v2115
        %v2158 = vsel %vm1115, %v2098, %v2116
        %v2159 = vsel %vm1115, %v2057, %v2117
        %v2160 = vsel %vm1115, %v2078, %v2118
        %v2161 = vsel %vm1115, %v2099, %v2119
        %v2162 = vsel %vm1115, %v2058, %v2120
        %v2163 = vsel %vm1115, %v2079, %v2121
        %v2164 = vsel %vm1115, %v2100, %v2122
        %v2165 = vsel %vm1147, %v2156, %v2138
        %v2166 = vsel %vm1147, %v2157, %v2139
        %v2167 = vsel %vm1147, %v2158, %v2140
        %v2168 = vsel %vm1147, %v2159, %v2141
        %v2169 = vsel %vm1147, %v2160, %v2142
        %v2170 = vsel %vm1147, %v2161, %v2143
        %v2171 = vsel %vm1147, %v2162, %v2144
        %v2172 = vsel %vm1147, %v2163, %v2145
        %v2173 = vsel %vm1147, %v2164, %v2146
        %v2174 = vld [vmem:[#allocation15] sm:$0xff]
        %v2175 = vld [vmem:[#allocation15 + $0x8] sm:$0xff]
        %v2176 = vld [vmem:[#allocation15 + $0x10] sm:$0xff]
        %v2177 = vld [vmem:[#allocation15 + $0x18] sm:$0xff]
        %v2178 = vld [vmem:[#allocation15 + $0x20] sm:$0xff]
        %v2179 = vld [vmem:[#allocation15 + $0x28] sm:$0xff]
        %v2180 = vld [vmem:[#allocation15 + $0x30] sm:$0xff]
        %v2181 = vld [vmem:[#allocation15 + $0x38] sm:$0xff]
        %v2182 = vld [vmem:[#allocation15 + $0x40] sm:$0xff]
        %v2183 = vld [vmem:[#allocation15 + $0x48] sm:$0xff]
        %v2184 = vld [vmem:[#allocation15 + $0x50] sm:$0xff]
        %v2185 = vld [vmem:[#allocation15 + $0x58] sm:$0xff]
        %v2186 = vld [vmem:[#allocation15 + $0x60] sm:$0xff]
        %v2187 = vld [vmem:[#allocation15 + $0x68] sm:$0xff]
        %v2188 = vld [vmem:[#allocation15 + $0x70] sm:$0xff]
        %v2189 = vld [vmem:[#allocation15 + $0x78] sm:$0xff]
        %v2190 = vld [vmem:[#allocation15 + $0x80] sm:$0xff]
        %v2191 = vld [vmem:[#allocation15 + $0x88] sm:$0xff]
        %v2192 = vld [vmem:[#allocation15 + $0x90] sm:$0xff]
        %v2193 = vld [vmem:[#allocation15 + $0x98] sm:$0xff]
        %v2194 = vld [vmem:[#allocation15 + $0xa0] sm:$0xff]
        %v2195 = vld [vmem:[#allocation15 + $0xa8] sm:$0xff]
        %v2196 = vld [vmem:[#allocation15 + $0xb0] sm:$0xff]
        %v2197 = vld [vmem:[#allocation15 + $0xb8] sm:$0xff]
        %v2198 = vld [vmem:[#allocation15 + $0xc0] sm:$0xff]
        %v2199 = vld [vmem:[#allocation15 + $0xc8] sm:$0xff]
        %v2200 = vld [vmem:[#allocation15 + $0xd0] sm:$0xff]
        %v2201 = vld [vmem:[#allocation15 + $0xd8] sm:$0xff]
        %v2202 = vld [vmem:[#allocation15 + $0xe0] sm:$0xff]
        %v2203 = vld [vmem:[#allocation15 + $0xe8] sm:$0xff]
        %v2204 = vld [vmem:[#allocation15 + $0xf0] sm:$0xff]
        %v2205 = vld [vmem:[#allocation15 + $0xf8] sm:$0xff]
        %v2206 = vld [vmem:[#allocation15 + $0x100] sm:$0xff]
        %v2207 = vld [vmem:[#allocation15 + $0x108] sm:$0xff]
        %v2208 = vld [vmem:[#allocation15 + $0x110] sm:$0xff]
        %v2209 = vld [vmem:[#allocation15 + $0x118] sm:$0xff]
        %v2210 = vld [vmem:[#allocation15 + $0x120] sm:$0xff]
        %v2211 = vld [vmem:[#allocation15 + $0x128] sm:$0xff]
        %v2212 = vld [vmem:[#allocation15 + $0x130] sm:$0xff]
        %v2213 = vld [vmem:[#allocation15 + $0x138] sm:$0xff]
        %v2214 = vld [vmem:[#allocation15 + $0x140] sm:$0xff]
        %v2215 = vld [vmem:[#allocation15 + $0x148] sm:$0xff]
        %v2216 = vld [vmem:[#allocation15 + $0x150] sm:$0xff]
        %v2217 = vld [vmem:[#allocation15 + $0x158] sm:$0xff]
        %v2218 = vld [vmem:[#allocation15 + $0x160] sm:$0xff]
        %v2219 = vld [vmem:[#allocation15 + $0x168] sm:$0xff]
        %v2220 = vld [vmem:[#allocation15 + $0x170] sm:$0xff]
        %v2221 = vld [vmem:[#allocation15 + $0x178] sm:$0xff]
        %v2222 = vld [vmem:[#allocation15 + $0x180] sm:$0xff]
        %v2223 = vld [vmem:[#allocation15 + $0x188] sm:$0xff]
        %v2224 = vld [vmem:[#allocation15 + $0x190] sm:$0xff]
        %v2225 = vld [vmem:[#allocation15 + $0x198] sm:$0xff]
        %v2226 = vld [vmem:[#allocation15 + $0x1a0] sm:$0xff]
        %v2227 = vld [vmem:[#allocation15 + $0x1a8] sm:$0xff]
        %v2228 = vld [vmem:[#allocation15 + $0x1b0] sm:$0xff]
        %v2229 = vld [vmem:[#allocation15 + $0x1b8] sm:$0xff]
        %v2230 = vld [vmem:[#allocation15 + $0x1c0] sm:$0xff]
        %v2231 = vld [vmem:[#allocation15 + $0x1c8] sm:$0xff]
        %v2232 = vld [vmem:[#allocation15 + $0x1d0] sm:$0xff]
        %v2233 = vld [vmem:[#allocation15 + $0x1d8] sm:$0xff]
        %v2234 = vld [vmem:[#allocation15 + $0x1e0] sm:$0xff]
        %v2235 = vld [vmem:[#allocation15 + $0x1e8] sm:$0xff]
        %v2236 = vld [vmem:[#allocation15 + $0x1f0] sm:$0xff]
        %v2237 = vld [vmem:[#allocation15 + $0x1f8] sm:$0xff]
        %v2238 = vld [vmem:[#allocation15 + $0x200] sm:$0xff]
        %v2239 = vld [vmem:[#allocation15 + $0x208] sm:$0xff]
        %v2240 = vld [vmem:[#allocation15 + $0x210] sm:$0xff]
        %v2241 = vld [vmem:[#allocation15 + $0x218] sm:$0xff]
        %v2242 = vld [vmem:[#allocation15 + $0x220] sm:$0xff]
        %v2243 = vld [vmem:[#allocation15 + $0x228] sm:$0xff]
        %v2244 = vld [vmem:[#allocation15 + $0x230] sm:$0xff]
        %v2245 = vld [vmem:[#allocation15 + $0x238] sm:$0xff]
        %v2246 = vld [vmem:[#allocation15 + $0x240] sm:$0xff]
        %v2247 = vld [vmem:[#allocation15 + $0x248] sm:$0xff]
        %v2248 = vld [vmem:[#allocation15 + $0x250] sm:$0xff]
        %v2249 = vld [vmem:[#allocation15 + $0x258] sm:$0xff]
        %v2250 = vld [vmem:[#allocation15 + $0x260] sm:$0xff]
        %v2251 = vld [vmem:[#allocation15 + $0x268] sm:$0xff]
        %v2252 = vld [vmem:[#allocation15 + $0x270] sm:$0xff]
        %v2253 = vld [vmem:[#allocation15 + $0x278] sm:$0xff]
        %v2254 = vld [vmem:[#allocation15 + $0x280] sm:$0xff]
        %v2255 = vld [vmem:[#allocation15 + $0x288] sm:$0xff]
        %v2256 = vld [vmem:[#allocation15 + $0x290] sm:$0xff]
        %v2257 = vld [vmem:[#allocation15 + $0x298] sm:$0xff]
        %v2258 = vld [vmem:[#allocation15 + $0x2a0] sm:$0xff]
        %v2259 = vld [vmem:[#allocation15 + $0x2a8] sm:$0xff]
        %v2260 = vld [vmem:[#allocation15 + $0x2b0] sm:$0xff]
        %v2261 = vld [vmem:[#allocation15 + $0x2b8] sm:$0xff]
        %v2262 = vld [vmem:[#allocation15 + $0x2c0] sm:$0xff]
        %v2263 = vld [vmem:[#allocation15 + $0x2c8] sm:$0xff]
        %v2264 = vld [vmem:[#allocation15 + $0x2d0] sm:$0xff]
        %v2265 = vld [vmem:[#allocation15 + $0x2d8] sm:$0xff]
        %v2266 = vld [vmem:[#allocation15 + $0x2e0] sm:$0xff]
        %v2267 = vld [vmem:[#allocation15 + $0x2e8] sm:$0xff]
        %v2268 = vld [vmem:[#allocation15 + $0x2f0] sm:$0xff]
        %v2269 = vld [vmem:[#allocation15 + $0x2f8] sm:$0xff]
        %v2270 = vld [vmem:[#allocation15 + $0x300] sm:$0xff]
        %v2271 = vld [vmem:[#allocation15 + $0x308] sm:$0xff]
        %v2272 = vld [vmem:[#allocation15 + $0x310] sm:$0xff]
        %v2273 = vld [vmem:[#allocation15 + $0x318] sm:$0xff]
        %v2274 = vld [vmem:[#allocation15 + $0x320] sm:$0xff]
        %v2275 = vld [vmem:[#allocation15 + $0x328] sm:$0xff]
        %v2276 = vld [vmem:[#allocation15 + $0x330] sm:$0xff]
        %v2277 = vld [vmem:[#allocation15 + $0x338] sm:$0xff]
        %v2278 = vld [vmem:[#allocation15 + $0x340] sm:$0xff]
        %v2279 = vld [vmem:[#allocation15 + $0x348] sm:$0xff]
        %v2280 = vld [vmem:[#allocation15 + $0x350] sm:$0xff]
        %v2281 = vld [vmem:[#allocation15 + $0x358] sm:$0xff]
        %v2282 = vld [vmem:[#allocation15 + $0x360] sm:$0xff]
        %v2283 = vld [vmem:[#allocation15 + $0x368] sm:$0xff]
        %v2284 = vld [vmem:[#allocation15 + $0x370] sm:$0xff]
        %v2285 = vld [vmem:[#allocation15 + $0x378] sm:$0xff]
        %v2286 = vld [vmem:[#allocation15 + $0x380] sm:$0xff]
        %v2287 = vld [vmem:[#allocation15 + $0x388] sm:$0xff]
        %v2288 = vld [vmem:[#allocation15 + $0x390] sm:$0xff]
        %v2289 = vld [vmem:[#allocation15 + $0x398] sm:$0xff]
        %v2290 = vld [vmem:[#allocation15 + $0x3a0] sm:$0xff]
        %v2291 = vld [vmem:[#allocation15 + $0x3a8] sm:$0xff]
        %v2292 = vld [vmem:[#allocation15 + $0x3b0] sm:$0xff]
        %v2293 = vld [vmem:[#allocation15 + $0x3b8] sm:$0xff]
        %v2294 = vld [vmem:[#allocation15 + $0x3c0] sm:$0xff]
        %v2295 = vld [vmem:[#allocation15 + $0x3c8] sm:$0xff]
        %v2296 = vld [vmem:[#allocation15 + $0x3d0] sm:$0xff]
        %v2297 = vld [vmem:[#allocation15 + $0x3d8] sm:$0xff]
        %v2298 = vld [vmem:[#allocation15 + $0x3e0] sm:$0xff]
        %v2299 = vld [vmem:[#allocation15 + $0x3e8] sm:$0xff]
        %v2300 = vld [vmem:[#allocation15 + $0x3f0] sm:$0xff]
        %v2301 = vld [vmem:[#allocation15 + $0x3f8] sm:$0xff]
        %v2302 = vld [vmem:[#allocation15 + $0x400] sm:$0xff]
        %v2303 = vld [vmem:[#allocation15 + $0x408] sm:$0xff]
        %v2304 = vld [vmem:[#allocation15 + $0x410] sm:$0xff]
        %v2305 = vld [vmem:[#allocation15 + $0x418] sm:$0xff]
        %v2306 = vld [vmem:[#allocation15 + $0x420] sm:$0xff]
        %v2307 = vld [vmem:[#allocation15 + $0x428] sm:$0xff]
        %v2308 = vld [vmem:[#allocation15 + $0x430] sm:$0xff]
        %v2309 = vld [vmem:[#allocation15 + $0x438] sm:$0xff]
        %v2310 = vld [vmem:[#allocation15 + $0x440] sm:$0xff]
        %v2311 = vld [vmem:[#allocation15 + $0x448] sm:$0xff]
        %v2312 = vld [vmem:[#allocation15 + $0x450] sm:$0xff]
        %v2313 = vld [vmem:[#allocation15 + $0x458] sm:$0xff]
        %v2314 = vld [vmem:[#allocation15 + $0x460] sm:$0xff]
        %v2315 = vld [vmem:[#allocation15 + $0x468] sm:$0xff]
        %v2316 = vld [vmem:[#allocation15 + $0x470] sm:$0xff]
        %v2317 = vld [vmem:[#allocation15 + $0x478] sm:$0xff]
        %v2318 = vld [vmem:[#allocation15 + $0x480] sm:$0xff]
        %v2319 = vld [vmem:[#allocation15 + $0x488] sm:$0xff]
        %v2320 = vld [vmem:[#allocation15 + $0x490] sm:$0xff]
        %v2321 = vld [vmem:[#allocation15 + $0x498] sm:$0xff]
        %v2322 = vld [vmem:[#allocation15 + $0x4a0] sm:$0xff]
        %v2323 = vld [vmem:[#allocation15 + $0x4a8] sm:$0xff]
        %v2324 = vld [vmem:[#allocation15 + $0x4b0] sm:$0xff]
        %v2325 = vld [vmem:[#allocation15 + $0x4b8] sm:$0xff]
        %v2326 = vld [vmem:[#allocation15 + $0x4c0] sm:$0xff]
        %v2327 = vld [vmem:[#allocation15 + $0x4c8] sm:$0xff]
        %v2328 = vld [vmem:[#allocation15 + $0x4d0] sm:$0xff]
        %v2329 = vld [vmem:[#allocation15 + $0x4d8] sm:$0xff]
        %v2330 = vld [vmem:[#allocation15 + $0x4e0] sm:$0xff]
        %v2331 = vld [vmem:[#allocation15 + $0x4e8] sm:$0xff]
        %v2332 = vld [vmem:[#allocation15 + $0x4f0] sm:$0xff]
        %v2333 = vld [vmem:[#allocation15 + $0x4f8] sm:$0xff]
        %v2334 = vld [vmem:[#allocation15 + $0x500] sm:$0xff]
        %v2335 = vld [vmem:[#allocation15 + $0x508] sm:$0xff]
        %v2336 = vld [vmem:[#allocation15 + $0x510] sm:$0xff]
        %v2337 = vld [vmem:[#allocation15 + $0x518] sm:$0xff]
        %v2338 = vld [vmem:[#allocation15 + $0x520] sm:$0xff]
        %v2339 = vld [vmem:[#allocation15 + $0x528] sm:$0xff]
        %v2340 = vld [vmem:[#allocation15 + $0x530] sm:$0xff]
        %v2341 = vld [vmem:[#allocation15 + $0x538] sm:$0xff]
        %v2342 = vld [vmem:[#allocation15 + $0x540] sm:$0xff]
        %v2343 = vld [vmem:[#allocation15 + $0x548] sm:$0xff]
        %v2344 = vld [vmem:[#allocation15 + $0x550] sm:$0xff]
        %v2345 = vld [vmem:[#allocation15 + $0x558] sm:$0xff]
        %v2346 = vld [vmem:[#allocation15 + $0x560] sm:$0xff]
        %v2347 = vld [vmem:[#allocation15 + $0x568] sm:$0xff]
        %v2348 = vld [vmem:[#allocation15 + $0x570] sm:$0xff]
        %v2349 = vld [vmem:[#allocation15 + $0x578] sm:$0xff]
        %v2350 = vld [vmem:[#allocation15 + $0x580] sm:$0xff]
        %v2351 = vld [vmem:[#allocation15 + $0x588] sm:$0xff]
        %v2352 = vld [vmem:[#allocation15 + $0x590] sm:$0xff]
        %v2353 = vld [vmem:[#allocation15 + $0x598] sm:$0xff]
        %v2354 = vld [vmem:[#allocation15 + $0x5a0] sm:$0xff]
        %v2355 = vld [vmem:[#allocation15 + $0x5a8] sm:$0xff]
        %v2356 = vld [vmem:[#allocation15 + $0x5b0] sm:$0xff]
        %v2357 = vld [vmem:[#allocation15 + $0x5b8] sm:$0xff]
        %v2358 = vld [vmem:[#allocation15 + $0x5c0] sm:$0xff]
        %v2359 = vld [vmem:[#allocation15 + $0x5c8] sm:$0xff]
        %v2360 = vld [vmem:[#allocation15 + $0x5d0] sm:$0xff]
        %v2361 = vld [vmem:[#allocation15 + $0x5d8] sm:$0xff]
        %v2362 = vld [vmem:[#allocation15 + $0x5e0] sm:$0xff]
        %v2363 = vld [vmem:[#allocation15 + $0x5e8] sm:$0xff]
        %v2364 = vld [vmem:[#allocation15 + $0x5f0] sm:$0xff]
        %v2365 = vld [vmem:[#allocation15 + $0x5f8] sm:$0xff]
        %v2366 = vld [vmem:[#allocation15 + $0x600] sm:$0xff]
        %v2367 = vld [vmem:[#allocation15 + $0x608] sm:$0xff]
        %v2368 = vld [vmem:[#allocation15 + $0x610] sm:$0xff]
        %v2369 = vld [vmem:[#allocation15 + $0x618] sm:$0xff]
        %v2370 = vld [vmem:[#allocation15 + $0x620] sm:$0xff]
        %v2371 = vld [vmem:[#allocation15 + $0x628] sm:$0xff]
        %v2372 = vld [vmem:[#allocation15 + $0x630] sm:$0xff]
        %v2373 = vld [vmem:[#allocation15 + $0x638] sm:$0xff]
        %v2374 = vld [vmem:[#allocation15 + $0x640] sm:$0xff]
        %v2375 = vld [vmem:[#allocation15 + $0x648] sm:$0xff]
        %v2376 = vld [vmem:[#allocation15 + $0x650] sm:$0xff]
        %v2377 = vld [vmem:[#allocation15 + $0x658] sm:$0xff]
        %v2378 = vld [vmem:[#allocation15 + $0x660] sm:$0xff]
        %v2379 = vld [vmem:[#allocation15 + $0x668] sm:$0xff]
        %v2380 = vld [vmem:[#allocation15 + $0x670] sm:$0xff]
        %v2381 = vld [vmem:[#allocation15 + $0x678] sm:$0xff]
        %v2382 = vld [vmem:[#allocation15 + $0x680] sm:$0xff]
        %v2383 = vld [vmem:[#allocation15 + $0x688] sm:$0xff]
        %v2384 = vld [vmem:[#allocation15 + $0x690] sm:$0xff]
        %v2385 = vld [vmem:[#allocation15 + $0x698] sm:$0xff]
        %v2386 = vld [vmem:[#allocation15 + $0x6a0] sm:$0xff]
        %v2387 = vld [vmem:[#allocation15 + $0x6a8] sm:$0xff]
        %v2388 = vld [vmem:[#allocation15 + $0x6b0] sm:$0xff]
        %v2389 = vld [vmem:[#allocation15 + $0x6b8] sm:$0xff]
        %v2390 = vld [vmem:[#allocation15 + $0x6c0] sm:$0xff]
        %v2391 = vld [vmem:[#allocation15 + $0x6c8] sm:$0xff]
        %v2392 = vld [vmem:[#allocation15 + $0x6d0] sm:$0xff]
        %v2393 = vld [vmem:[#allocation15 + $0x6d8] sm:$0xff]
        %v2394 = vld [vmem:[#allocation15 + $0x6e0] sm:$0xff]
        %v2395 = vld [vmem:[#allocation15 + $0x6e8] sm:$0xff]
        %v2396 = vld [vmem:[#allocation15 + $0x6f0] sm:$0xff]
        %v2397 = vld [vmem:[#allocation15 + $0x6f8] sm:$0xff]
        %v2398 = vld [vmem:[#allocation15 + $0x700] sm:$0xff]
        %v2399 = vld [vmem:[#allocation15 + $0x708] sm:$0xff]
        %v2400 = vld [vmem:[#allocation15 + $0x710] sm:$0xff]
        %v2401 = vld [vmem:[#allocation15 + $0x718] sm:$0xff]
        %v2402 = vld [vmem:[#allocation15 + $0x720] sm:$0xff]
        %v2403 = vld [vmem:[#allocation15 + $0x728] sm:$0xff]
        %v2404 = vld [vmem:[#allocation15 + $0x730] sm:$0xff]
        %v2405 = vld [vmem:[#allocation15 + $0x738] sm:$0xff]
        %v2406 = vld [vmem:[#allocation15 + $0x740] sm:$0xff]
        %v2407 = vld [vmem:[#allocation15 + $0x748] sm:$0xff]
        %v2408 = vld [vmem:[#allocation15 + $0x750] sm:$0xff]
        %v2409 = vld [vmem:[#allocation15 + $0x758] sm:$0xff]
        %v2410 = vld [vmem:[#allocation15 + $0x760] sm:$0xff]
        %v2411 = vld [vmem:[#allocation15 + $0x768] sm:$0xff]
        %v2412 = vld [vmem:[#allocation15 + $0x770] sm:$0xff]
        %v2413 = vld [vmem:[#allocation15 + $0x778] sm:$0xff]
        %v2414 = vld [vmem:[#allocation15 + $0x780] sm:$0xff]
        %v2415 = vld [vmem:[#allocation15 + $0x788] sm:$0xff]
        %v2416 = vld [vmem:[#allocation15 + $0x790] sm:$0xff]
        %v2417 = vld [vmem:[#allocation15 + $0x798] sm:$0xff]
        %v2418 = vld [vmem:[#allocation15 + $0x7a0] sm:$0xff]
        %v2419 = vld [vmem:[#allocation15 + $0x7a8] sm:$0xff]
        %v2420 = vld [vmem:[#allocation15 + $0x7b0] sm:$0xff]
        %v2421 = vld [vmem:[#allocation15 + $0x7b8] sm:$0xff]
        %v2422 = vld [vmem:[#allocation15 + $0x7c0] sm:$0xff]
        %v2423 = vld [vmem:[#allocation15 + $0x7c8] sm:$0xff]
        %v2424 = vld [vmem:[#allocation15 + $0x7d0] sm:$0xff]
        %v2425 = vld [vmem:[#allocation15 + $0x7d8] sm:$0xff]
        %v2426 = vld [vmem:[#allocation15 + $0x7e0] sm:$0xff]
        %v2427 = vld [vmem:[#allocation15 + $0x7e8] sm:$0xff]
        %v2428 = vld [vmem:[#allocation15 + $0x7f0] sm:$0xff]
        %v2429 = vld [vmem:[#allocation15 + $0x7f8] sm:$0xff]
        %v2430 = vld [vmem:[#allocation15 + $0x800] sm:$0xff]
        %v2431 = vld [vmem:[#allocation15 + $0x808] sm:$0xff]
        %v2432 = vld [vmem:[#allocation15 + $0x810] sm:$0xff]
        %v2433 = vld [vmem:[#allocation15 + $0x818] sm:$0xff]
        %v2434 = vld [vmem:[#allocation15 + $0x820] sm:$0xff]
        %v2435 = vld [vmem:[#allocation15 + $0x828] sm:$0xff]
        %v2436 = vld [vmem:[#allocation15 + $0x830] sm:$0xff]
        %v2437 = vld [vmem:[#allocation15 + $0x838] sm:$0xff]
        %v2438 = vld [vmem:[#allocation15 + $0x840] sm:$0xff]
        %v2439 = vld [vmem:[#allocation15 + $0x848] sm:$0xff]
        %v2440 = vld [vmem:[#allocation15 + $0x850] sm:$0xff]
        %v2441 = vld [vmem:[#allocation15 + $0x858] sm:$0xff]
        %v2442 = vld [vmem:[#allocation15 + $0x860] sm:$0xff]
        %v2443 = vld [vmem:[#allocation15 + $0x868] sm:$0xff]
        %v2444 = vld [vmem:[#allocation15 + $0x870] sm:$0xff]
        %v2445 = vld [vmem:[#allocation15 + $0x878] sm:$0xff]
        %v2446 = vld [vmem:[#allocation15 + $0x880] sm:$0xff]
        %v2447 = vld [vmem:[#allocation15 + $0x888] sm:$0xff]
        %v2448 = vld [vmem:[#allocation15 + $0x890] sm:$0xff]
        %v2449 = vld [vmem:[#allocation15 + $0x898] sm:$0xff]
        %v2450 = vld [vmem:[#allocation15 + $0x8a0] sm:$0xff]
        %v2451 = vld [vmem:[#allocation15 + $0x8a8] sm:$0xff]
        %v2452 = vld [vmem:[#allocation15 + $0x8b0] sm:$0xff]
        %v2453 = vld [vmem:[#allocation15 + $0x8b8] sm:$0xff]
        %v2454 = vld [vmem:[#allocation15 + $0x8c0] sm:$0xff]
        %v2455 = vld [vmem:[#allocation15 + $0x8c8] sm:$0xff]
        %v2456 = vld [vmem:[#allocation15 + $0x8d0] sm:$0xff]
        %v2457 = vld [vmem:[#allocation15 + $0x8d8] sm:$0xff]
        %v2458 = vld [vmem:[#allocation15 + $0x8e0] sm:$0xff]
        %v2459 = vld [vmem:[#allocation15 + $0x8e8] sm:$0xff]
        %v2460 = vld [vmem:[#allocation15 + $0x8f0] sm:$0xff]
        %v2461 = vld [vmem:[#allocation15 + $0x8f8] sm:$0xff]
        %2462 = vmatprep.subr.mxu0 %v2175
        %2463 = vmatpush1.msra.mxu0 %v2174
        %2464 = vmatprep.subr.mxu0 %v2177
        %2465 = vmatpush1.msra.mxu0 %v2176
        %2466 = vmatprep.subr.mxu0 %v2179
        %2467 = vmatpush1.msra.mxu0 %v2178
        %2468 = vmatprep.subr.mxu0 %v2181
        %2469 = vmatpush1.msra.mxu0 %v2180
        %2470 = vmatprep.subr.mxu0 %v2183
        %2471 = vmatpush1.msra.mxu0 %v2182
        %2472 = vmatprep.subr.mxu0 %v2185
        %2473 = vmatpush1.msra.mxu0 %v2184
        %2474 = vmatprep.subr.mxu0 %v2187
        %2475 = vmatpush1.msra.mxu0 %v2186
        %2476 = vmatprep.subr.mxu0 %v2189
        %2477 = vmatpush1.msra.mxu0 %v2188
        %2478 = vmatprep.subr.mxu0 %v2191
        %2479 = vmatpush1.msra.mxu0 %v2190
        %2480 = vmatprep.subr.mxu0 %v2193
        %2481 = vmatpush1.msra.mxu0 %v2192
        %2482 = vmatprep.subr.mxu0 %v2195
        %2483 = vmatpush1.msra.mxu0 %v2194
        %2484 = vmatprep.subr.mxu0 %v2197
        %2485 = vmatpush1.msra.mxu0 %v2196
        %2486 = vmatprep.subr.mxu0 %v2199
        %2487 = vmatpush1.msra.mxu0 %v2198
        %2488 = vmatprep.subr.mxu0 %v2201
        %2489 = vmatpush1.msra.mxu0 %v2200
        %2490 = vmatprep.subr.mxu0 %v2203
        %2491 = vmatpush1.msra.mxu0 %v2202
        %2492 = vmatprep.subr.mxu0 %v2205
        %2493 = vmatpush1.msra.mxu0 %v2204
        %2494 = vmatprep.subr.mxu0 %v2207
        %2495 = vmatpush1.msra.mxu0 %v2206
        %2496 = vmatprep.subr.mxu0 %v2209
        %2497 = vmatpush1.msra.mxu0 %v2208
        %2498 = vmatprep.subr.mxu0 %v2211
        %2499 = vmatpush1.msra.mxu0 %v2210
        %2500 = vmatprep.subr.mxu0 %v2213
        %2501 = vmatpush1.msra.mxu0 %v2212
        %2502 = vmatprep.subr.mxu0 %v2215
        %2503 = vmatpush1.msra.mxu0 %v2214
        %2504 = vmatprep.subr.mxu0 %v2217
        %2505 = vmatpush1.msra.mxu0 %v2216
        %2506 = vmatprep.subr.mxu0 %v2219
        %2507 = vmatpush1.msra.mxu0 %v2218
        %2508 = vmatprep.subr.mxu0 %v2221
        %2509 = vmatpush1.msra.mxu0 %v2220
        %2510 = vmatprep.subr.mxu0 %v2223
        %2511 = vmatpush1.msra.mxu0 %v2222
        %2512 = vmatprep.subr.mxu0 %v2225
        %2513 = vmatpush1.msra.mxu0 %v2224
        %2514 = vmatprep.subr.mxu0 %v2227
        %2515 = vmatpush1.msra.mxu0 %v2226
        %2516 = vmatprep.subr.mxu0 %v2229
        %2517 = vmatpush1.msra.mxu0 %v2228
        %2518 = vmatprep.subr.mxu0 %v2231
        %2519 = vmatpush1.msra.mxu0 %v2230
        %2520 = vmatprep.subr.mxu0 %v2233
        %2521 = vmatpush1.msra.mxu0 %v2232
        %2522 = vmatprep.subr.mxu0 %v2235
        %2523 = vmatpush1.msra.mxu0 %v2234
        %2524 = vmatprep.subr.mxu0 %v2237
        %2525 = vmatpush1.msra.mxu0 %v2236
        %2526 = vmatprep.mubr.f32.mxu0 %v2166
        %2527 = vmatmul.mubr.f32.gmra.mrb[0].mxu0 %v2165
        %v2528 = vpop.f32.mrb[0].mxu0
        %v2529 = vadd.f32 0.0, %v2528
        %v2530 = vpop.f32.mrb[0].mxu0
        %v2531 = vadd.f32 0.0, %v2530
        %2532 = vdwg.mxu0
        %2533 = vmatprep.subr.mxu0 %v2239
        %2534 = vmatpush1.msra.mxu0 %v2238
        %2535 = vmatprep.subr.mxu0 %v2241
        %2536 = vmatpush1.msra.mxu0 %v2240
        %2537 = vmatprep.subr.mxu0 %v2243
        %2538 = vmatpush1.msra.mxu0 %v2242
        %2539 = vmatprep.subr.mxu0 %v2245
        %2540 = vmatpush1.msra.mxu0 %v2244
        %2541 = vmatprep.subr.mxu0 %v2247
        %2542 = vmatpush1.msra.mxu0 %v2246
        %2543 = vmatprep.subr.mxu0 %v2249
        %2544 = vmatpush1.msra.mxu0 %v2248
        %2545 = vmatprep.subr.mxu0 %v2251
        %2546 = vmatpush1.msra.mxu0 %v2250
        %2547 = vmatprep.subr.mxu0 %v2253
        %2548 = vmatpush1.msra.mxu0 %v2252
        %2549 = vmatprep.subr.mxu0 %v2255
        %2550 = vmatpush1.msra.mxu0 %v2254
        %2551 = vmatprep.subr.mxu0 %v2257
        %2552 = vmatpush1.msra.mxu0 %v2256
        %2553 = vmatprep.subr.mxu0 %v2259
        %2554 = vmatpush1.msra.mxu0 %v2258
        %2555 = vmatprep.subr.mxu0 %v2261
        %2556 = vmatpush1.msra.mxu0 %v2260
        %2557 = vmatprep.subr.mxu0 %v2263
        %2558 = vmatpush1.msra.mxu0 %v2262
        %2559 = vmatprep.subr.mxu0 %v2265
        %2560 = vmatpush1.msra.mxu0 %v2264
        %2561 = vmatprep.subr.mxu0 %v2267
        %2562 = vmatpush1.msra.mxu0 %v2266
        %2563 = vmatprep.subr.mxu0 %v2269
        %2564 = vmatpush1.msra.mxu0 %v2268
        %2565 = vmatprep.subr.mxu0 %v2271
        %2566 = vmatpush1.msra.mxu0 %v2270
        %2567 = vmatprep.subr.mxu0 %v2273
        %2568 = vmatpush1.msra.mxu0 %v2272
        %2569 = vmatprep.subr.mxu0 %v2275
        %2570 = vmatpush1.msra.mxu0 %v2274
        %2571 = vmatprep.subr.mxu0 %v2277
        %2572 = vmatpush1.msra.mxu0 %v2276
        %2573 = vmatprep.subr.mxu0 %v2279
        %2574 = vmatpush1.msra.mxu0 %v2278
        %2575 = vmatprep.subr.mxu0 %v2281
        %2576 = vmatpush1.msra.mxu0 %v2280
        %2577 = vmatprep.subr.mxu0 %v2283
        %2578 = vmatpush1.msra.mxu0 %v2282
        %2579 = vmatprep.subr.mxu0 %v2285
        %2580 = vmatpush1.msra.mxu0 %v2284
        %2581 = vmatprep.subr.mxu0 %v2287
        %2582 = vmatpush1.msra.mxu0 %v2286
        %2583 = vmatprep.subr.mxu0 %v2289
        %2584 = vmatpush1.msra.mxu0 %v2288
        %2585 = vmatprep.subr.mxu0 %v2291
        %2586 = vmatpush1.msra.mxu0 %v2290
        %2587 = vmatprep.subr.mxu0 %v2293
        %2588 = vmatpush1.msra.mxu0 %v2292
        %2589 = vmatprep.subr.mxu0 %v2295
        %2590 = vmatpush1.msra.mxu0 %v2294
        %2591 = vmatprep.subr.mxu0 %v2297
        %2592 = vmatpush1.msra.mxu0 %v2296
        %2593 = vmatprep.subr.mxu0 %v2299
        %2594 = vmatpush1.msra.mxu0 %v2298
        %2595 = vmatprep.subr.mxu0 %v2301
        %2596 = vmatpush1.msra.mxu0 %v2300
        %2597 = vmatprep.mubr.f32.mxu0 %v2168
        %2598 = vmatmul.mubr.f32.gmra.mrb[0].mxu0 %v2167
        %v2599 = vpop.f32.mrb[0].mxu0
        %v2600 = vadd.f32 %v2529, %v2599
        %v2601 = vpop.f32.mrb[0].mxu0
        %v2602 = vadd.f32 %v2531, %v2601
        %2603 = vdwg.mxu0
        %2604 = vmatprep.subr.mxu0 %v2303
        %2605 = vmatpush1.msra.mxu0 %v2302
        %2606 = vmatprep.subr.mxu0 %v2305
        %2607 = vmatpush1.msra.mxu0 %v2304
        %2608 = vmatprep.subr.mxu0 %v2307
        %2609 = vmatpush1.msra.mxu0 %v2306
        %2610 = vmatprep.subr.mxu0 %v2309
        %2611 = vmatpush1.msra.mxu0 %v2308
        %2612 = vmatprep.subr.mxu0 %v2311
        %2613 = vmatpush1.msra.mxu0 %v2310
        %2614 = vmatprep.subr.mxu0 %v2313
        %2615 = vmatpush1.msra.mxu0 %v2312
        %2616 = vmatprep.subr.mxu0 %v2315
        %2617 = vmatpush1.msra.mxu0 %v2314
        %2618 = vmatprep.subr.mxu0 %v2317
        %2619 = vmatpush1.msra.mxu0 %v2316
        %2620 = vmatprep.subr.mxu0 %v2319
        %2621 = vmatpush1.msra.mxu0 %v2318
        %2622 = vmatprep.subr.mxu0 %v2321
        %2623 = vmatpush1.msra.mxu0 %v2320
        %2624 = vmatprep.subr.mxu0 %v2323
        %2625 = vmatpush1.msra.mxu0 %v2322
        %2626 = vmatprep.subr.mxu0 %v2325
        %2627 = vmatpush1.msra.mxu0 %v2324
        %2628 = vmatprep.subr.mxu0 %v2327
        %2629 = vmatpush1.msra.mxu0 %v2326
        %2630 = vmatprep.subr.mxu0 %v2329
        %2631 = vmatpush1.msra.mxu0 %v2328
        %2632 = vmatprep.subr.mxu0 %v2331
        %2633 = vmatpush1.msra.mxu0 %v2330
        %2634 = vmatprep.subr.mxu0 %v2333
        %2635 = vmatpush1.msra.mxu0 %v2332
        %2636 = vmatprep.subr.mxu0 %v2335
        %2637 = vmatpush1.msra.mxu0 %v2334
        %2638 = vmatprep.subr.mxu0 %v2337
        %2639 = vmatpush1.msra.mxu0 %v2336
        %2640 = vmatprep.subr.mxu0 %v2339
        %2641 = vmatpush1.msra.mxu0 %v2338
        %2642 = vmatprep.subr.mxu0 %v2341
        %2643 = vmatpush1.msra.mxu0 %v2340
        %2644 = vmatprep.subr.mxu0 %v2343
        %2645 = vmatpush1.msra.mxu0 %v2342
        %2646 = vmatprep.subr.mxu0 %v2345
        %2647 = vmatpush1.msra.mxu0 %v2344
        %2648 = vmatprep.subr.mxu0 %v2347
        %2649 = vmatpush1.msra.mxu0 %v2346
        %2650 = vmatprep.subr.mxu0 %v2349
        %2651 = vmatpush1.msra.mxu0 %v2348
        %2652 = vmatprep.subr.mxu0 %v2351
        %2653 = vmatpush1.msra.mxu0 %v2350
        %2654 = vmatprep.subr.mxu0 %v2353
        %2655 = vmatpush1.msra.mxu0 %v2352
        %2656 = vmatprep.subr.mxu0 %v2355
        %2657 = vmatpush1.msra.mxu0 %v2354
        %2658 = vmatprep.subr.mxu0 %v2357
        %2659 = vmatpush1.msra.mxu0 %v2356
        %2660 = vmatprep.subr.mxu0 %v2359
        %2661 = vmatpush1.msra.mxu0 %v2358
        %2662 = vmatprep.subr.mxu0 %v2361
        %2663 = vmatpush1.msra.mxu0 %v2360
        %2664 = vmatprep.subr.mxu0 %v2363
        %2665 = vmatpush1.msra.mxu0 %v2362
        %2666 = vmatprep.subr.mxu0 %v2365
        %2667 = vmatpush1.msra.mxu0 %v2364
        %2668 = vmatprep.mubr.f32.mxu0 %v2170
        %2669 = vmatmul.mubr.f32.gmra.mrb[0].mxu0 %v2169
        %v2670 = vpop.f32.mrb[0].mxu0
        %v2671 = vadd.f32 %v2600, %v2670
        %v2672 = vpop.f32.mrb[0].mxu0
        %v2673 = vadd.f32 %v2602, %v2672
        %2674 = vdwg.mxu0
        %2675 = vmatprep.subr.mxu0 %v2367
        %2676 = vmatpush1.msra.mxu0 %v2366
        %2677 = vmatprep.subr.mxu0 %v2369
        %2678 = vmatpush1.msra.mxu0 %v2368
        %2679 = vmatprep.subr.mxu0 %v2371
        %2680 = vmatpush1.msra.mxu0 %v2370
        %2681 = vmatprep.subr.mxu0 %v2373
        %2682 = vmatpush1.msra.mxu0 %v2372
        %2683 = vmatprep.subr.mxu0 %v2375
        %2684 = vmatpush1.msra.mxu0 %v2374
        %2685 = vmatprep.subr.mxu0 %v2377
        %2686 = vmatpush1.msra.mxu0 %v2376
        %2687 = vmatprep.subr.mxu0 %v2379
        %2688 = vmatpush1.msra.mxu0 %v2378
        %2689 = vmatprep.subr.mxu0 %v2381
        %2690 = vmatpush1.msra.mxu0 %v2380
        %2691 = vmatprep.subr.mxu0 %v2383
        %2692 = vmatpush1.msra.mxu0 %v2382
        %2693 = vmatprep.subr.mxu0 %v2385
        %2694 = vmatpush1.msra.mxu0 %v2384
        %2695 = vmatprep.subr.mxu0 %v2387
        %2696 = vmatpush1.msra.mxu0 %v2386
        %2697 = vmatprep.subr.mxu0 %v2389
        %2698 = vmatpush1.msra.mxu0 %v2388
        %2699 = vmatprep.subr.mxu0 %v2391
        %2700 = vmatpush1.msra.mxu0 %v2390
        %2701 = vmatprep.subr.mxu0 %v2393
        %2702 = vmatpush1.msra.mxu0 %v2392
        %2703 = vmatprep.subr.mxu0 %v2395
        %2704 = vmatpush1.msra.mxu0 %v2394
        %2705 = vmatprep.subr.mxu0 %v2397
        %2706 = vmatpush1.msra.mxu0 %v2396
        %2707 = vmatprep.subr.mxu0 %v2399
        %2708 = vmatpush1.msra.mxu0 %v2398
        %2709 = vmatprep.subr.mxu0 %v2401
        %2710 = vmatpush1.msra.mxu0 %v2400
        %2711 = vmatprep.subr.mxu0 %v2403
        %2712 = vmatpush1.msra.mxu0 %v2402
        %2713 = vmatprep.subr.mxu0 %v2405
        %2714 = vmatpush1.msra.mxu0 %v2404
        %2715 = vmatprep.subr.mxu0 %v2407
        %2716 = vmatpush1.msra.mxu0 %v2406
        %2717 = vmatprep.subr.mxu0 %v2409
        %2718 = vmatpush1.msra.mxu0 %v2408
        %2719 = vmatprep.subr.mxu0 %v2411
        %2720 = vmatpush1.msra.mxu0 %v2410
        %2721 = vmatprep.subr.mxu0 %v2413
        %2722 = vmatpush1.msra.mxu0 %v2412
        %2723 = vmatprep.subr.mxu0 %v2415
        %2724 = vmatpush1.msra.mxu0 %v2414
        %2725 = vmatprep.subr.mxu0 %v2417
        %2726 = vmatpush1.msra.mxu0 %v2416
        %2727 = vmatprep.subr.mxu0 %v2419
        %2728 = vmatpush1.msra.mxu0 %v2418
        %2729 = vmatprep.subr.mxu0 %v2421
        %2730 = vmatpush1.msra.mxu0 %v2420
        %2731 = vmatprep.subr.mxu0 %v2423
        %2732 = vmatpush1.msra.mxu0 %v2422
        %2733 = vmatprep.subr.mxu0 %v2425
        %2734 = vmatpush1.msra.mxu0 %v2424
        %2735 = vmatprep.subr.mxu0 %v2427
        %2736 = vmatpush1.msra.mxu0 %v2426
        %2737 = vmatprep.subr.mxu0 %v2429
        %2738 = vmatpush1.msra.mxu0 %v2428
        %2739 = vmatprep.mubr.f32.mxu0 %v2172
        %2740 = vmatmul.mubr.f32.gmra.mrb[0].mxu0 %v2171
        %v2741 = vpop.f32.mrb[0].mxu0
        %v2742 = vadd.f32 %v2671, %v2741
        %v2743 = vpop.f32.mrb[0].mxu0
        %v2744 = vadd.f32 %v2673, %v2743
        %2745 = vdwg.mxu0
        %2746 = vmatprep.subr.mxu0 %v2431
        %2747 = vmatpush1.msra.mxu0 %v2430
        %2748 = vmatprep.subr.mxu0 %v2433
        %2749 = vmatpush1.msra.mxu0 %v2432
        %2750 = vmatprep.subr.mxu0 %v2435
        %2751 = vmatpush1.msra.mxu0 %v2434
        %2752 = vmatprep.subr.mxu0 %v2437
        %2753 = vmatpush1.msra.mxu0 %v2436
        %2754 = vmatprep.subr.mxu0 %v2439
        %2755 = vmatpush1.msra.mxu0 %v2438
        %2756 = vmatprep.subr.mxu0 %v2441
        %2757 = vmatpush1.msra.mxu0 %v2440
        %2758 = vmatprep.subr.mxu0 %v2443
        %2759 = vmatpush1.msra.mxu0 %v2442
        %2760 = vmatprep.subr.mxu0 %v2445
        %2761 = vmatpush1.msra.mxu0 %v2444
        %2762 = vmatprep.subr.mxu0 %v2447
        %2763 = vmatpush1.msra.mxu0 %v2446
        %2764 = vmatprep.subr.mxu0 %v2449
        %2765 = vmatpush1.msra.mxu0 %v2448
        %2766 = vmatprep.subr.mxu0 %v2451
        %2767 = vmatpush1.msra.mxu0 %v2450
        %2768 = vmatprep.subr.mxu0 %v2453
        %2769 = vmatpush1.msra.mxu0 %v2452
        %2770 = vmatprep.subr.mxu0 %v2455
        %2771 = vmatpush1.msra.mxu0 %v2454
        %2772 = vmatprep.subr.mxu0 %v2457
        %2773 = vmatpush1.msra.mxu0 %v2456
        %2774 = vmatprep.subr.mxu0 %v2459
        %2775 = vmatpush1.msra.mxu0 %v2458
        %2776 = vmatprep.subr.mxu0 %v2461
        %2777 = vmatpush1.msra.mxu0 %v2460
        %2778 = vmatprep.subr.mxu0 0.0
        %2779 = vmatpush1.msra.mxu0 0.0
        %2780 = vmatprep.subr.mxu0 0.0
        %2781 = vmatpush1.msra.mxu0 0.0
        %2782 = vmatprep.subr.mxu0 0.0
        %2783 = vmatpush1.msra.mxu0 0.0
        %2784 = vmatprep.subr.mxu0 0.0
        %2785 = vmatpush1.msra.mxu0 0.0
        %2786 = vmatprep.subr.mxu0 0.0
        %2787 = vmatpush1.msra.mxu0 0.0
        %2788 = vmatprep.subr.mxu0 0.0
        %2789 = vmatpush1.msra.mxu0 0.0
        %2790 = vmatprep.subr.mxu0 0.0
        %2791 = vmatpush1.msra.mxu0 0.0
        %2792 = vmatprep.subr.mxu0 0.0
        %2793 = vmatpush1.msra.mxu0 0.0
        %2794 = vmatprep.subr.mxu0 0.0
        %2795 = vmatpush1.msra.mxu0 0.0
        %2796 = vmatprep.subr.mxu0 0.0
        %2797 = vmatpush1.msra.mxu0 0.0
        %2798 = vmatprep.subr.mxu0 0.0
        %2799 = vmatpush1.msra.mxu0 0.0
        %2800 = vmatprep.subr.mxu0 0.0
        %2801 = vmatpush1.msra.mxu0 0.0
        %2802 = vmatprep.subr.mxu0 0.0
        %2803 = vmatpush1.msra.mxu0 0.0
        %2804 = vmatprep.subr.mxu0 0.0
        %2805 = vmatpush1.msra.mxu0 0.0
        %2806 = vmatprep.subr.mxu0 0.0
        %2807 = vmatpush1.msra.mxu0 0.0
        %2808 = vmatprep.subr.mxu0 0.0
        %2809 = vmatpush1.msra.mxu0 0.0
        %2810 = vmatprep.mubr.f32.mxu0 0.0
        %2811 = vmatmul.mubr.f32.gmra.mrb[0].mxu0 %v2173
        %v2812 = vpop.f32.mrb[0].mxu0
        %v2813 = vadd.f32 %v2742, %v2812
        %v2814 = vpop.f32.mrb[0].mxu0
        %v2815 = vadd.f32 %v2744, %v2814
        %2816 = vdwg.mxu0
        %v2817 = vld [vmem:[#allocation16] sm:$0x3]
        %v2819 = vlaneseq
        %v2820 = vshrl.u32 %v2819, 7
        %v2821 = vsub.s32 0, %v2820
        %v2822 = vrot.slane %v2817, %v2821
        %v2823 = vlaneseq
        %v2824 = vshrl.u32 %v2823, 7
        %v2825 = vsub.s32 1, %v2824
        %v2826 = vrot.slane %v2817, %v2825
        %v2829 = vmul.f32 %v2813, %v2822
        %v2830 = vmul.f32 %v2815, %v2826
        %v2831 = vld [vmem:[#allocation18] sm:$0x3]
        %v2833 = vlaneseq
        %v2834 = vshrl.u32 %v2833, 7
        %v2835 = vsub.s32 0, %v2834
        %v2836 = vrot.slane %v2831, %v2835
        %v2837 = vlaneseq
        %v2838 = vshrl.u32 %v2837, 7
        %v2839 = vsub.s32 1, %v2838
        %v2840 = vrot.slane %v2831, %v2839
        %v2843 = vadd.f32 %v2829, %v2836
        %v2844 = vadd.f32 %v2830, %v2840
        %vm2845 = vcmp.gt.f32.partialorder %v2843, 0.0
        %vm2846 = vcmp.gt.f32.partialorder %v2844, 0.0
        %v2847 = vmul.f32 %v2843, 0.2
        %v2848 = vmul.f32 %v2844, 0.2
        %v2849 = vsel %vm2845, %v2843, %v2847
        %v2850 = vsel %vm2846, %v2844, %v2848
        %v2851 = vld [vmem:[#allocation19] sm:$0x3f]
        %v2852 = vld [vmem:[#allocation19 + $0x8] sm:$0x3f]
        %v2853 = vmul.f32 %v2849, %v2851
        %v2854 = vmul.f32 %v2850, %v2852
        %v2855 = vsel %vm1595, %v2853, 0.0
        %v2856 = vsel %vm1595, %v2854, 0.0
        %v2857 = vadd.f32 %v2855, %v2856
        %2858 = vadd.xlane.f32.xlu0 %v2857
        %v2859 = vpop.xlane.xlu0 %2858
        %v2860 = vsel %vm1595, %v2859, 0.0
        %v2861 = vrot.slane %v2860, 4
        %v2862 = vadd.f32 %v2860, %v2861
        %v2863 = vrot.slane %v2862, 2
        %v2864 = vadd.f32 %v2862, %v2863
        %v2865 = vrot.slane %v2864, 1
        %v2866 = vadd.f32 %v2864, %v2865
        %v2867 = vld [vmem:[#allocation4] sm:$0x1]
        %v2868 = vadd.f32 %v2866, %v2867
        %v2869 = vsub.f32 0.0, %v2868
        %v2870 = vmul.f32 %v2869, 1.442695
        %v2871 = vpow.pop %v2870
        %v2872 = vadd.f32 %v2871, 1.0
        %v2873 = vrcp.pop %v2872
        %vm2874 = vcmask 0
        %2875 = vst.msk [vmem:[%s543] sm:$0x1] %vm2874, %v2873
        %p2876 = scmp.lt.s32.totalorder %s31, 1
        %s2877 = scalar_select %p2876, %s31, 1
        %s2878 = scalar_lea.vmem %s12, %s2877
        // Predicated region
        $region109: #{discriminator_forward.1} parent=67 // pred_check
          %p2879 = pneg %p306
        $region110: #{discriminator_forward.1} parent=67 // pred_check_branch
          %2881 = sbr.rel (%p2879) target = $region112
        $region111: #{discriminator_forward.1} parent=67 // pred_region
          _
        $region112: #{discriminator_forward.1} parent=67 // pred_fallthru
          _
      $region68: #{discriminator_forward.1} parent=5 // pred_fallthru
        _
      %p2882 = scmp.le.s32.totalorder 2, %s26
      // Predicated region
      $region113: #{discriminator_forward.1} parent=5 // pred_check
        %p2883 = pneg %p2882
      $region114: #{discriminator_forward.1} parent=5 // pred_check_branch
        %2885 = sbr.rel (%p2883) target = $region116
      $region115: #{discriminator_forward.1} parent=5 // pred_region
        %s2886 = ssub.s32 %s26, 2
        // Predicated region
        $region117: #{discriminator_forward.1} parent=115 // pred_check
          %p2887 = pneg %p312
        $region118: #{discriminator_forward.1} parent=115 // pred_check_branch
          %2889 = sbr.rel (%p2887) target = $region120
        $region119: #{discriminator_forward.1} parent=115 // pred_region
          %p2890 = scmp.lt.s32.totalorder %s32, 1
          %s2891 = scalar_select %p2890, %s32, 1
          %s2892 = scalar_lea.vmem %s12, %s2891
        $region120: #{discriminator_forward.1} parent=115 // pred_fallthru
          _
      $region116: #{discriminator_forward.1} parent=5 // pred_fallthru
        _
    $region6: #{discriminator_forward.1} parent=1 // loop_footer
      %s30 = sadd.s32 1, %s26
    $region7: #{discriminator_forward.1} parent=1 // loop_footer_branch
      %25 = sbr.rel target = $region3
    $region8: #{discriminator_forward.1} parent=1 // loop_exit
      _
    %2893 = vsyncpa [#allocation6], 1
    %s2894 = scalar_lea.sflag [#allocation6], 1
    %2895 = vsyncpa %s2894, 1
    %2896 = vsyncpa [#allocation8], 1
    %2897 = vsyncpa [#allocation11], 1
    %2898 = vsyncpa [#allocation14], 1
    %2899 = vsyncpa [#allocation17], 1
    %2900 = vsyncpa [#allocation20], 1

</llo_original>
